<compile_context>
chip_gen: v6e
topology: v6e:2x2x1
jax: 0.10.0
libtpu: 0.0.40
codegen_flags: <defaults>
</compile_context>

<pallas_src>
import functools

import jax
import jax.numpy as jnp
from jax import lax
from jax.experimental import pallas as pl
from jax.experimental.pallas import tpu as pltpu


# ---------------------------------------------------------------------------
# Kernel
# ---------------------------------------------------------------------------
def _roi_pool_kernel(bidx_ref, bounds_ref, x_ref, out_ref, *, PH, PW, H, W):
    """One grid step = one (channel-tile, ROI) pair.

    bidx_ref   : scalar-prefetch int32 (K,)      -- batch index per sorted ROI
                                                    (only used by the index_map)
    bounds_ref : SMEM int32 (K*(2*PH+2*PW),)     -- per-ROI bin bounds, layout
                 [hstart(PH), hend(PH), wstart(PW), wend(PW)]
    x_ref      : VMEM (1, H, W, TC)              -- channel tile of ROI's image
    out_ref    : VMEM (1, PH, PW, TC)
    """
    del bidx_ref  # consumed by the BlockSpec index_map only
    r = pl.program_id(1)                     # ROI index (inner grid axis)
    base = r * (2 * PH + 2 * PW)

    x = x_ref[0]                             # (H, W, TC); channels on lanes
    if jnp.issubdtype(x.dtype, jnp.floating):
        neg = jnp.array(-jnp.inf, dtype=x.dtype)
    else:
        neg = jnp.array(jnp.iinfo(x.dtype).min, dtype=x.dtype)
    zero = jnp.array(0, dtype=x.dtype)

    h_iota = lax.broadcasted_iota(jnp.int32, (H, 1, 1), 0)   # (H, 1, 1)
    w_iota = lax.broadcasted_iota(jnp.int32, (W, 1), 0)      # (W, 1)

    # Hoist the W-bin masks / empty flags (independent of the H bin).
    wmasks, w_empty = [], []
    for pw_i in range(PW):
        ws = bounds_ref[base + 2 * PH + pw_i]
        we = bounds_ref[base + 2 * PH + PW + pw_i]
        wmasks.append((w_iota >= ws) & (w_iota < we))        # (W, 1)
        w_empty.append(we <= ws)

    for ph_i in range(PH):                   # PH is small & static: unroll
        hs = bounds_ref[base + ph_i]
        he = bounds_ref[base + PH + ph_i]
        hmask = (h_iota >= hs) & (h_iota < he)               # (H, 1, 1)
        # Pass 1: H-bin masked max over the full slab. Reducing the LEADING
        # axis is a chain of elementwise maxes across vregs -> VPU, cheap.
        hrow = jnp.max(jnp.where(hmask, x, neg), axis=0)     # (W, TC)
        h_empty = he <= hs

        cols = []
        for pw_i in range(PW):
            # Pass 2: W-bin masked max. Sublane (XLU) reduce, but only over
            # the small (W, TC) intermediate instead of the whole H*W slab.
            col = jnp.max(jnp.where(wmasks[pw_i], hrow, neg),
                          axis=0, keepdims=True)             # (1, TC)
            empty = h_empty | w_empty[pw_i]
            cols.append(jnp.where(empty, zero, col))         # empty bins -> 0
        row = jnp.concatenate(cols, axis=0)                  # (PW, TC)
        out_ref[0, ph_i, :, :] = row.astype(out_ref.dtype)   # row-wise store


# ---------------------------------------------------------------------------
# Wrapper helpers
# ---------------------------------------------------------------------------
def _round_half_away_from_zero(v):
    # C-style round(): half away from zero (matches torchvision, incl. negatives).
    return jnp.where(v >= 0, jnp.floor(v + 0.5), jnp.ceil(v - 0.5)).astype(jnp.int32)


def _compute_bin_bounds(rois, spatial_scale, PH, PW, H, W):
    """torchvision ROI-pool bin boundaries, computed in the JAX wrapper so the
    kernel only does integer scalar SMEM reads (no float scalar floor/ceil)."""
    batch_idx = rois[:, 0].astype(jnp.int32)
    sw = _round_half_away_from_zero(rois[:, 1] * spatial_scale)
    sh = _round_half_away_from_zero(rois[:, 2] * spatial_scale)
    ew = _round_half_away_from_zero(rois[:, 3] * spatial_scale)
    eh = _round_half_away_from_zero(rois[:, 4] * spatial_scale)
    roi_w = jnp.maximum(ew - sw + 1, 1).astype(jnp.float32)
    roi_h = jnp.maximum(eh - sh + 1, 1).astype(jnp.float32)
    bin_w = roi_w / PW
    bin_h = roi_h / PH
    ph = jnp.arange(PH, dtype=jnp.float32)[None, :]          # (1, PH)
    pw = jnp.arange(PW, dtype=jnp.float32)[None, :]          # (1, PW)
    hstart = jnp.clip(jnp.floor(ph * bin_h[:, None]).astype(jnp.int32) + sh[:, None], 0, H)
    hend = jnp.clip(jnp.ceil((ph + 1.0) * bin_h[:, None]).astype(jnp.int32) + sh[:, None], 0, H)
    wstart = jnp.clip(jnp.floor(pw * bin_w[:, None]).astype(jnp.int32) + sw[:, None], 0, W)
    wend = jnp.clip(jnp.ceil((pw + 1.0) * bin_w[:, None]).astype(jnp.int32) + sw[:, None], 0, W)
    # Per-ROI row layout: [hstart(PH), hend(PH), wstart(PW), wend(PW)]
    bounds = jnp.concatenate([hstart, hend, wstart, wend], axis=1)   # (K, 2PH+2PW)
    return batch_idx, bounds


def _vmem_capacity_bytes():
    try:
        return int(pltpu.get_tpu_info().vmem_capacity_bytes)
    except Exception:
        return 64 << 20   # conservative: assume v7x-level per-core VMEM


def _pick_channel_tile(C, H, W, itemsize, budget_bytes):
    """Largest channel tile that legally tiles the lane axis (multiple of 128
    dividing C, or full C) and keeps a (1, H, W, TC) block within budget."""
    if H * W * C * itemsize <= budget_bytes:
        return C
    if C % 128 != 0:
        return C                    # cannot tile the lane axis legally; take all of C
    for m in range(C // 128, 0, -1):
        tc = m * 128
        if C % tc == 0 and H * W * tc * itemsize <= budget_bytes:
            return tc
    return 128


# ---------------------------------------------------------------------------
# Public entry points
# ---------------------------------------------------------------------------
def roi_pool_nhwc(x_nhwc, rois, output_size, spatial_scale):
    """Native channels-last ROI max pooling (no layout transposes).

    x_nhwc: (N, H, W, C), rois: (K, 5) [batch_idx, x1, y1, x2, y2]
    returns (K, PH, PW, C).  Prefer this entry point if activations already
    live channels-last -- it avoids an extra full-HBM transpose pass.
    """
    if isinstance(output_size, (tuple, list)):
        PH, PW = int(output_size[0]), int(output_size[1])
    else:
        PH = PW = int(output_size)
    N, H, W, C = x_nhwc.shape
    K = rois.shape[0]
    itemsize = jnp.dtype(x_nhwc.dtype).itemsize

    batch_idx, bounds = _compute_bin_bounds(
        rois.astype(jnp.float32), float(spatial_scale), PH, PW, H, W)

    # Sort ROIs by batch index: consecutive grid steps reuse the same
    # feature-map block, so the pipeline skips the re-DMA within each run.
    order = jnp.argsort(batch_idx)
    inv_order = jnp.argsort(order)
    bidx_sorted = jnp.take(batch_idx, order)
    # Flat 1-D int32 SMEM table (avoids 2-D SMEM padding blowup).
    bounds_sorted = jnp.take(bounds, order, axis=0).reshape(-1)

    # Generation-aware VMEM budgeting.
    cap = _vmem_capacity_bytes()
    if cap >= (96 << 20):               # v5e / v6e: 128 MiB physical VMEM
        in_budget = 20 << 20
        vmem_ceiling = 96 << 20
    else:                               # v7x: 64 MiB per TensorCore
        in_budget = 8 << 20
        vmem_ceiling = min(48 << 20, (cap * 3) // 4)

    TC = _pick_channel_tile(C, H, W, itemsize, in_budget)
    n_ct = C // TC
    in_block = H * W * TC * itemsize
    out_block = PH * PW * TC * itemsize
    need = 2 * in_block + 2 * out_block + (4 << 20)   # double-buffered in/out + headroom
    if need > vmem_ceiling:
        # TODO(synk): spatial (H) tiling with an output-resident running max for
        # feature maps too large for one VMEM block; fail loudly for now.
        raise ValueError(
            f"ROIPool input block ({in_block} bytes) does not fit the VMEM "
            f"budget ({vmem_ceiling} bytes) even at the smallest legal channel "
            f"tile; spatial tiling is not implemented.")
    vmem_limit = int(min(max(32 << 20, need), vmem_ceiling))

    kernel = functools.partial(_roi_pool_kernel, PH=PH, PW=PW, H=H, W=W)

    out_sorted = pl.pallas_call(
        kernel,
        out_shape=jax.ShapeDtypeStruct((K, PH, PW, C), x_nhwc.dtype),
        grid_spec=pltpu.PrefetchScalarGridSpec(
            num_scalar_prefetch=1,                 # batch_idx -> SMEM, feeds index_map
            grid=(n_ct, K),                        # channel tiles OUTER, ROIs inner
            in_specs=[
                pl.BlockSpec(memory_space=pltpu.MemorySpace.SMEM),
                # Data-dependent block: channel tile `c` of rois[r]'s batch image.
                pl.BlockSpec((1, H, W, TC), lambda c, r, bidx: (bidx[r], 0, 0, c)),
            ],
            out_specs=pl.BlockSpec((1, PH, PW, TC), lambda c, r, bidx: (r, 0, 0, c)),
        ),
        compiler_params=pltpu.CompilerParams(
            dimension_semantics=("parallel", "parallel"),
            vmem_limit_bytes=vmem_limit,
        ),
    )(bidx_sorted, bounds_sorted, x_nhwc)

    return jnp.take(out_sorted, inv_order, axis=0)           # (K, PH, PW, C)


def roi_pool(x, rois, output_size, spatial_scale):
    """Pallas TPU ROI max-pooling, NCHW API matching torchvision.ops.roi_pool.

    x: (N, C, H, W), rois: (K, 5) [batch_idx, x1, y1, x2, y2]
    returns (K, C, PH, PW).

    NOTE: the NCHW<->NHWC transposes are an extra full HBM pass over x; callers
    that keep activations channels-last should use roi_pool_nhwc directly.
    """
    x_nhwc = jnp.transpose(x, (0, 2, 3, 1))                   # (N, H, W, C)
    out_nhwc = roi_pool_nhwc(x_nhwc, rois, output_size, spatial_scale)
    return jnp.transpose(out_nhwc, (0, 3, 1, 2))              # (K, C, PH, PW)


def roi_pool_ref(x, rois, output_size, spatial_scale):
    """Pure-JAX reference (torchvision semantics) for correctness check."""
    if isinstance(output_size, (tuple, list)):
        PH, PW = int(output_size[0]), int(output_size[1])
    else:
        PH = PW = int(output_size)
    N, C, H, W = x.shape

    def rnd(v):
        v = v * spatial_scale
        return jnp.where(v >= 0, jnp.floor(v + 0.5), jnp.ceil(v - 0.5)).astype(jnp.int32)

    def one(roi):
        b = roi[0].astype(jnp.int32)
        rsw, rsh, rew, reh = rnd(roi[1]), rnd(roi[2]), rnd(roi[3]), rnd(roi[4])
        rw = jnp.maximum(rew - rsw + 1, 1)
        rh = jnp.maximum(reh - rsh + 1, 1)
        bh = rh.astype(jnp.float32) / PH
        bw = rw.astype(jnp.float32) / PW
        feat = x[b]
        ph = jnp.arange(PH, dtype=jnp.float32)
        pw = jnp.arange(PW, dtype=jnp.float32)
        hstart = jnp.clip(jnp.floor(ph * bh).astype(jnp.int32) + rsh, 0, H)
        hend = jnp.clip(jnp.ceil((ph + 1) * bh).astype(jnp.int32) + rsh, 0, H)
        wstart = jnp.clip(jnp.floor(pw * bw).astype(jnp.int32) + rsw, 0, W)
        wend = jnp.clip(jnp.ceil((pw + 1) * bw).astype(jnp.int32) + rsw, 0, W)
        hm = (jnp.arange(H)[None, :] >= hstart[:, None]) & (jnp.arange(H)[None, :] < hend[:, None])
        wm = (jnp.arange(W)[None, :] >= wstart[:, None]) & (jnp.arange(W)[None, :] < wend[:, None])
        tmp = jnp.where(wm[None, None, :, :], feat[:, :, None, :], -jnp.inf).max(-1)
        out = jnp.where(hm[None, :, :, None], tmp[:, None, :, :], -jnp.inf).max(2)
        empty = (~hm.any(1))[:, None] | (~wm.any(1))[None, :]
        return jnp.where(empty[None], 0.0, out)

    return jax.vmap(one)(rois)


class ROIPool:
    """JAX/Pallas equivalent of the PyTorch ROIPool module (forward only)."""

    def __init__(self, output_size, spatial_scale):
        self.output_size = output_size
        self.spatial_scale = spatial_scale

    def __call__(self, inp, rois):
        return roi_pool(inp, rois, self.output_size, self.spatial_scale)

    def __repr__(self):
        return (self.__class__.__name__ + "(output_size=" + str(self.output_size)
                + ", spatial_scale=" + str(self.spatial_scale) + ")")

    # TODO(synk): backward pass (_ROIPool.backward / argmax scatter) not implemented; forward only.


if __name__ == "__main__":
    key = jax.random.PRNGKey(0)

    # --- Test 1: small NCHW f32, deliberately unsorted batch indices. ---
    N, C, H, W = 2, 4, 16, 16
    x = jax.random.normal(key, (N, C, H, W), dtype=jnp.float32)
    # ROIs in input-image coordinates (64x64 image -> 16x16 feature map, scale 0.25).
    rois = jnp.array(
        [
            [1.0, 0.0, 0.0, 60.0, 60.0],
            [0.0, 4.0, 4.0, 40.0, 48.0],
            [0.0, 12.0, 8.0, 30.0, 50.0],
        ],
        dtype=jnp.float32,
    )
    pool = ROIPool(output_size=(7, 7), spatial_scale=0.25)
    out = jax.block_until_ready(pool(x, rois))
    ref = jax.block_until_ready(roi_pool_ref(x, rois, (7, 7), 0.25))
    assert out.shape == (rois.shape[0], C, 7, 7), out.shape
    assert jnp.allclose(out, ref, atol=1e-6), "Pallas ROIPool mismatch vs reference (f32)"

    # --- Test 2: lane-dense channels (C=128), bf16. ---
    key2 = jax.random.PRNGKey(1)
    x2 = jax.random.normal(key2, (2, 128, 16, 16), dtype=jnp.float32).astype(jnp.bfloat16)
    rois2 = jnp.array(
        [
            [0.0, 0.0, 0.0, 63.0, 63.0],
            [1.0, 8.0, 8.0, 56.0, 40.0],
            [1.0, 0.0, 16.0, 24.0, 60.0],
            [0.0, 20.0, 4.0, 44.0, 28.0],
        ],
        dtype=jnp.float32,
    )
    out2 = jax.block_until_ready(roi_pool(x2, rois2, (7, 7), 0.25))
    ref2 = jax.block_until_ready(roi_pool_ref(x2, rois2, (7, 7), 0.25))
    assert out2.shape == (4, 128, 7, 7), out2.shape
    assert jnp.allclose(out2.astype(jnp.float32), ref2.astype(jnp.float32), atol=1e-6), \
        "Pallas ROIPool mismatch vs reference (bf16)"

    print("KERNEL_OK")
</pallas_src>

<mosaic_0001>
module attributes {stable_mosaic.version = 11 : i64} {
  func.func @_roi_pool_kernel(%arg0: i32, %arg1: i32, %arg2: memref<3xi32, #tpu.memory_space<smem>>, %arg3: memref<84xi32, #tpu.memory_space<smem>>, %arg4: memref<1x16x16x4xf32, #tpu.memory_space<vmem>>, %arg5: memref<1x7x7x4xf32, #tpu.memory_space<vmem>>) attributes {dimension_semantics = [#tpu.dimension_semantics<parallel>, #tpu.dimension_semantics<parallel>], iteration_bounds = array<i64: 1, 3>, scalar_prefetch = 1 : i64, scratch_operands = 0 : i64, tpu.core_type = #tpu.core_type<tc>, window_params = [{transform_indices = @transform_0, window_bounds = array<i64: 84>}, {transform_indices = @transform_1, window_bounds = array<i64: 1, 16, 16, 4>}, {transform_indices = @transform_2, window_bounds = array<i64: 1, 7, 7, 4>}]} {
    %c28_i32 = arith.constant 28 : i32
    %0 = arith.muli %arg1, %c28_i32 : i32
    %c0 = arith.constant 0 : index
    %c0_0 = arith.constant 0 : index
    %c0_1 = arith.constant 0 : index
    %c0_2 = arith.constant 0 : index
    %1 = vector.load %arg4[%c0, %c0_0, %c0_1, %c0_2] : memref<1x16x16x4xf32, #tpu.memory_space<vmem>>, vector<1x16x16x4xf32>
    %2 = vector.shape_cast %1 : vector<1x16x16x4xf32> to vector<16x16x4xf32>
    %3 = tpu.iota {dimensions = array<i32: 0>} : vector<16x1x1xi32>
    %4 = tpu.iota {dimensions = array<i32: 0>} : vector<16x1xi32>
    %c14_i32 = arith.constant 14 : i32
    %5 = arith.addi %0, %c14_i32 : i32
    %c0_i32 = arith.constant 0 : i32
    %6 = arith.addi %5, %c0_i32 : i32
    %7 = arith.index_cast %6 : i32 to index
    %8 = memref.load %arg3[%7] : memref<84xi32, #tpu.memory_space<smem>>
    %c14_i32_3 = arith.constant 14 : i32
    %9 = arith.addi %0, %c14_i32_3 : i32
    %c7_i32 = arith.constant 7 : i32
    %10 = arith.addi %9, %c7_i32 : i32
    %c0_i32_4 = arith.constant 0 : i32
    %11 = arith.addi %10, %c0_i32_4 : i32
    %12 = arith.index_cast %11 : i32 to index
    %13 = memref.load %arg3[%12] : memref<84xi32, #tpu.memory_space<smem>>
    %14 = vector.broadcast %8 : i32 to vector<16x1xi32>
    %15 = arith.cmpi sge, %4, %14 : vector<16x1xi32>
    %16 = vector.broadcast %13 : i32 to vector<16x1xi32>
    %17 = arith.cmpi slt, %4, %16 : vector<16x1xi32>
    %18 = arith.andi %15, %17 : vector<16x1xi1>
    %19 = arith.cmpi sle, %13, %8 : i32
    %c14_i32_5 = arith.constant 14 : i32
    %20 = arith.addi %0, %c14_i32_5 : i32
    %c1_i32 = arith.constant 1 : i32
    %21 = arith.addi %20, %c1_i32 : i32
    %22 = arith.index_cast %21 : i32 to index
    %23 = memref.load %arg3[%22] : memref<84xi32, #tpu.memory_space<smem>>
    %c14_i32_6 = arith.constant 14 : i32
    %24 = arith.addi %0, %c14_i32_6 : i32
    %c7_i32_7 = arith.constant 7 : i32
    %25 = arith.addi %24, %c7_i32_7 : i32
    %c1_i32_8 = arith.constant 1 : i32
    %26 = arith.addi %25, %c1_i32_8 : i32
    %27 = arith.index_cast %26 : i32 to index
    %28 = memref.load %arg3[%27] : memref<84xi32, #tpu.memory_space<smem>>
    %29 = vector.broadcast %23 : i32 to vector<16x1xi32>
    %30 = arith.cmpi sge, %4, %29 : vector<16x1xi32>
    %31 = vector.broadcast %28 : i32 to vector<16x1xi32>
    %32 = arith.cmpi slt, %4, %31 : vector<16x1xi32>
    %33 = arith.andi %30, %32 : vector<16x1xi1>
    %34 = arith.cmpi sle, %28, %23 : i32
    %c14_i32_9 = arith.constant 14 : i32
    %35 = arith.addi %0, %c14_i32_9 : i32
    %c2_i32 = arith.constant 2 : i32
    %36 = arith.addi %35, %c2_i32 : i32
    %37 = arith.index_cast %36 : i32 to index
    %38 = memref.load %arg3[%37] : memref<84xi32, #tpu.memory_space<smem>>
    %c14_i32_10 = arith.constant 14 : i32
    %39 = arith.addi %0, %c14_i32_10 : i32
    %c7_i32_11 = arith.constant 7 : i32
    %40 = arith.addi %39, %c7_i32_11 : i32
    %c2_i32_12 = arith.constant 2 : i32
    %41 = arith.addi %40, %c2_i32_12 : i32
    %42 = arith.index_cast %41 : i32 to index
    %43 = memref.load %arg3[%42] : memref<84xi32, #tpu.memory_space<smem>>
    %44 = vector.broadcast %38 : i32 to vector<16x1xi32>
    %45 = arith.cmpi sge, %4, %44 : vector<16x1xi32>
    %46 = vector.broadcast %43 : i32 to vector<16x1xi32>
    %47 = arith.cmpi slt, %4, %46 : vector<16x1xi32>
    %48 = arith.andi %45, %47 : vector<16x1xi1>
    %49 = arith.cmpi sle, %43, %38 : i32
    %c14_i32_13 = arith.constant 14 : i32
    %50 = arith.addi %0, %c14_i32_13 : i32
    %c3_i32 = arith.constant 3 : i32
    %51 = arith.addi %50, %c3_i32 : i32
    %52 = arith.index_cast %51 : i32 to index
    %53 = memref.load %arg3[%52] : memref<84xi32, #tpu.memory_space<smem>>
    %c14_i32_14 = arith.constant 14 : i32
    %54 = arith.addi %0, %c14_i32_14 : i32
    %c7_i32_15 = arith.constant 7 : i32
    %55 = arith.addi %54, %c7_i32_15 : i32
    %c3_i32_16 = arith.constant 3 : i32
    %56 = arith.addi %55, %c3_i32_16 : i32
    %57 = arith.index_cast %56 : i32 to index
    %58 = memref.load %arg3[%57] : memref<84xi32, #tpu.memory_space<smem>>
    %59 = vector.broadcast %53 : i32 to vector<16x1xi32>
    %60 = arith.cmpi sge, %4, %59 : vector<16x1xi32>
    %61 = vector.broadcast %58 : i32 to vector<16x1xi32>
    %62 = arith.cmpi slt, %4, %61 : vector<16x1xi32>
    %63 = arith.andi %60, %62 : vector<16x1xi1>
    %64 = arith.cmpi sle, %58, %53 : i32
    %c14_i32_17 = arith.constant 14 : i32
    %65 = arith.addi %0, %c14_i32_17 : i32
    %c4_i32 = arith.constant 4 : i32
    %66 = arith.addi %65, %c4_i32 : i32
    %67 = arith.index_cast %66 : i32 to index
    %68 = memref.load %arg3[%67] : memref<84xi32, #tpu.memory_space<smem>>
    %c14_i32_18 = arith.constant 14 : i32
    %69 = arith.addi %0, %c14_i32_18 : i32
    %c7_i32_19 = arith.constant 7 : i32
    %70 = arith.addi %69, %c7_i32_19 : i32
    %c4_i32_20 = arith.constant 4 : i32
    %71 = arith.addi %70, %c4_i32_20 : i32
    %72 = arith.index_cast %71 : i32 to index
    %73 = memref.load %arg3[%72] : memref<84xi32, #tpu.memory_space<smem>>
    %74 = vector.broadcast %68 : i32 to vector<16x1xi32>
    %75 = arith.cmpi sge, %4, %74 : vector<16x1xi32>
    %76 = vector.broadcast %73 : i32 to vector<16x1xi32>
    %77 = arith.cmpi slt, %4, %76 : vector<16x1xi32>
    %78 = arith.andi %75, %77 : vector<16x1xi1>
    %79 = arith.cmpi sle, %73, %68 : i32
    %c14_i32_21 = arith.constant 14 : i32
    %80 = arith.addi %0, %c14_i32_21 : i32
    %c5_i32 = arith.constant 5 : i32
    %81 = arith.addi %80, %c5_i32 : i32
    %82 = arith.index_cast %81 : i32 to index
    %83 = memref.load %arg3[%82] : memref<84xi32, #tpu.memory_space<smem>>
    %c14_i32_22 = arith.constant 14 : i32
    %84 = arith.addi %0, %c14_i32_22 : i32
    %c7_i32_23 = arith.constant 7 : i32
    %85 = arith.addi %84, %c7_i32_23 : i32
    %c5_i32_24 = arith.constant 5 : i32
    %86 = arith.addi %85, %c5_i32_24 : i32
    %87 = arith.index_cast %86 : i32 to index
    %88 = memref.load %arg3[%87] : memref<84xi32, #tpu.memory_space<smem>>
    %89 = vector.broadcast %83 : i32 to vector<16x1xi32>
    %90 = arith.cmpi sge, %4, %89 : vector<16x1xi32>
    %91 = vector.broadcast %88 : i32 to vector<16x1xi32>
    %92 = arith.cmpi slt, %4, %91 : vector<16x1xi32>
    %93 = arith.andi %90, %92 : vector<16x1xi1>
    %94 = arith.cmpi sle, %88, %83 : i32
    %c14_i32_25 = arith.constant 14 : i32
    %95 = arith.addi %0, %c14_i32_25 : i32
    %c6_i32 = arith.constant 6 : i32
    %96 = arith.addi %95, %c6_i32 : i32
    %97 = arith.index_cast %96 : i32 to index
    %98 = memref.load %arg3[%97] : memref<84xi32, #tpu.memory_space<smem>>
    %c14_i32_26 = arith.constant 14 : i32
    %99 = arith.addi %0, %c14_i32_26 : i32
    %c7_i32_27 = arith.constant 7 : i32
    %100 = arith.addi %99, %c7_i32_27 : i32
    %c6_i32_28 = arith.constant 6 : i32
    %101 = arith.addi %100, %c6_i32_28 : i32
    %102 = arith.index_cast %101 : i32 to index
    %103 = memref.load %arg3[%102] : memref<84xi32, #tpu.memory_space<smem>>
    %104 = vector.broadcast %98 : i32 to vector<16x1xi32>
    %105 = arith.cmpi sge, %4, %104 : vector<16x1xi32>
    %106 = vector.broadcast %103 : i32 to vector<16x1xi32>
    %107 = arith.cmpi slt, %4, %106 : vector<16x1xi32>
    %108 = arith.andi %105, %107 : vector<16x1xi1>
    %109 = arith.cmpi sle, %103, %98 : i32
    %c0_i32_29 = arith.constant 0 : i32
    %110 = arith.addi %0, %c0_i32_29 : i32
    %111 = arith.index_cast %110 : i32 to index
    %112 = memref.load %arg3[%111] : memref<84xi32, #tpu.memory_space<smem>>
    %c7_i32_30 = arith.constant 7 : i32
    %113 = arith.addi %0, %c7_i32_30 : i32
    %c0_i32_31 = arith.constant 0 : i32
    %114 = arith.addi %113, %c0_i32_31 : i32
    %115 = arith.index_cast %114 : i32 to index
    %116 = memref.load %arg3[%115] : memref<84xi32, #tpu.memory_space<smem>>
    %117 = vector.broadcast %112 : i32 to vector<16x1x1xi32>
    %118 = arith.cmpi sge, %3, %117 : vector<16x1x1xi32>
    %119 = vector.broadcast %116 : i32 to vector<16x1x1xi32>
    %120 = arith.cmpi slt, %3, %119 : vector<16x1x1xi32>
    %121 = arith.andi %118, %120 : vector<16x1x1xi1>
    %cst = arith.constant 0xFF800000 : f32
    %122 = vector.shape_cast %121 : vector<16x1x1xi1> to vector<16x1x1xi1>
    %123 = vector.broadcast %122 : vector<16x1x1xi1> to vector<16x16x4xi1>
    %124 = vector.broadcast %cst : f32 to vector<16x16x4xf32>
    %125 = arith.select %123, %2, %124 : vector<16x16x4xi1>, vector<16x16x4xf32>
    %cst_32 = arith.constant dense<0xFF800000> : vector<16x4xf32>
    %126 = vector.multi_reduction <maximumf>, %125, %cst_32 [0] : vector<16x16x4xf32> to vector<16x4xf32>
    %127 = arith.cmpi sle, %116, %112 : i32
    %cst_33 = arith.constant 0xFF800000 : f32
    %128 = vector.shape_cast %18 : vector<16x1xi1> to vector<16x1xi1>
    %129 = vector.broadcast %128 : vector<16x1xi1> to vector<16x4xi1>
    %130 = vector.broadcast %cst_33 : f32 to vector<16x4xf32>
    %131 = arith.select %129, %126, %130 : vector<16x4xi1>, vector<16x4xf32>
    %cst_34 = arith.constant dense<0xFF800000> : vector<4xf32>
    %132 = vector.multi_reduction <maximumf>, %131, %cst_34 [0] : vector<16x4xf32> to vector<4xf32>
    %133 = vector.shape_cast %132 : vector<4xf32> to vector<1x4xf32>
    %134 = arith.ori %127, %19 : i1
    %cst_35 = arith.constant 0.000000e+00 : f32
    %135 = vector.broadcast %cst_35 : f32 to vector<1x4xf32>
    %136 = arith.select %134, %135, %133 : vector<1x4xf32>
    %cst_36 = arith.constant 0xFF800000 : f32
    %137 = vector.shape_cast %33 : vector<16x1xi1> to vector<16x1xi1>
    %138 = vector.broadcast %137 : vector<16x1xi1> to vector<16x4xi1>
    %139 = vector.broadcast %cst_36 : f32 to vector<16x4xf32>
    %140 = arith.select %138, %126, %139 : vector<16x4xi1>, vector<16x4xf32>
    %cst_37 = arith.constant dense<0xFF800000> : vector<4xf32>
    %141 = vector.multi_reduction <maximumf>, %140, %cst_37 [0] : vector<16x4xf32> to vector<4xf32>
    %142 = vector.shape_cast %141 : vector<4xf32> to vector<1x4xf32>
    %143 = arith.ori %127, %34 : i1
    %cst_38 = arith.constant 0.000000e+00 : f32
    %144 = vector.broadcast %cst_38 : f32 to vector<1x4xf32>
    %145 = arith.select %143, %144, %142 : vector<1x4xf32>
    %cst_39 = arith.constant 0xFF800000 : f32
    %146 = vector.shape_cast %48 : vector<16x1xi1> to vector<16x1xi1>
    %147 = vector.broadcast %146 : vector<16x1xi1> to vector<16x4xi1>
    %148 = vector.broadcast %cst_39 : f32 to vector<16x4xf32>
    %149 = arith.select %147, %126, %148 : vector<16x4xi1>, vector<16x4xf32>
    %cst_40 = arith.constant dense<0xFF800000> : vector<4xf32>
    %150 = vector.multi_reduction <maximumf>, %149, %cst_40 [0] : vector<16x4xf32> to vector<4xf32>
    %151 = vector.shape_cast %150 : vector<4xf32> to vector<1x4xf32>
    %152 = arith.ori %127, %49 : i1
    %cst_41 = arith.constant 0.000000e+00 : f32
    %153 = vector.broadcast %cst_41 : f32 to vector<1x4xf32>
    %154 = arith.select %152, %153, %151 : vector<1x4xf32>
    %cst_42 = arith.constant 0xFF800000 : f32
    %155 = vector.shape_cast %63 : vector<16x1xi1> to vector<16x1xi1>
    %156 = vector.broadcast %155 : vector<16x1xi1> to vector<16x4xi1>
    %157 = vector.broadcast %cst_42 : f32 to vector<16x4xf32>
    %158 = arith.select %156, %126, %157 : vector<16x4xi1>, vector<16x4xf32>
    %cst_43 = arith.constant dense<0xFF800000> : vector<4xf32>
    %159 = vector.multi_reduction <maximumf>, %158, %cst_43 [0] : vector<16x4xf32> to vector<4xf32>
    %160 = vector.shape_cast %159 : vector<4xf32> to vector<1x4xf32>
    %161 = arith.ori %127, %64 : i1
    %cst_44 = arith.constant 0.000000e+00 : f32
    %162 = vector.broadcast %cst_44 : f32 to vector<1x4xf32>
    %163 = arith.select %161, %162, %160 : vector<1x4xf32>
    %cst_45 = arith.constant 0xFF800000 : f32
    %164 = vector.shape_cast %78 : vector<16x1xi1> to vector<16x1xi1>
    %165 = vector.broadcast %164 : vector<16x1xi1> to vector<16x4xi1>
    %166 = vector.broadcast %cst_45 : f32 to vector<16x4xf32>
    %167 = arith.select %165, %126, %166 : vector<16x4xi1>, vector<16x4xf32>
    %cst_46 = arith.constant dense<0xFF800000> : vector<4xf32>
    %168 = vector.multi_reduction <maximumf>, %167, %cst_46 [0] : vector<16x4xf32> to vector<4xf32>
    %169 = vector.shape_cast %168 : vector<4xf32> to vector<1x4xf32>
    %170 = arith.ori %127, %79 : i1
    %cst_47 = arith.constant 0.000000e+00 : f32
    %171 = vector.broadcast %cst_47 : f32 to vector<1x4xf32>
    %172 = arith.select %170, %171, %169 : vector<1x4xf32>
    %cst_48 = arith.constant 0xFF800000 : f32
    %173 = vector.shape_cast %93 : vector<16x1xi1> to vector<16x1xi1>
    %174 = vector.broadcast %173 : vector<16x1xi1> to vector<16x4xi1>
    %175 = vector.broadcast %cst_48 : f32 to vector<16x4xf32>
    %176 = arith.select %174, %126, %175 : vector<16x4xi1>, vector<16x4xf32>
    %cst_49 = arith.constant dense<0xFF800000> : vector<4xf32>
    %177 = vector.multi_reduction <maximumf>, %176, %cst_49 [0] : vector<16x4xf32> to vector<4xf32>
    %178 = vector.shape_cast %177 : vector<4xf32> to vector<1x4xf32>
    %179 = arith.ori %127, %94 : i1
    %cst_50 = arith.constant 0.000000e+00 : f32
    %180 = vector.broadcast %cst_50 : f32 to vector<1x4xf32>
    %181 = arith.select %179, %180, %178 : vector<1x4xf32>
    %cst_51 = arith.constant 0xFF800000 : f32
    %182 = vector.shape_cast %108 : vector<16x1xi1> to vector<16x1xi1>
    %183 = vector.broadcast %182 : vector<16x1xi1> to vector<16x4xi1>
    %184 = vector.broadcast %cst_51 : f32 to vector<16x4xf32>
    %185 = arith.select %183, %126, %184 : vector<16x4xi1>, vector<16x4xf32>
    %cst_52 = arith.constant dense<0xFF800000> : vector<4xf32>
    %186 = vector.multi_reduction <maximumf>, %185, %cst_52 [0] : vector<16x4xf32> to vector<4xf32>
    %187 = vector.shape_cast %186 : vector<4xf32> to vector<1x4xf32>
    %188 = arith.ori %127, %109 : i1
    %cst_53 = arith.constant 0.000000e+00 : f32
    %189 = vector.broadcast %cst_53 : f32 to vector<1x4xf32>
    %190 = arith.select %188, %189, %187 : vector<1x4xf32>
    %191 = tpu.concatenate %136, %145, %154, %163, %172, %181, %190 in 0 : vector<1x4xf32>, vector<1x4xf32>, vector<1x4xf32>, vector<1x4xf32>, vector<1x4xf32>, vector<1x4xf32>, vector<1x4xf32> -> vector<7x4xf32>
    %c0_54 = arith.constant 0 : index
    %c0_55 = arith.constant 0 : index
    %c0_56 = arith.constant 0 : index
    %c0_57 = arith.constant 0 : index
    %192 = vector.load %arg5[%c0_54, %c0_55, %c0_56, %c0_57] : memref<1x7x7x4xf32, #tpu.memory_space<vmem>>, vector<1x1x7x4xf32>
    %193 = vector.shape_cast %192 : vector<1x1x7x4xf32> to vector<7x4xf32>
    %194 = vector.shape_cast %191 : vector<7x4xf32> to vector<1x1x7x4xf32>
    tpu.vector_store %arg5[%c0_54, %c0_55, %c0_56, %c0_57], %194 {strides = array<i32>} : memref<1x7x7x4xf32, #tpu.memory_space<vmem>>, vector<1x1x7x4xf32>,
    %c1_i32_58 = arith.constant 1 : i32
    %195 = arith.addi %0, %c1_i32_58 : i32
    %196 = arith.index_cast %195 : i32 to index
    %197 = memref.load %arg3[%196] : memref<84xi32, #tpu.memory_space<smem>>
    %c7_i32_59 = arith.constant 7 : i32
    %198 = arith.addi %0, %c7_i32_59 : i32
    %c1_i32_60 = arith.constant 1 : i32
    %199 = arith.addi %198, %c1_i32_60 : i32
    %200 = arith.index_cast %199 : i32 to index
    %201 = memref.load %arg3[%200] : memref<84xi32, #tpu.memory_space<smem>>
    %202 = vector.broadcast %197 : i32 to vector<16x1x1xi32>
    %203 = arith.cmpi sge, %3, %202 : vector<16x1x1xi32>
    %204 = vector.broadcast %201 : i32 to vector<16x1x1xi32>
    %205 = arith.cmpi slt, %3, %204 : vector<16x1x1xi32>
    %206 = arith.andi %203, %205 : vector<16x1x1xi1>
    %cst_61 = arith.constant 0xFF800000 : f32
    %207 = vector.shape_cast %206 : vector<16x1x1xi1> to vector<16x1x1xi1>
    %208 = vector.broadcast %207 : vector<16x1x1xi1> to vector<16x16x4xi1>
    %209 = vector.broadcast %cst_61 : f32 to vector<16x16x4xf32>
    %210 = arith.select %208, %2, %209 : vector<16x16x4xi1>, vector<16x16x4xf32>
    %cst_62 = arith.constant dense<0xFF800000> : vector<16x4xf32>
    %211 = vector.multi_reduction <maximumf>, %210, %cst_62 [0] : vector<16x16x4xf32> to vector<16x4xf32>
    %212 = arith.cmpi sle, %201, %197 : i32
    %cst_63 = arith.constant 0xFF800000 : f32
    %213 = vector.shape_cast %18 : vector<16x1xi1> to vector<16x1xi1>
    %214 = vector.broadcast %213 : vector<16x1xi1> to vector<16x4xi1>
    %215 = vector.broadcast %cst_63 : f32 to vector<16x4xf32>
    %216 = arith.select %214, %211, %215 : vector<16x4xi1>, vector<16x4xf32>
    %cst_64 = arith.constant dense<0xFF800000> : vector<4xf32>
    %217 = vector.multi_reduction <maximumf>, %216, %cst_64 [0] : vector<16x4xf32> to vector<4xf32>
    %218 = vector.shape_cast %217 : vector<4xf32> to vector<1x4xf32>
    %219 = arith.ori %212, %19 : i1
    %cst_65 = arith.constant 0.000000e+00 : f32
    %220 = vector.broadcast %cst_65 : f32 to vector<1x4xf32>
    %221 = arith.select %219, %220, %218 : vector<1x4xf32>
    %cst_66 = arith.constant 0xFF800000 : f32
    %222 = vector.shape_cast %33 : vector<16x1xi1> to vector<16x1xi1>
    %223 = vector.broadcast %222 : vector<16x1xi1> to vector<16x4xi1>
    %224 = vector.broadcast %cst_66 : f32 to vector<16x4xf32>
    %225 = arith.select %223, %211, %224 : vector<16x4xi1>, vector<16x4xf32>
    %cst_67 = arith.constant dense<0xFF800000> : vector<4xf32>
    %226 = vector.multi_reduction <maximumf>, %225, %cst_67 [0] : vector<16x4xf32> to vector<4xf32>
    %227 = vector.shape_cast %226 : vector<4xf32> to vector<1x4xf32>
    %228 = arith.ori %212, %34 : i1
    %cst_68 = arith.constant 0.000000e+00 : f32
    %229 = vector.broadcast %cst_68 : f32 to vector<1x4xf32>
    %230 = arith.select %228, %229, %227 : vector<1x4xf32>
    %cst_69 = arith.constant 0xFF800000 : f32
    %231 = vector.shape_cast %48 : vector<16x1xi1> to vector<16x1xi1>
    %232 = vector.broadcast %231 : vector<16x1xi1> to vector<16x4xi1>
    %233 = vector.broadcast %cst_69 : f32 to vector<16x4xf32>
    %234 = arith.select %232, %211, %233 : vector<16x4xi1>, vector<16x4xf32>
    %cst_70 = arith.constant dense<0xFF800000> : vector<4xf32>
    %235 = vector.multi_reduction <maximumf>, %234, %cst_70 [0] : vector<16x4xf32> to vector<4xf32>
    %236 = vector.shape_cast %235 : vector<4xf32> to vector<1x4xf32>
    %237 = arith.ori %212, %49 : i1
    %cst_71 = arith.constant 0.000000e+00 : f32
    %238 = vector.broadcast %cst_71 : f32 to vector<1x4xf32>
    %239 = arith.select %237, %238, %236 : vector<1x4xf32>
    %cst_72 = arith.constant 0xFF800000 : f32
    %240 = vector.shape_cast %63 : vector<16x1xi1> to vector<16x1xi1>
    %241 = vector.broadcast %240 : vector<16x1xi1> to vector<16x4xi1>
    %242 = vector.broadcast %cst_72 : f32 to vector<16x4xf32>
    %243 = arith.select %241, %211, %242 : vector<16x4xi1>, vector<16x4xf32>
    %cst_73 = arith.constant dense<0xFF800000> : vector<4xf32>
    %244 = vector.multi_reduction <maximumf>, %243, %cst_73 [0] : vector<16x4xf32> to vector<4xf32>
    %245 = vector.shape_cast %244 : vector<4xf32> to vector<1x4xf32>
    %246 = arith.ori %212, %64 : i1
    %cst_74 = arith.constant 0.000000e+00 : f32
    %247 = vector.broadcast %cst_74 : f32 to vector<1x4xf32>
    %248 = arith.select %246, %247, %245 : vector<1x4xf32>
    %cst_75 = arith.constant 0xFF800000 : f32
    %249 = vector.shape_cast %78 : vector<16x1xi1> to vector<16x1xi1>
    %250 = vector.broadcast %249 : vector<16x1xi1> to vector<16x4xi1>
    %251 = vector.broadcast %cst_75 : f32 to vector<16x4xf32>
    %252 = arith.select %250, %211, %251 : vector<16x4xi1>, vector<16x4xf32>
    %cst_76 = arith.constant dense<0xFF800000> : vector<4xf32>
    %253 = vector.multi_reduction <maximumf>, %252, %cst_76 [0] : vector<16x4xf32> to vector<4xf32>
    %254 = vector.shape_cast %253 : vector<4xf32> to vector<1x4xf32>
    %255 = arith.ori %212, %79 : i1
    %cst_77 = arith.constant 0.000000e+00 : f32
    %256 = vector.broadcast %cst_77 : f32 to vector<1x4xf32>
    %257 = arith.select %255, %256, %254 : vector<1x4xf32>
    %cst_78 = arith.constant 0xFF800000 : f32
    %258 = vector.shape_cast %93 : vector<16x1xi1> to vector<16x1xi1>
    %259 = vector.broadcast %258 : vector<16x1xi1> to vector<16x4xi1>
    %260 = vector.broadcast %cst_78 : f32 to vector<16x4xf32>
    %261 = arith.select %259, %211, %260 : vector<16x4xi1>, vector<16x4xf32>
    %cst_79 = arith.constant dense<0xFF800000> : vector<4xf32>
    %262 = vector.multi_reduction <maximumf>, %261, %cst_79 [0] : vector<16x4xf32> to vector<4xf32>
    %263 = vector.shape_cast %262 : vector<4xf32> to vector<1x4xf32>
    %264 = arith.ori %212, %94 : i1
    %cst_80 = arith.constant 0.000000e+00 : f32
    %265 = vector.broadcast %cst_80 : f32 to vector<1x4xf32>
    %266 = arith.select %264, %265, %263 : vector<1x4xf32>
    %cst_81 = arith.constant 0xFF800000 : f32
    %267 = vector.shape_cast %108 : vector<16x1xi1> to vector<16x1xi1>
    %268 = vector.broadcast %267 : vector<16x1xi1> to vector<16x4xi1>
    %269 = vector.broadcast %cst_81 : f32 to vector<16x4xf32>
    %270 = arith.select %268, %211, %269 : vector<16x4xi1>, vector<16x4xf32>
    %cst_82 = arith.constant dense<0xFF800000> : vector<4xf32>
    %271 = vector.multi_reduction <maximumf>, %270, %cst_82 [0] : vector<16x4xf32> to vector<4xf32>
    %272 = vector.shape_cast %271 : vector<4xf32> to vector<1x4xf32>
    %273 = arith.ori %212, %109 : i1
    %cst_83 = arith.constant 0.000000e+00 : f32
    %274 = vector.broadcast %cst_83 : f32 to vector<1x4xf32>
    %275 = arith.select %273, %274, %272 : vector<1x4xf32>
    %276 = tpu.concatenate %221, %230, %239, %248, %257, %266, %275 in 0 : vector<1x4xf32>, vector<1x4xf32>, vector<1x4xf32>, vector<1x4xf32>, vector<1x4xf32>, vector<1x4xf32>, vector<1x4xf32> -> vector<7x4xf32>
    %c0_84 = arith.constant 0 : index
    %c1 = arith.constant 1 : index
    %c0_85 = arith.constant 0 : index
    %c0_86 = arith.constant 0 : index
    %277 = vector.load %arg5[%c0_84, %c1, %c0_85, %c0_86] : memref<1x7x7x4xf32, #tpu.memory_space<vmem>>, vector<1x1x7x4xf32>
    %278 = vector.shape_cast %277 : vector<1x1x7x4xf32> to vector<7x4xf32>
    %279 = vector.shape_cast %276 : vector<7x4xf32> to vector<1x1x7x4xf32>
    tpu.vector_store %arg5[%c0_84, %c1, %c0_85, %c0_86], %279 {strides = array<i32>} : memref<1x7x7x4xf32, #tpu.memory_space<vmem>>, vector<1x1x7x4xf32>,
    %c2_i32_87 = arith.constant 2 : i32
    %280 = arith.addi %0, %c2_i32_87 : i32
    %281 = arith.index_cast %280 : i32 to index
    %282 = memref.load %arg3[%281] : memref<84xi32, #tpu.memory_space<smem>>
    %c7_i32_88 = arith.constant 7 : i32
    %283 = arith.addi %0, %c7_i32_88 : i32
    %c2_i32_89 = arith.constant 2 : i32
    %284 = arith.addi %283, %c2_i32_89 : i32
    %285 = arith.index_cast %284 : i32 to index
    %286 = memref.load %arg3[%285] : memref<84xi32, #tpu.memory_space<smem>>
    %287 = vector.broadcast %282 : i32 to vector<16x1x1xi32>
    %288 = arith.cmpi sge, %3, %287 : vector<16x1x1xi32>
    %289 = vector.broadcast %286 : i32 to vector<16x1x1xi32>
    %290 = arith.cmpi slt, %3, %289 : vector<16x1x1xi32>
    %291 = arith.andi %288, %290 : vector<16x1x1xi1>
    %cst_90 = arith.constant 0xFF800000 : f32
    %292 = vector.shape_cast %291 : vector<16x1x1xi1> to vector<16x1x1xi1>
    %293 = vector.broadcast %292 : vector<16x1x1xi1> to vector<16x16x4xi1>
    %294 = vector.broadcast %cst_90 : f32 to vector<16x16x4xf32>
    %295 = arith.select %293, %2, %294 : vector<16x16x4xi1>, vector<16x16x4xf32>
    %cst_91 = arith.constant dense<0xFF800000> : vector<16x4xf32>
    %296 = vector.multi_reduction <maximumf>, %295, %cst_91 [0] : vector<16x16x4xf32> to vector<16x4xf32>
    %297 = arith.cmpi sle, %286, %282 : i32
    %cst_92 = arith.constant 0xFF800000 : f32
    %298 = vector.shape_cast %18 : vector<16x1xi1> to vector<16x1xi1>
    %299 = vector.broadcast %298 : vector<16x1xi1> to vector<16x4xi1>
    %300 = vector.broadcast %cst_92 : f32 to vector<16x4xf32>
    %301 = arith.select %299, %296, %300 : vector<16x4xi1>, vector<16x4xf32>
    %cst_93 = arith.constant dense<0xFF800000> : vector<4xf32>
    %302 = vector.multi_reduction <maximumf>, %301, %cst_93 [0] : vector<16x4xf32> to vector<4xf32>
    %303 = vector.shape_cast %302 : vector<4xf32> to vector<1x4xf32>
    %304 = arith.ori %297, %19 : i1
    %cst_94 = arith.constant 0.000000e+00 : f32
    %305 = vector.broadcast %cst_94 : f32 to vector<1x4xf32>
    %306 = arith.select %304, %305, %303 : vector<1x4xf32>
    %cst_95 = arith.constant 0xFF800000 : f32
    %307 = vector.shape_cast %33 : vector<16x1xi1> to vector<16x1xi1>
    %308 = vector.broadcast %307 : vector<16x1xi1> to vector<16x4xi1>
    %309 = vector.broadcast %cst_95 : f32 to vector<16x4xf32>
    %310 = arith.select %308, %296, %309 : vector<16x4xi1>, vector<16x4xf32>
    %cst_96 = arith.constant dense<0xFF800000> : vector<4xf32>
    %311 = vector.multi_reduction <maximumf>, %310, %cst_96 [0] : vector<16x4xf32> to vector<4xf32>
    %312 = vector.shape_cast %311 : vector<4xf32> to vector<1x4xf32>
    %313 = arith.ori %297, %34 : i1
    %cst_97 = arith.constant 0.000000e+00 : f32
    %314 = vector.broadcast %cst_97 : f32 to vector<1x4xf32>
    %315 = arith.select %313, %314, %312 : vector<1x4xf32>
    %cst_98 = arith.constant 0xFF800000 : f32
    %316 = vector.shape_cast %48 : vector<16x1xi1> to vector<16x1xi1>
    %317 = vector.broadcast %316 : vector<16x1xi1> to vector<16x4xi1>
    %318 = vector.broadcast %cst_98 : f32 to vector<16x4xf32>
    %319 = arith.select %317, %296, %318 : vector<16x4xi1>, vector<16x4xf32>
    %cst_99 = arith.constant dense<0xFF800000> : vector<4xf32>
    %320 = vector.multi_reduction <maximumf>, %319, %cst_99 [0] : vector<16x4xf32> to vector<4xf32>
    %321 = vector.shape_cast %320 : vector<4xf32> to vector<1x4xf32>
    %322 = arith.ori %297, %49 : i1
    %cst_100 = arith.constant 0.000000e+00 : f32
    %323 = vector.broadcast %cst_100 : f32 to vector<1x4xf32>
    %324 = arith.select %322, %323, %321 : vector<1x4xf32>
    %cst_101 = arith.constant 0xFF800000 : f32
    %325 = vector.shape_cast %63 : vector<16x1xi1> to vector<16x1xi1>
    %326 = vector.broadcast %325 : vector<16x1xi1> to vector<16x4xi1>
    %327 = vector.broadcast %cst_101 : f32 to vector<16x4xf32>
    %328 = arith.select %326, %296, %327 : vector<16x4xi1>, vector<16x4xf32>
    %cst_102 = arith.constant dense<0xFF800000> : vector<4xf32>
    %329 = vector.multi_reduction <maximumf>, %328, %cst_102 [0] : vector<16x4xf32> to vector<4xf32>
    %330 = vector.shape_cast %329 : vector<4xf32> to vector<1x4xf32>
    %331 = arith.ori %297, %64 : i1
    %cst_103 = arith.constant 0.000000e+00 : f32
    %332 = vector.broadcast %cst_103 : f32 to vector<1x4xf32>
    %333 = arith.select %331, %332, %330 : vector<1x4xf32>
    %cst_104 = arith.constant 0xFF800000 : f32
    %334 = vector.shape_cast %78 : vector<16x1xi1> to vector<16x1xi1>
    %335 = vector.broadcast %334 : vector<16x1xi1> to vector<16x4xi1>
    %336 = vector.broadcast %cst_104 : f32 to vector<16x4xf32>
    %337 = arith.select %335, %296, %336 : vector<16x4xi1>, vector<16x4xf32>
    %cst_105 = arith.constant dense<0xFF800000> : vector<4xf32>
    %338 = vector.multi_reduction <maximumf>, %337, %cst_105 [0] : vector<16x4xf32> to vector<4xf32>
    %339 = vector.shape_cast %338 : vector<4xf32> to vector<1x4xf32>
    %340 = arith.ori %297, %79 : i1
    %cst_106 = arith.constant 0.000000e+00 : f32
    %341 = vector.broadcast %cst_106 : f32 to vector<1x4xf32>
    %342 = arith.select %340, %341, %339 : vector<1x4xf32>
    %cst_107 = arith.constant 0xFF800000 : f32
    %343 = vector.shape_cast %93 : vector<16x1xi1> to vector<16x1xi1>
    %344 = vector.broadcast %343 : vector<16x1xi1> to vector<16x4xi1>
    %345 = vector.broadcast %cst_107 : f32 to vector<16x4xf32>
    %346 = arith.select %344, %296, %345 : vector<16x4xi1>, vector<16x4xf32>
    %cst_108 = arith.constant dense<0xFF800000> : vector<4xf32>
    %347 = vector.multi_reduction <maximumf>, %346, %cst_108 [0] : vector<16x4xf32> to vector<4xf32>
    %348 = vector.shape_cast %347 : vector<4xf32> to vector<1x4xf32>
    %349 = arith.ori %297, %94 : i1
    %cst_109 = arith.constant 0.000000e+00 : f32
    %350 = vector.broadcast %cst_109 : f32 to vector<1x4xf32>
    %351 = arith.select %349, %350, %348 : vector<1x4xf32>
    %cst_110 = arith.constant 0xFF800000 : f32
    %352 = vector.shape_cast %108 : vector<16x1xi1> to vector<16x1xi1>
    %353 = vector.broadcast %352 : vector<16x1xi1> to vector<16x4xi1>
    %354 = vector.broadcast %cst_110 : f32 to vector<16x4xf32>
    %355 = arith.select %353, %296, %354 : vector<16x4xi1>, vector<16x4xf32>
    %cst_111 = arith.constant dense<0xFF800000> : vector<4xf32>
    %356 = vector.multi_reduction <maximumf>, %355, %cst_111 [0] : vector<16x4xf32> to vector<4xf32>
    %357 = vector.shape_cast %356 : vector<4xf32> to vector<1x4xf32>
    %358 = arith.ori %297, %109 : i1
    %cst_112 = arith.constant 0.000000e+00 : f32
    %359 = vector.broadcast %cst_112 : f32 to vector<1x4xf32>
    %360 = arith.select %358, %359, %357 : vector<1x4xf32>
    %361 = tpu.concatenate %306, %315, %324, %333, %342, %351, %360 in 0 : vector<1x4xf32>, vector<1x4xf32>, vector<1x4xf32>, vector<1x4xf32>, vector<1x4xf32>, vector<1x4xf32>, vector<1x4xf32> -> vector<7x4xf32>
    %c0_113 = arith.constant 0 : index
    %c2 = arith.constant 2 : index
    %c0_114 = arith.constant 0 : index
    %c0_115 = arith.constant 0 : index
    %362 = vector.load %arg5[%c0_113, %c2, %c0_114, %c0_115] : memref<1x7x7x4xf32, #tpu.memory_space<vmem>>, vector<1x1x7x4xf32>
    %363 = vector.shape_cast %362 : vector<1x1x7x4xf32> to vector<7x4xf32>
    %364 = vector.shape_cast %361 : vector<7x4xf32> to vector<1x1x7x4xf32>
    tpu.vector_store %arg5[%c0_113, %c2, %c0_114, %c0_115], %364 {strides = array<i32>} : memref<1x7x7x4xf32, #tpu.memory_space<vmem>>, vector<1x1x7x4xf32>,
    %c3_i32_116 = arith.constant 3 : i32
    %365 = arith.addi %0, %c3_i32_116 : i32
    %366 = arith.index_cast %365 : i32 to index
    %367 = memref.load %arg3[%366] : memref<84xi32, #tpu.memory_space<smem>>
    %c7_i32_117 = arith.constant 7 : i32
    %368 = arith.addi %0, %c7_i32_117 : i32
    %c3_i32_118 = arith.constant 3 : i32
    %369 = arith.addi %368, %c3_i32_118 : i32
    %370 = arith.index_cast %369 : i32 to index
    %371 = memref.load %arg3[%370] : memref<84xi32, #tpu.memory_space<smem>>
    %372 = vector.broadcast %367 : i32 to vector<16x1x1xi32>
    %373 = arith.cmpi sge, %3, %372 : vector<16x1x1xi32>
    %374 = vector.broadcast %371 : i32 to vector<16x1x1xi32>
    %375 = arith.cmpi slt, %3, %374 : vector<16x1x1xi32>
    %376 = arith.andi %373, %375 : vector<16x1x1xi1>
    %cst_119 = arith.constant 0xFF800000 : f32
    %377 = vector.shape_cast %376 : vector<16x1x1xi1> to vector<16x1x1xi1>
    %378 = vector.broadcast %377 : vector<16x1x1xi1> to vector<16x16x4xi1>
    %379 = vector.broadcast %cst_119 : f32 to vector<16x16x4xf32>
    %380 = arith.select %378, %2, %379 : vector<16x16x4xi1>, vector<16x16x4xf32>
    %cst_120 = arith.constant dense<0xFF800000> : vector<16x4xf32>
    %381 = vector.multi_reduction <maximumf>, %380, %cst_120 [0] : vector<16x16x4xf32> to vector<16x4xf32>
    %382 = arith.cmpi sle, %371, %367 : i32
    %cst_121 = arith.constant 0xFF800000 : f32
    %383 = vector.shape_cast %18 : vector<16x1xi1> to vector<16x1xi1>
    %384 = vector.broadcast %383 : vector<16x1xi1> to vector<16x4xi1>
    %385 = vector.broadcast %cst_121 : f32 to vector<16x4xf32>
    %386 = arith.select %384, %381, %385 : vector<16x4xi1>, vector<16x4xf32>
    %cst_122 = arith.constant dense<0xFF800000> : vector<4xf32>
    %387 = vector.multi_reduction <maximumf>, %386, %cst_122 [0] : vector<16x4xf32> to vector<4xf32>
    %388 = vector.shape_cast %387 : vector<4xf32> to vector<1x4xf32>
    %389 = arith.ori %382, %19 : i1
    %cst_123 = arith.constant 0.000000e+00 : f32
    %390 = vector.broadcast %cst_123 : f32 to vector<1x4xf32>
    %391 = arith.select %389, %390, %388 : vector<1x4xf32>
    %cst_124 = arith.constant 0xFF800000 : f32
    %392 = vector.shape_cast %33 : vector<16x1xi1> to vector<16x1xi1>
    %393 = vector.broadcast %392 : vector<16x1xi1> to vector<16x4xi1>
    %394 = vector.broadcast %cst_124 : f32 to vector<16x4xf32>
    %395 = arith.select %393, %381, %394 : vector<16x4xi1>, vector<16x4xf32>
    %cst_125 = arith.constant dense<0xFF800000> : vector<4xf32>
    %396 = vector.multi_reduction <maximumf>, %395, %cst_125 [0] : vector<16x4xf32> to vector<4xf32>
    %397 = vector.shape_cast %396 : vector<4xf32> to vector<1x4xf32>
    %398 = arith.ori %382, %34 : i1
    %cst_126 = arith.constant 0.000000e+00 : f32
    %399 = vector.broadcast %cst_126 : f32 to vector<1x4xf32>
    %400 = arith.select %398, %399, %397 : vector<1x4xf32>
    %cst_127 = arith.constant 0xFF800000 : f32
    %401 = vector.shape_cast %48 : vector<16x1xi1> to vector<16x1xi1>
    %402 = vector.broadcast %401 : vector<16x1xi1> to vector<16x4xi1>
    %403 = vector.broadcast %cst_127 : f32 to vector<16x4xf32>
    %404 = arith.select %402, %381, %403 : vector<16x4xi1>, vector<16x4xf32>
    %cst_128 = arith.constant dense<0xFF800000> : vector<4xf32>
    %405 = vector.multi_reduction <maximumf>, %404, %cst_128 [0] : vector<16x4xf32> to vector<4xf32>
    %406 = vector.shape_cast %405 : vector<4xf32> to vector<1x4xf32>
    %407 = arith.ori %382, %49 : i1
    %cst_129 = arith.constant 0.000000e+00 : f32
    %408 = vector.broadcast %cst_129 : f32 to vector<1x4xf32>
    %409 = arith.select %407, %408, %406 : vector<1x4xf32>
    %cst_130 = arith.constant 0xFF800000 : f32
    %410 = vector.shape_cast %63 : vector<16x1xi1> to vector<16x1xi1>
    %411 = vector.broadcast %410 : vector<16x1xi1> to vector<16x4xi1>
    %412 = vector.broadcast %cst_130 : f32 to vector<16x4xf32>
    %413 = arith.select %411, %381, %412 : vector<16x4xi1>, vector<16x4xf32>
    %cst_131 = arith.constant dense<0xFF800000> : vector<4xf32>
    %414 = vector.multi_reduction <maximumf>, %413, %cst_131 [0] : vector<16x4xf32> to vector<4xf32>
    %415 = vector.shape_cast %414 : vector<4xf32> to vector<1x4xf32>
    %416 = arith.ori %382, %64 : i1
    %cst_132 = arith.constant 0.000000e+00 : f32
    %417 = vector.broadcast %cst_132 : f32 to vector<1x4xf32>
    %418 = arith.select %416, %417, %415 : vector<1x4xf32>
    %cst_133 = arith.constant 0xFF800000 : f32
    %419 = vector.shape_cast %78 : vector<16x1xi1> to vector<16x1xi1>
    %420 = vector.broadcast %419 : vector<16x1xi1> to vector<16x4xi1>
    %421 = vector.broadcast %cst_133 : f32 to vector<16x4xf32>
    %422 = arith.select %420, %381, %421 : vector<16x4xi1>, vector<16x4xf32>
    %cst_134 = arith.constant dense<0xFF800000> : vector<4xf32>
    %423 = vector.multi_reduction <maximumf>, %422, %cst_134 [0] : vector<16x4xf32> to vector<4xf32>
    %424 = vector.shape_cast %423 : vector<4xf32> to vector<1x4xf32>
    %425 = arith.ori %382, %79 : i1
    %cst_135 = arith.constant 0.000000e+00 : f32
    %426 = vector.broadcast %cst_135 : f32 to vector<1x4xf32>
    %427 = arith.select %425, %426, %424 : vector<1x4xf32>
    %cst_136 = arith.constant 0xFF800000 : f32
    %428 = vector.shape_cast %93 : vector<16x1xi1> to vector<16x1xi1>
    %429 = vector.broadcast %428 : vector<16x1xi1> to vector<16x4xi1>
    %430 = vector.broadcast %cst_136 : f32 to vector<16x4xf32>
    %431 = arith.select %429, %381, %430 : vector<16x4xi1>, vector<16x4xf32>
    %cst_137 = arith.constant dense<0xFF800000> : vector<4xf32>
    %432 = vector.multi_reduction <maximumf>, %431, %cst_137 [0] : vector<16x4xf32> to vector<4xf32>
    %433 = vector.shape_cast %432 : vector<4xf32> to vector<1x4xf32>
    %434 = arith.ori %382, %94 : i1
    %cst_138 = arith.constant 0.000000e+00 : f32
    %435 = vector.broadcast %cst_138 : f32 to vector<1x4xf32>
    %436 = arith.select %434, %435, %433 : vector<1x4xf32>
    %cst_139 = arith.constant 0xFF800000 : f32
    %437 = vector.shape_cast %108 : vector<16x1xi1> to vector<16x1xi1>
    %438 = vector.broadcast %437 : vector<16x1xi1> to vector<16x4xi1>
    %439 = vector.broadcast %cst_139 : f32 to vector<16x4xf32>
    %440 = arith.select %438, %381, %439 : vector<16x4xi1>, vector<16x4xf32>
    %cst_140 = arith.constant dense<0xFF800000> : vector<4xf32>
    %441 = vector.multi_reduction <maximumf>, %440, %cst_140 [0] : vector<16x4xf32> to vector<4xf32>
    %442 = vector.shape_cast %441 : vector<4xf32> to vector<1x4xf32>
    %443 = arith.ori %382, %109 : i1
    %cst_141 = arith.constant 0.000000e+00 : f32
    %444 = vector.broadcast %cst_141 : f32 to vector<1x4xf32>
    %445 = arith.select %443, %444, %442 : vector<1x4xf32>
    %446 = tpu.concatenate %391, %400, %409, %418, %427, %436, %445 in 0 : vector<1x4xf32>, vector<1x4xf32>, vector<1x4xf32>, vector<1x4xf32>, vector<1x4xf32>, vector<1x4xf32>, vector<1x4xf32> -> vector<7x4xf32>
    %c0_142 = arith.constant 0 : index
    %c3 = arith.constant 3 : index
    %c0_143 = arith.constant 0 : index
    %c0_144 = arith.constant 0 : index
    %447 = vector.load %arg5[%c0_142, %c3, %c0_143, %c0_144] : memref<1x7x7x4xf32, #tpu.memory_space<vmem>>, vector<1x1x7x4xf32>
    %448 = vector.shape_cast %447 : vector<1x1x7x4xf32> to vector<7x4xf32>
    %449 = vector.shape_cast %446 : vector<7x4xf32> to vector<1x1x7x4xf32>
    tpu.vector_store %arg5[%c0_142, %c3, %c0_143, %c0_144], %449 {strides = array<i32>} : memref<1x7x7x4xf32, #tpu.memory_space<vmem>>, vector<1x1x7x4xf32>,
    %c4_i32_145 = arith.constant 4 : i32
    %450 = arith.addi %0, %c4_i32_145 : i32
    %451 = arith.index_cast %450 : i32 to index
    %452 = memref.load %arg3[%451] : memref<84xi32, #tpu.memory_space<smem>>
    %c7_i32_146 = arith.constant 7 : i32
    %453 = arith.addi %0, %c7_i32_146 : i32
    %c4_i32_147 = arith.constant 4 : i32
    %454 = arith.addi %453, %c4_i32_147 : i32
    %455 = arith.index_cast %454 : i32 to index
    %456 = memref.load %arg3[%455] : memref<84xi32, #tpu.memory_space<smem>>
    %457 = vector.broadcast %452 : i32 to vector<16x1x1xi32>
    %458 = arith.cmpi sge, %3, %457 : vector<16x1x1xi32>
    %459 = vector.broadcast %456 : i32 to vector<16x1x1xi32>
    %460 = arith.cmpi slt, %3, %459 : vector<16x1x1xi32>
    %461 = arith.andi %458, %460 : vector<16x1x1xi1>
    %cst_148 = arith.constant 0xFF800000 : f32
    %462 = vector.shape_cast %461 : vector<16x1x1xi1> to vector<16x1x1xi1>
    %463 = vector.broadcast %462 : vector<16x1x1xi1> to vector<16x16x4xi1>
    %464 = vector.broadcast %cst_148 : f32 to vector<16x16x4xf32>
    %465 = arith.select %463, %2, %464 : vector<16x16x4xi1>, vector<16x16x4xf32>
    %cst_149 = arith.constant dense<0xFF800000> : vector<16x4xf32>
    %466 = vector.multi_reduction <maximumf>, %465, %cst_149 [0] : vector<16x16x4xf32> to vector<16x4xf32>
    %467 = arith.cmpi sle, %456, %452 : i32
    %cst_150 = arith.constant 0xFF800000 : f32
    %468 = vector.shape_cast %18 : vector<16x1xi1> to vector<16x1xi1>
    %469 = vector.broadcast %468 : vector<16x1xi1> to vector<16x4xi1>
    %470 = vector.broadcast %cst_150 : f32 to vector<16x4xf32>
    %471 = arith.select %469, %466, %470 : vector<16x4xi1>, vector<16x4xf32>
    %cst_151 = arith.constant dense<0xFF800000> : vector<4xf32>
    %472 = vector.multi_reduction <maximumf>, %471, %cst_151 [0] : vector<16x4xf32> to vector<4xf32>
    %473 = vector.shape_cast %472 : vector<4xf32> to vector<1x4xf32>
    %474 = arith.ori %467, %19 : i1
    %cst_152 = arith.constant 0.000000e+00 : f32
    %475 = vector.broadcast %cst_152 : f32 to vector<1x4xf32>
    %476 = arith.select %474, %475, %473 : vector<1x4xf32>
    %cst_153 = arith.constant 0xFF800000 : f32
    %477 = vector.shape_cast %33 : vector<16x1xi1> to vector<16x1xi1>
    %478 = vector.broadcast %477 : vector<16x1xi1> to vector<16x4xi1>
    %479 = vector.broadcast %cst_153 : f32 to vector<16x4xf32>
    %480 = arith.select %478, %466, %479 : vector<16x4xi1>, vector<16x4xf32>
    %cst_154 = arith.constant dense<0xFF800000> : vector<4xf32>
    %481 = vector.multi_reduction <maximumf>, %480, %cst_154 [0] : vector<16x4xf32> to vector<4xf32>
    %482 = vector.shape_cast %481 : vector<4xf32> to vector<1x4xf32>
    %483 = arith.ori %467, %34 : i1
    %cst_155 = arith.constant 0.000000e+00 : f32
    %484 = vector.broadcast %cst_155 : f32 to vector<1x4xf32>
    %485 = arith.select %483, %484, %482 : vector<1x4xf32>
    %cst_156 = arith.constant 0xFF800000 : f32
    %486 = vector.shape_cast %48 : vector<16x1xi1> to vector<16x1xi1>
    %487 = vector.broadcast %486 : vector<16x1xi1> to vector<16x4xi1>
    %488 = vector.broadcast %cst_156 : f32 to vector<16x4xf32>
    %489 = arith.select %487, %466, %488 : vector<16x4xi1>, vector<16x4xf32>
    %cst_157 = arith.constant dense<0xFF800000> : vector<4xf32>
    %490 = vector.multi_reduction <maximumf>, %489, %cst_157 [0] : vector<16x4xf32> to vector<4xf32>
    %491 = vector.shape_cast %490 : vector<4xf32> to vector<1x4xf32>
    %492 = arith.ori %467, %49 : i1
    %cst_158 = arith.constant 0.000000e+00 : f32
    %493 = vector.broadcast %cst_158 : f32 to vector<1x4xf32>
    %494 = arith.select %492, %493, %491 : vector<1x4xf32>
    %cst_159 = arith.constant 0xFF800000 : f32
    %495 = vector.shape_cast %63 : vector<16x1xi1> to vector<16x1xi1>
    %496 = vector.broadcast %495 : vector<16x1xi1> to vector<16x4xi1>
    %497 = vector.broadcast %cst_159 : f32 to vector<16x4xf32>
    %498 = arith.select %496, %466, %497 : vector<16x4xi1>, vector<16x4xf32>
    %cst_160 = arith.constant dense<0xFF800000> : vector<4xf32>
    %499 = vector.multi_reduction <maximumf>, %498, %cst_160 [0] : vector<16x4xf32> to vector<4xf32>
    %500 = vector.shape_cast %499 : vector<4xf32> to vector<1x4xf32>
    %501 = arith.ori %467, %64 : i1
    %cst_161 = arith.constant 0.000000e+00 : f32
    %502 = vector.broadcast %cst_161 : f32 to vector<1x4xf32>
    %503 = arith.select %501, %502, %500 : vector<1x4xf32>
    %cst_162 = arith.constant 0xFF800000 : f32
    %504 = vector.shape_cast %78 : vector<16x1xi1> to vector<16x1xi1>
    %505 = vector.broadcast %504 : vector<16x1xi1> to vector<16x4xi1>
    %506 = vector.broadcast %cst_162 : f32 to vector<16x4xf32>
    %507 = arith.select %505, %466, %506 : vector<16x4xi1>, vector<16x4xf32>
    %cst_163 = arith.constant dense<0xFF800000> : vector<4xf32>
    %508 = vector.multi_reduction <maximumf>, %507, %cst_163 [0] : vector<16x4xf32> to vector<4xf32>
    %509 = vector.shape_cast %508 : vector<4xf32> to vector<1x4xf32>
    %510 = arith.ori %467, %79 : i1
    %cst_164 = arith.constant 0.000000e+00 : f32
    %511 = vector.broadcast %cst_164 : f32 to vector<1x4xf32>
    %512 = arith.select %510, %511, %509 : vector<1x4xf32>
    %cst_165 = arith.constant 0xFF800000 : f32
    %513 = vector.shape_cast %93 : vector<16x1xi1> to vector<16x1xi1>
    %514 = vector.broadcast %513 : vector<16x1xi1> to vector<16x4xi1>
    %515 = vector.broadcast %cst_165 : f32 to vector<16x4xf32>
    %516 = arith.select %514, %466, %515 : vector<16x4xi1>, vector<16x4xf32>
    %cst_166 = arith.constant dense<0xFF800000> : vector<4xf32>
    %517 = vector.multi_reduction <maximumf>, %516, %cst_166 [0] : vector<16x4xf32> to vector<4xf32>
    %518 = vector.shape_cast %517 : vector<4xf32> to vector<1x4xf32>
    %519 = arith.ori %467, %94 : i1
    %cst_167 = arith.constant 0.000000e+00 : f32
    %520 = vector.broadcast %cst_167 : f32 to vector<1x4xf32>
    %521 = arith.select %519, %520, %518 : vector<1x4xf32>
    %cst_168 = arith.constant 0xFF800000 : f32
    %522 = vector.shape_cast %108 : vector<16x1xi1> to vector<16x1xi1>
    %523 = vector.broadcast %522 : vector<16x1xi1> to vector<16x4xi1>
    %524 = vector.broadcast %cst_168 : f32 to vector<16x4xf32>
    %525 = arith.select %523, %466, %524 : vector<16x4xi1>, vector<16x4xf32>
    %cst_169 = arith.constant dense<0xFF800000> : vector<4xf32>
    %526 = vector.multi_reduction <maximumf>, %525, %cst_169 [0] : vector<16x4xf32> to vector<4xf32>
    %527 = vector.shape_cast %526 : vector<4xf32> to vector<1x4xf32>
    %528 = arith.ori %467, %109 : i1
    %cst_170 = arith.constant 0.000000e+00 : f32
    %529 = vector.broadcast %cst_170 : f32 to vector<1x4xf32>
    %530 = arith.select %528, %529, %527 : vector<1x4xf32>
    %531 = tpu.concatenate %476, %485, %494, %503, %512, %521, %530 in 0 : vector<1x4xf32>, vector<1x4xf32>, vector<1x4xf32>, vector<1x4xf32>, vector<1x4xf32>, vector<1x4xf32>, vector<1x4xf32> -> vector<7x4xf32>
    %c0_171 = arith.constant 0 : index
    %c4 = arith.constant 4 : index
    %c0_172 = arith.constant 0 : index
    %c0_173 = arith.constant 0 : index
    %532 = vector.load %arg5[%c0_171, %c4, %c0_172, %c0_173] : memref<1x7x7x4xf32, #tpu.memory_space<vmem>>, vector<1x1x7x4xf32>
    %533 = vector.shape_cast %532 : vector<1x1x7x4xf32> to vector<7x4xf32>
    %534 = vector.shape_cast %531 : vector<7x4xf32> to vector<1x1x7x4xf32>
    tpu.vector_store %arg5[%c0_171, %c4, %c0_172, %c0_173], %534 {strides = array<i32>} : memref<1x7x7x4xf32, #tpu.memory_space<vmem>>, vector<1x1x7x4xf32>,
    %c5_i32_174 = arith.constant 5 : i32
    %535 = arith.addi %0, %c5_i32_174 : i32
    %536 = arith.index_cast %535 : i32 to index
    %537 = memref.load %arg3[%536] : memref<84xi32, #tpu.memory_space<smem>>
    %c7_i32_175 = arith.constant 7 : i32
    %538 = arith.addi %0, %c7_i32_175 : i32
    %c5_i32_176 = arith.constant 5 : i32
    %539 = arith.addi %538, %c5_i32_176 : i32
    %540 = arith.index_cast %539 : i32 to index
    %541 = memref.load %arg3[%540] : memref<84xi32, #tpu.memory_space<smem>>
    %542 = vector.broadcast %537 : i32 to vector<16x1x1xi32>
    %543 = arith.cmpi sge, %3, %542 : vector<16x1x1xi32>
    %544 = vector.broadcast %541 : i32 to vector<16x1x1xi32>
    %545 = arith.cmpi slt, %3, %544 : vector<16x1x1xi32>
    %546 = arith.andi %543, %545 : vector<16x1x1xi1>
    %cst_177 = arith.constant 0xFF800000 : f32
    %547 = vector.shape_cast %546 : vector<16x1x1xi1> to vector<16x1x1xi1>
    %548 = vector.broadcast %547 : vector<16x1x1xi1> to vector<16x16x4xi1>
    %549 = vector.broadcast %cst_177 : f32 to vector<16x16x4xf32>
    %550 = arith.select %548, %2, %549 : vector<16x16x4xi1>, vector<16x16x4xf32>
    %cst_178 = arith.constant dense<0xFF800000> : vector<16x4xf32>
    %551 = vector.multi_reduction <maximumf>, %550, %cst_178 [0] : vector<16x16x4xf32> to vector<16x4xf32>
    %552 = arith.cmpi sle, %541, %537 : i32
    %cst_179 = arith.constant 0xFF800000 : f32
    %553 = vector.shape_cast %18 : vector<16x1xi1> to vector<16x1xi1>
    %554 = vector.broadcast %553 : vector<16x1xi1> to vector<16x4xi1>
    %555 = vector.broadcast %cst_179 : f32 to vector<16x4xf32>
    %556 = arith.select %554, %551, %555 : vector<16x4xi1>, vector<16x4xf32>
    %cst_180 = arith.constant dense<0xFF800000> : vector<4xf32>
    %557 = vector.multi_reduction <maximumf>, %556, %cst_180 [0] : vector<16x4xf32> to vector<4xf32>
    %558 = vector.shape_cast %557 : vector<4xf32> to vector<1x4xf32>
    %559 = arith.ori %552, %19 : i1
    %cst_181 = arith.constant 0.000000e+00 : f32
    %560 = vector.broadcast %cst_181 : f32 to vector<1x4xf32>
    %561 = arith.select %559, %560, %558 : vector<1x4xf32>
    %cst_182 = arith.constant 0xFF800000 : f32
    %562 = vector.shape_cast %33 : vector<16x1xi1> to vector<16x1xi1>
    %563 = vector.broadcast %562 : vector<16x1xi1> to vector<16x4xi1>
    %564 = vector.broadcast %cst_182 : f32 to vector<16x4xf32>
    %565 = arith.select %563, %551, %564 : vector<16x4xi1>, vector<16x4xf32>
    %cst_183 = arith.constant dense<0xFF800000> : vector<4xf32>
    %566 = vector.multi_reduction <maximumf>, %565, %cst_183 [0] : vector<16x4xf32> to vector<4xf32>
    %567 = vector.shape_cast %566 : vector<4xf32> to vector<1x4xf32>
    %568 = arith.ori %552, %34 : i1
    %cst_184 = arith.constant 0.000000e+00 : f32
    %569 = vector.broadcast %cst_184 : f32 to vector<1x4xf32>
    %570 = arith.select %568, %569, %567 : vector<1x4xf32>
    %cst_185 = arith.constant 0xFF800000 : f32
    %571 = vector.shape_cast %48 : vector<16x1xi1> to vector<16x1xi1>
    %572 = vector.broadcast %571 : vector<16x1xi1> to vector<16x4xi1>
    %573 = vector.broadcast %cst_185 : f32 to vector<16x4xf32>
    %574 = arith.select %572, %551, %573 : vector<16x4xi1>, vector<16x4xf32>
    %cst_186 = arith.constant dense<0xFF800000> : vector<4xf32>
    %575 = vector.multi_reduction <maximumf>, %574, %cst_186 [0] : vector<16x4xf32> to vector<4xf32>
    %576 = vector.shape_cast %575 : vector<4xf32> to vector<1x4xf32>
    %577 = arith.ori %552, %49 : i1
    %cst_187 = arith.constant 0.000000e+00 : f32
    %578 = vector.broadcast %cst_187 : f32 to vector<1x4xf32>
    %579 = arith.select %577, %578, %576 : vector<1x4xf32>
    %cst_188 = arith.constant 0xFF800000 : f32
    %580 = vector.shape_cast %63 : vector<16x1xi1> to vector<16x1xi1>
    %581 = vector.broadcast %580 : vector<16x1xi1> to vector<16x4xi1>
    %582 = vector.broadcast %cst_188 : f32 to vector<16x4xf32>
    %583 = arith.select %581, %551, %582 : vector<16x4xi1>, vector<16x4xf32>
    %cst_189 = arith.constant dense<0xFF800000> : vector<4xf32>
    %584 = vector.multi_reduction <maximumf>, %583, %cst_189 [0] : vector<16x4xf32> to vector<4xf32>
    %585 = vector.shape_cast %584 : vector<4xf32> to vector<1x4xf32>
    %586 = arith.ori %552, %64 : i1
    %cst_190 = arith.constant 0.000000e+00 : f32
    %587 = vector.broadcast %cst_190 : f32 to vector<1x4xf32>
    %588 = arith.select %586, %587, %585 : vector<1x4xf32>
    %cst_191 = arith.constant 0xFF800000 : f32
    %589 = vector.shape_cast %78 : vector<16x1xi1> to vector<16x1xi1>
    %590 = vector.broadcast %589 : vector<16x1xi1> to vector<16x4xi1>
    %591 = vector.broadcast %cst_191 : f32 to vector<16x4xf32>
    %592 = arith.select %590, %551, %591 : vector<16x4xi1>, vector<16x4xf32>
    %cst_192 = arith.constant dense<0xFF800000> : vector<4xf32>
    %593 = vector.multi_reduction <maximumf>, %592, %cst_192 [0] : vector<16x4xf32> to vector<4xf32>
    %594 = vector.shape_cast %593 : vector<4xf32> to vector<1x4xf32>
    %595 = arith.ori %552, %79 : i1
    %cst_193 = arith.constant 0.000000e+00 : f32
    %596 = vector.broadcast %cst_193 : f32 to vector<1x4xf32>
    %597 = arith.select %595, %596, %594 : vector<1x4xf32>
    %cst_194 = arith.constant 0xFF800000 : f32
    %598 = vector.shape_cast %93 : vector<16x1xi1> to vector<16x1xi1>
    %599 = vector.broadcast %598 : vector<16x1xi1> to vector<16x4xi1>
    %600 = vector.broadcast %cst_194 : f32 to vector<16x4xf32>
    %601 = arith.select %599, %551, %600 : vector<16x4xi1>, vector<16x4xf32>
    %cst_195 = arith.constant dense<0xFF800000> : vector<4xf32>
    %602 = vector.multi_reduction <maximumf>, %601, %cst_195 [0] : vector<16x4xf32> to vector<4xf32>
    %603 = vector.shape_cast %602 : vector<4xf32> to vector<1x4xf32>
    %604 = arith.ori %552, %94 : i1
    %cst_196 = arith.constant 0.000000e+00 : f32
    %605 = vector.broadcast %cst_196 : f32 to vector<1x4xf32>
    %606 = arith.select %604, %605, %603 : vector<1x4xf32>
    %cst_197 = arith.constant 0xFF800000 : f32
    %607 = vector.shape_cast %108 : vector<16x1xi1> to vector<16x1xi1>
    %608 = vector.broadcast %607 : vector<16x1xi1> to vector<16x4xi1>
    %609 = vector.broadcast %cst_197 : f32 to vector<16x4xf32>
    %610 = arith.select %608, %551, %609 : vector<16x4xi1>, vector<16x4xf32>
    %cst_198 = arith.constant dense<0xFF800000> : vector<4xf32>
    %611 = vector.multi_reduction <maximumf>, %610, %cst_198 [0] : vector<16x4xf32> to vector<4xf32>
    %612 = vector.shape_cast %611 : vector<4xf32> to vector<1x4xf32>
    %613 = arith.ori %552, %109 : i1
    %cst_199 = arith.constant 0.000000e+00 : f32
    %614 = vector.broadcast %cst_199 : f32 to vector<1x4xf32>
    %615 = arith.select %613, %614, %612 : vector<1x4xf32>
    %616 = tpu.concatenate %561, %570, %579, %588, %597, %606, %615 in 0 : vector<1x4xf32>, vector<1x4xf32>, vector<1x4xf32>, vector<1x4xf32>, vector<1x4xf32>, vector<1x4xf32>, vector<1x4xf32> -> vector<7x4xf32>
    %c0_200 = arith.constant 0 : index
    %c5 = arith.constant 5 : index
    %c0_201 = arith.constant 0 : index
    %c0_202 = arith.constant 0 : index
    %617 = vector.load %arg5[%c0_200, %c5, %c0_201, %c0_202] : memref<1x7x7x4xf32, #tpu.memory_space<vmem>>, vector<1x1x7x4xf32>
    %618 = vector.shape_cast %617 : vector<1x1x7x4xf32> to vector<7x4xf32>
    %619 = vector.shape_cast %616 : vector<7x4xf32> to vector<1x1x7x4xf32>
    tpu.vector_store %arg5[%c0_200, %c5, %c0_201, %c0_202], %619 {strides = array<i32>} : memref<1x7x7x4xf32, #tpu.memory_space<vmem>>, vector<1x1x7x4xf32>,
    %c6_i32_203 = arith.constant 6 : i32
    %620 = arith.addi %0, %c6_i32_203 : i32
    %621 = arith.index_cast %620 : i32 to index
    %622 = memref.load %arg3[%621] : memref<84xi32, #tpu.memory_space<smem>>
    %c7_i32_204 = arith.constant 7 : i32
    %623 = arith.addi %0, %c7_i32_204 : i32
    %c6_i32_205 = arith.constant 6 : i32
    %624 = arith.addi %623, %c6_i32_205 : i32
    %625 = arith.index_cast %624 : i32 to index
    %626 = memref.load %arg3[%625] : memref<84xi32, #tpu.memory_space<smem>>
    %627 = vector.broadcast %622 : i32 to vector<16x1x1xi32>
    %628 = arith.cmpi sge, %3, %627 : vector<16x1x1xi32>
    %629 = vector.broadcast %626 : i32 to vector<16x1x1xi32>
    %630 = arith.cmpi slt, %3, %629 : vector<16x1x1xi32>
    %631 = arith.andi %628, %630 : vector<16x1x1xi1>
    %cst_206 = arith.constant 0xFF800000 : f32
    %632 = vector.shape_cast %631 : vector<16x1x1xi1> to vector<16x1x1xi1>
    %633 = vector.broadcast %632 : vector<16x1x1xi1> to vector<16x16x4xi1>
    %634 = vector.broadcast %cst_206 : f32 to vector<16x16x4xf32>
    %635 = arith.select %633, %2, %634 : vector<16x16x4xi1>, vector<16x16x4xf32>
    %cst_207 = arith.constant dense<0xFF800000> : vector<16x4xf32>
    %636 = vector.multi_reduction <maximumf>, %635, %cst_207 [0] : vector<16x16x4xf32> to vector<16x4xf32>
    %637 = arith.cmpi sle, %626, %622 : i32
    %cst_208 = arith.constant 0xFF800000 : f32
    %638 = vector.shape_cast %18 : vector<16x1xi1> to vector<16x1xi1>
    %639 = vector.broadcast %638 : vector<16x1xi1> to vector<16x4xi1>
    %640 = vector.broadcast %cst_208 : f32 to vector<16x4xf32>
    %641 = arith.select %639, %636, %640 : vector<16x4xi1>, vector<16x4xf32>
    %cst_209 = arith.constant dense<0xFF800000> : vector<4xf32>
    %642 = vector.multi_reduction <maximumf>, %641, %cst_209 [0] : vector<16x4xf32> to vector<4xf32>
    %643 = vector.shape_cast %642 : vector<4xf32> to vector<1x4xf32>
    %644 = arith.ori %637, %19 : i1
    %cst_210 = arith.constant 0.000000e+00 : f32
    %645 = vector.broadcast %cst_210 : f32 to vector<1x4xf32>
    %646 = arith.select %644, %645, %643 : vector<1x4xf32>
    %cst_211 = arith.constant 0xFF800000 : f32
    %647 = vector.shape_cast %33 : vector<16x1xi1> to vector<16x1xi1>
    %648 = vector.broadcast %647 : vector<16x1xi1> to vector<16x4xi1>
    %649 = vector.broadcast %cst_211 : f32 to vector<16x4xf32>
    %650 = arith.select %648, %636, %649 : vector<16x4xi1>, vector<16x4xf32>
    %cst_212 = arith.constant dense<0xFF800000> : vector<4xf32>
    %651 = vector.multi_reduction <maximumf>, %650, %cst_212 [0] : vector<16x4xf32> to vector<4xf32>
    %652 = vector.shape_cast %651 : vector<4xf32> to vector<1x4xf32>
    %653 = arith.ori %637, %34 : i1
    %cst_213 = arith.constant 0.000000e+00 : f32
    %654 = vector.broadcast %cst_213 : f32 to vector<1x4xf32>
    %655 = arith.select %653, %654, %652 : vector<1x4xf32>
    %cst_214 = arith.constant 0xFF800000 : f32
    %656 = vector.shape_cast %48 : vector<16x1xi1> to vector<16x1xi1>
    %657 = vector.broadcast %656 : vector<16x1xi1> to vector<16x4xi1>
    %658 = vector.broadcast %cst_214 : f32 to vector<16x4xf32>
    %659 = arith.select %657, %636, %658 : vector<16x4xi1>, vector<16x4xf32>
    %cst_215 = arith.constant dense<0xFF800000> : vector<4xf32>
    %660 = vector.multi_reduction <maximumf>, %659, %cst_215 [0] : vector<16x4xf32> to vector<4xf32>
    %661 = vector.shape_cast %660 : vector<4xf32> to vector<1x4xf32>
    %662 = arith.ori %637, %49 : i1
    %cst_216 = arith.constant 0.000000e+00 : f32
    %663 = vector.broadcast %cst_216 : f32 to vector<1x4xf32>
    %664 = arith.select %662, %663, %661 : vector<1x4xf32>
    %cst_217 = arith.constant 0xFF800000 : f32
    %665 = vector.shape_cast %63 : vector<16x1xi1> to vector<16x1xi1>
    %666 = vector.broadcast %665 : vector<16x1xi1> to vector<16x4xi1>
    %667 = vector.broadcast %cst_217 : f32 to vector<16x4xf32>
    %668 = arith.select %666, %636, %667 : vector<16x4xi1>, vector<16x4xf32>
    %cst_218 = arith.constant dense<0xFF800000> : vector<4xf32>
    %669 = vector.multi_reduction <maximumf>, %668, %cst_218 [0] : vector<16x4xf32> to vector<4xf32>
    %670 = vector.shape_cast %669 : vector<4xf32> to vector<1x4xf32>
    %671 = arith.ori %637, %64 : i1
    %cst_219 = arith.constant 0.000000e+00 : f32
    %672 = vector.broadcast %cst_219 : f32 to vector<1x4xf32>
    %673 = arith.select %671, %672, %670 : vector<1x4xf32>
    %cst_220 = arith.constant 0xFF800000 : f32
    %674 = vector.shape_cast %78 : vector<16x1xi1> to vector<16x1xi1>
    %675 = vector.broadcast %674 : vector<16x1xi1> to vector<16x4xi1>
    %676 = vector.broadcast %cst_220 : f32 to vector<16x4xf32>
    %677 = arith.select %675, %636, %676 : vector<16x4xi1>, vector<16x4xf32>
    %cst_221 = arith.constant dense<0xFF800000> : vector<4xf32>
    %678 = vector.multi_reduction <maximumf>, %677, %cst_221 [0] : vector<16x4xf32> to vector<4xf32>
    %679 = vector.shape_cast %678 : vector<4xf32> to vector<1x4xf32>
    %680 = arith.ori %637, %79 : i1
    %cst_222 = arith.constant 0.000000e+00 : f32
    %681 = vector.broadcast %cst_222 : f32 to vector<1x4xf32>
    %682 = arith.select %680, %681, %679 : vector<1x4xf32>
    %cst_223 = arith.constant 0xFF800000 : f32
    %683 = vector.shape_cast %93 : vector<16x1xi1> to vector<16x1xi1>
    %684 = vector.broadcast %683 : vector<16x1xi1> to vector<16x4xi1>
    %685 = vector.broadcast %cst_223 : f32 to vector<16x4xf32>
    %686 = arith.select %684, %636, %685 : vector<16x4xi1>, vector<16x4xf32>
    %cst_224 = arith.constant dense<0xFF800000> : vector<4xf32>
    %687 = vector.multi_reduction <maximumf>, %686, %cst_224 [0] : vector<16x4xf32> to vector<4xf32>
    %688 = vector.shape_cast %687 : vector<4xf32> to vector<1x4xf32>
    %689 = arith.ori %637, %94 : i1
    %cst_225 = arith.constant 0.000000e+00 : f32
    %690 = vector.broadcast %cst_225 : f32 to vector<1x4xf32>
    %691 = arith.select %689, %690, %688 : vector<1x4xf32>
    %cst_226 = arith.constant 0xFF800000 : f32
    %692 = vector.shape_cast %108 : vector<16x1xi1> to vector<16x1xi1>
    %693 = vector.broadcast %692 : vector<16x1xi1> to vector<16x4xi1>
    %694 = vector.broadcast %cst_226 : f32 to vector<16x4xf32>
    %695 = arith.select %693, %636, %694 : vector<16x4xi1>, vector<16x4xf32>
    %cst_227 = arith.constant dense<0xFF800000> : vector<4xf32>
    %696 = vector.multi_reduction <maximumf>, %695, %cst_227 [0] : vector<16x4xf32> to vector<4xf32>
    %697 = vector.shape_cast %696 : vector<4xf32> to vector<1x4xf32>
    %698 = arith.ori %637, %109 : i1
    %cst_228 = arith.constant 0.000000e+00 : f32
    %699 = vector.broadcast %cst_228 : f32 to vector<1x4xf32>
    %700 = arith.select %698, %699, %697 : vector<1x4xf32>
    %701 = tpu.concatenate %646, %655, %664, %673, %682, %691, %700 in 0 : vector<1x4xf32>, vector<1x4xf32>, vector<1x4xf32>, vector<1x4xf32>, vector<1x4xf32>, vector<1x4xf32>, vector<1x4xf32> -> vector<7x4xf32>
    %c0_229 = arith.constant 0 : index
    %c6 = arith.constant 6 : index
    %c0_230 = arith.constant 0 : index
    %c0_231 = arith.constant 0 : index
    %702 = vector.load %arg5[%c0_229, %c6, %c0_230, %c0_231] : memref<1x7x7x4xf32, #tpu.memory_space<vmem>>, vector<1x1x7x4xf32>
    %703 = vector.shape_cast %702 : vector<1x1x7x4xf32> to vector<7x4xf32>
    %704 = vector.shape_cast %701 : vector<7x4xf32> to vector<1x1x7x4xf32>
    tpu.vector_store %arg5[%c0_229, %c6, %c0_230, %c0_231], %704 {strides = array<i32>} : memref<1x7x7x4xf32, #tpu.memory_space<vmem>>, vector<1x1x7x4xf32>,
    return
  }
  func.func @transform_0(%arg0: i32, %arg1: i32, %arg2: memref<3xi32, #tpu.memory_space<smem>>) -> i32 {
    %c0_i32 = arith.constant 0 : i32
    %c0_i32_0 = arith.constant 0 : i32
    return %c0_i32 : i32
  }
  func.func @transform_1(%arg0: i32, %arg1: i32, %arg2: memref<3xi32, #tpu.memory_space<smem>>) -> (i32, i32, i32, i32) {
    %0 = arith.index_cast %arg1 : i32 to index
    %1 = memref.load %arg2[%0] : memref<3xi32, #tpu.memory_space<smem>>
    %c0_i32 = arith.constant 0 : i32
    %c0_i32_0 = arith.constant 0 : i32
    %c0_i32_1 = arith.constant 0 : i32
    return %1, %c0_i32, %c0_i32_0, %arg0 : i32, i32, i32, i32
  }
  func.func @transform_2(%arg0: i32, %arg1: i32, %arg2: memref<3xi32, #tpu.memory_space<smem>>) -> (i32, i32, i32, i32) {
    %c0_i32 = arith.constant 0 : i32
    %c0_i32_0 = arith.constant 0 : i32
    %c0_i32_1 = arith.constant 0 : i32
    return %arg1, %c0_i32, %c0_i32_0, %arg0 : i32, i32, i32, i32
  }
}

</mosaic_0001>

<llo_original>
// kernel: tpu_custom_call.1
$region0: #{tpu_custom_call.1}
  #allocation0 [shape = 'u32[]', space=smem, size = 0x4, offset = 0x4, fixed_abs, tag = 'smem constant byte address 0x4 - core index']
  #allocation1 [shape = 'u32[144,128]{1,0:T(1,128)}', space=vmem, size = 0x12000, scoped, tag = 'internal scratch']
  #allocation2 [shape = 's32[1]{0}', space=sflag, size = 0x4, scoped, tag = 'scoped memory for tpu_custom_call.1']
  #allocation3 [shape = 'u8[512]{0}', space=smem, size = 0x200, scoped, tag = 'prefetched SMEM operand 0']
  %s0 = inlined_call_operand.vmem [shape: s32[3], index: 0, kind: input, shape index: {}]
  %s1 = inlined_call_operand.vmem [shape: s32[84], index: 1, kind: input, shape index: {}]
  %s2 = inlined_call_operand.vmem [shape: f32[2,16,16,4], index: 2, kind: input, shape index: {}]
  %s3 = inlined_call_operand.vmem [shape: f32[3,7,7,4], index: 3, kind: output, shape index: {}]
  %s4 = sld [smem:[#allocation0]]
  $region45: #{tpu_custom_call.1} parent=0
    _
  %s6 = ssub.s32 1, %s4
  %s7 = scalar_select 0, %s6, %s4
  %s8 = sshll.u32 %s0, 4
  %s9 = int_to_ptr.vmem [resolvable:$true] %s8
  %11 = dma.vmem_to_smem %s9, 16, [#allocation3], [#allocation2]
  %12 = dma.done [#allocation2], 16
  %13 = sfence
  $region1: #{tpu_custom_call.1} parent=0
    #allocation4 [shape = 'u8[512]{0}', space=smem, size = 0x200, scoped, tag = 'input window, operand 1, single buffered']
    #allocation5 [shape = 's32[2]{0}', space=sflag, size = 0x8, scoped, tag = 'scoped memory for tpu_custom_call.1']
    %14 = vsyncpa [#allocation5], 0
    loop: start=0, step=1, limit=5
    $region2: #{tpu_custom_call.1} parent=1 // loop_pre_header
      _
    $region3: #{tpu_custom_call.1} parent=1 // loop_header
      %s16 = sphi 0, %s20
      %p17 = scmp.ge.s32.totalorder %s16, 5
      %s23 = sphi 0, %s35
      %s24 = sphi 0, %s31
      %s25 = sphi 0, %s23
      %s26 = sphi 0, %s24
      %s27 = sphi 0, %s25
      %s28 = sphi 0, %s26
      %s36 = sphi 0, %s36
      %s38 = sphi 0, %s36
      %s39 = sphi 0, %s38
      %s53 = sphi 0, %s39
      %s63 = sphi 0, %s65
      %s66 = sphi 0, %s63
      %s67 = sphi 0, %s66
      %s83 = sphi 0, %s67
      %s91 = sphi 0, %s93
      %s94 = sphi 0, %s91
      %s95 = sphi 0, %s94
      %s111 = sphi 0, %s95
    $region4: #{tpu_custom_call.1} parent=1 // loop_header_branch
      %19 = sbr.rel (%p17) target = $region8
    $region5: #{tpu_custom_call.1} parent=1 // loop_body
      %s21 = ssub.s32 %s16, 1
      %s22 = ssub.s32 %s16, 2
      %s29 = sadd.s32 1, %s24
      %p30 = scmp.ge.s32.totalorder %s29, 3
      %s31 = scalar_select %p30, 0, %s29
      %s32 = sadd.s32 1, %s23
      %s33 = scalar_select %p30, %s32, %s23
      %p34 = scmp.ge.s32.totalorder %s33, 1
      %s35 = scalar_select %p34, 0, %s33
      %s37 = sadd.s32 %s36, 1
      %p40 = scmp.eq.s32.totalorder %s16, 2
      %p41 = scmp.ne.s32.totalorder %s36, %s38
      %p42 = scmp.eq.s32.totalorder %s16, 0
      %p43 = por %p41, %p42
      %p44 = scmp.ne.s32.totalorder %s36, %s38
      %p45 = scmp.eq.s32.totalorder %s21, 2
      %p46 = por %p44, %p45
      %p47 = scmp.ne.s32.totalorder %s38, %s39
      %p48 = scmp.eq.s32.totalorder %s21, 0
      %p49 = por %p47, %p48
      %p50 = scmp.ne.s32.totalorder %s38, %s39
      %p51 = scmp.eq.s32.totalorder %s22, 2
      %p52 = por %p50, %p51
      %p54 = scmp.ne.s32.totalorder %s39, %s53
      %p55 = scmp.eq.s32.totalorder %s22, 0
      %p56 = por %p54, %p55
      %s57 = sld [smem:[#allocation3 + %s24]]
      %s58 = sld [smem:[#allocation3 + %s31]]
      %s59 = ssub.s32 %s57, %s58
      %s60 = ssub.s32 %s23, %s35
      %s61 = sor.u32 %s59, %s60
      %p62 = scmp.eq.s32.totalorder %s61, 0
      %s64 = sadd.s32 %s63, 1
      %s65 = scalar_select %p62, %s63, %s64
      %p68 = pneg %p62
      %p69 = scmp.eq.s32.totalorder %s16, 2
      %p70 = por %p68, %p69
      %p71 = scmp.ne.s32.totalorder %s63, %s66
      %p72 = scmp.eq.s32.totalorder %s16, 0
      %p73 = por %p71, %p72
      %p74 = scmp.ne.s32.totalorder %s63, %s66
      %p75 = scmp.eq.s32.totalorder %s21, 2
      %p76 = por %p74, %p75
      %p77 = scmp.ne.s32.totalorder %s66, %s67
      %p78 = scmp.eq.s32.totalorder %s21, 0
      %p79 = por %p77, %p78
      %p80 = scmp.ne.s32.totalorder %s66, %s67
      %p81 = scmp.eq.s32.totalorder %s22, 2
      %p82 = por %p80, %p81
      %p84 = scmp.ne.s32.totalorder %s67, %s83
      %p85 = scmp.eq.s32.totalorder %s22, 0
      %p86 = por %p84, %p85
      %s87 = ssub.s32 %s24, %s31
      %s88 = ssub.s32 %s23, %s35
      %s89 = sor.u32 %s87, %s88
      %p90 = scmp.eq.s32.totalorder %s89, 0
      %s92 = sadd.s32 %s91, 1
      %s93 = scalar_select %p90, %s91, %s92
      %p96 = pneg %p90
      %p97 = scmp.eq.s32.totalorder %s16, 2
      %p98 = por %p96, %p97
      %p99 = scmp.ne.s32.totalorder %s91, %s94
      %p100 = scmp.eq.s32.totalorder %s16, 0
      %p101 = por %p99, %p100
      %p102 = scmp.ne.s32.totalorder %s91, %s94
      %p103 = scmp.eq.s32.totalorder %s21, 2
      %p104 = por %p102, %p103
      %p105 = scmp.ne.s32.totalorder %s94, %s95
      %p106 = scmp.eq.s32.totalorder %s21, 0
      %p107 = por %p105, %p106
      %p108 = scmp.ne.s32.totalorder %s94, %s95
      %p109 = scmp.eq.s32.totalorder %s22, 2
      %p110 = por %p108, %p109
      %p112 = scmp.ne.s32.totalorder %s95, %s111
      %p113 = scmp.eq.s32.totalorder %s22, 0
      %p114 = por %p112, %p113
      %p115 = scmp.le.s32.totalorder 1, %s16
      %p116 = scmp.lt.s32.totalorder %s16, 4
      %p117 = pnand %p115, %p116
      %p118 = pneg %p117
      // Predicated region
      $region9: #{tpu_custom_call.1} parent=5 // pred_check
        _
      $region10: #{tpu_custom_call.1} parent=5 // pred_check_branch
        %120 = sbr.rel (%p117) target = $region12
      $region11: #{tpu_custom_call.1} parent=5 // pred_region
        %s121 = ssub.s32 %s16, 1
        // Predicated region
        $region13: #{tpu_custom_call.1} parent=11 // pred_check
          %p122 = pneg %p49
        $region14: #{tpu_custom_call.1} parent=11 // pred_check_branch
          %124 = sbr.rel (%p122) target = $region16
        $region15: #{tpu_custom_call.1} parent=11 // pred_region
          %s126 = ssub.s32 16, 16
          %127 = vsyncadd [#allocation5], %s126
          %s129 = sshll.u32 %s1, 4
          %s130 = int_to_ptr.vmem [resolvable:$true] %s129
          %132 = dma.vmem_to_smem %s130, 16, [#allocation4], [#allocation5]
        $region16: #{tpu_custom_call.1} parent=11 // pred_fallthru
          _
      $region12: #{tpu_custom_call.1} parent=5 // pred_fallthru
        _
      %p133 = scmp.lt.s32.totalorder %s16, 3
      // Predicated region
      $region17: #{tpu_custom_call.1} parent=5 // pred_check
        %p134 = pneg %p133
      $region18: #{tpu_custom_call.1} parent=5 // pred_check_branch
        %136 = sbr.rel (%p134) target = $region20
      $region19: #{tpu_custom_call.1} parent=5 // pred_region
        // Predicated region
        $region21: #{tpu_custom_call.1} parent=19 // pred_check
          %p137 = pneg %p73
        $region22: #{tpu_custom_call.1} parent=19 // pred_check_branch
          %139 = sbr.rel (%p137) target = $region24
        $region23: #{tpu_custom_call.1} parent=19 // pred_region
          %s140 = sld [smem:[#allocation3 + %s24]]
          %p141 = scmp.lt.s32.totalorder %s140, 1
          %s142 = scalar_select %p141, %s140, 1
          %p143 = scmp.lt.s32.totalorder %s23, 0
          %s144 = scalar_select %p143, %s23, 0
          %s145 = smul.addr %s142, 32
          %s146 = sadd.s32 %s144, %s145
          %s147 = smul.addr %s146, 8
          %s148 = scalar_lea.vmem %s2, %s147
          %s149 = sld [smem:[#allocation3 + %s24]]
        $region24: #{tpu_custom_call.1} parent=19 // pred_fallthru
          _
      $region20: #{tpu_custom_call.1} parent=5 // pred_fallthru
        _
      %p150 = scmp.le.s32.totalorder 1, %s16
      %p151 = scmp.lt.s32.totalorder %s16, 4
      %p152 = pnand %p150, %p151
      %p153 = pneg %p152
      // Predicated region
      $region25: #{tpu_custom_call.1} parent=5 // pred_check
        _
      $region26: #{tpu_custom_call.1} parent=5 // pred_check_branch
        %155 = sbr.rel (%p152) target = $region28
      $region27: #{tpu_custom_call.1} parent=5 // pred_region
        %s156 = ssub.s32 %s16, 1
        // Predicated region
        $region29: #{tpu_custom_call.1} parent=27 // pred_check
          %p157 = pneg %p49
        $region30: #{tpu_custom_call.1} parent=27 // pred_check_branch
          %159 = sbr.rel (%p157) target = $region32
        $region31: #{tpu_custom_call.1} parent=27 // pred_region
          %160 = dma.done [#allocation5], 16
        $region32: #{tpu_custom_call.1} parent=27 // pred_fallthru
          _
        %161 = sfence
        %p162 = pneg %p49
        %p163 = pneg %p46
        %s164 = sld [smem:[#allocation3 + %s26]]
        %p165 = scmp.lt.s32.totalorder %s164, 1
        %s166 = scalar_select %p165, %s164, 1
        %p167 = scmp.lt.s32.totalorder %s25, 0
        %s168 = scalar_select %p167, %s25, 0
        %s169 = smul.addr %s166, 32
        %s170 = sadd.s32 %s168, %s169
        %s171 = smul.addr %s170, 8
        %s172 = scalar_lea.vmem %s2, %s171
        %p173 = pneg %p79
        %p174 = pneg %p76
        %p175 = pneg %p107
        %p176 = pneg %p104
        %p177 = scmp.lt.s32.totalorder %s26, 2
        %s178 = scalar_select %p177, %s26, 2
        %p179 = scmp.lt.s32.totalorder %s25, 0
        %s180 = scalar_select %p179, %s25, 0
        %s181 = smul.addr %s178, 7
        %s182 = sadd.s32 %s180, %s181
        %s183 = smul.addr %s182, 8
        %s184 = scalar_lea.vmem %s3, %s183
        %s185 = sld [smem:[#allocation3 + %s26]]
        %p186 = scmp.lt.s32.totalorder %s185, 1
        %s187 = scalar_select %p186, %s185, 1
        %p188 = scmp.lt.s32.totalorder %s25, 0
        %s189 = scalar_select %p188, %s25, 0
        %s190 = smul.addr %s187, 32
        %s191 = sadd.s32 %s189, %s190
        %s192 = smul.addr %s191, 8
        %s193 = scalar_lea.vmem %s2, %s192
        %s194 = sld [smem:[#allocation3 + %s26]]
        %p195 = scmp.lt.s32.totalorder %s26, 2
        %s196 = scalar_select %p195, %s26, 2
        %p197 = scmp.lt.s32.totalorder %s25, 0
        %s198 = scalar_select %p197, %s25, 0
        %s199 = smul.addr %s196, 7
        %s200 = sadd.s32 %s198, %s199
        %s201 = smul.addr %s200, 8
        %s202 = scalar_lea.vmem %s3, %s201
        %s203 = smul.u32 %s26, 28
        %v204 = vld [vmem:[%s193] sm:$0xff]
        %v205 = vld [vmem:[%s193 + $0x8] sm:$0xff]
        %v206 = vld [vmem:[%s193 + $0x10] sm:$0xff]
        %v207 = vld [vmem:[%s193 + $0x18] sm:$0xff]
        %v208 = vld [vmem:[%s193 + $0x20] sm:$0xff]
        %v209 = vld [vmem:[%s193 + $0x28] sm:$0xff]
        %v210 = vld [vmem:[%s193 + $0x30] sm:$0xff]
        %v211 = vld [vmem:[%s193 + $0x38] sm:$0xff]
        %v212 = vld [vmem:[%s193 + $0x40] sm:$0xff]
        %v213 = vld [vmem:[%s193 + $0x48] sm:$0xff]
        %v214 = vld [vmem:[%s193 + $0x50] sm:$0xff]
        %v215 = vld [vmem:[%s193 + $0x58] sm:$0xff]
        %v216 = vld [vmem:[%s193 + $0x60] sm:$0xff]
        %v217 = vld [vmem:[%s193 + $0x68] sm:$0xff]
        %v218 = vld [vmem:[%s193 + $0x70] sm:$0xff]
        %v219 = vld [vmem:[%s193 + $0x78] sm:$0xff]
        %v220 = vld [vmem:[%s193 + $0x80] sm:$0xff]
        %v221 = vld [vmem:[%s193 + $0x88] sm:$0xff]
        %v222 = vld [vmem:[%s193 + $0x90] sm:$0xff]
        %v223 = vld [vmem:[%s193 + $0x98] sm:$0xff]
        %v224 = vld [vmem:[%s193 + $0xa0] sm:$0xff]
        %v225 = vld [vmem:[%s193 + $0xa8] sm:$0xff]
        %v226 = vld [vmem:[%s193 + $0xb0] sm:$0xff]
        %v227 = vld [vmem:[%s193 + $0xb8] sm:$0xff]
        %v228 = vld [vmem:[%s193 + $0xc0] sm:$0xff]
        %v229 = vld [vmem:[%s193 + $0xc8] sm:$0xff]
        %v230 = vld [vmem:[%s193 + $0xd0] sm:$0xff]
        %v231 = vld [vmem:[%s193 + $0xd8] sm:$0xff]
        %v232 = vld [vmem:[%s193 + $0xe0] sm:$0xff]
        %v233 = vld [vmem:[%s193 + $0xe8] sm:$0xff]
        %v234 = vld [vmem:[%s193 + $0xf0] sm:$0xff]
        %v235 = vld [vmem:[%s193 + $0xf8] sm:$0xff]
        %v236 = vlaneseq
        %v237 = vshrl.u32 %v236, 7
        %v238 = vadd.s32 %v237, 8
        %s239 = sadd.s32 %s203, 14
        %s240 = sld [smem:[#allocation4 + %s239]]
        %s241 = sadd.s32 %s203, 21
        %s242 = sld [smem:[#allocation4 + %s241]]
        %v243 = vstv %s240
        %vm244 = vcmp.ge.s32.totalorder %v237, %v243
        %vm245 = vcmp.ge.s32.totalorder %v238, %v243
        %v246 = vstv %s242
        %vm247 = vcmp.lt.s32.totalorder %v237, %v246
        %vm248 = vcmp.lt.s32.totalorder %v238, %v246
        %vm249 = vmand %vm244, %vm247
        %vm250 = vmand %vm245, %vm248
        %p251 = scmp.le.s32.totalorder %s242, %s240
        %s252 = sadd.s32 %s203, 15
        %s253 = sld [smem:[#allocation4 + %s252]]
        %s254 = sadd.s32 %s203, 22
        %s255 = sld [smem:[#allocation4 + %s254]]
        %v256 = vstv %s253
        %vm257 = vcmp.ge.s32.totalorder %v237, %v256
        %vm258 = vcmp.ge.s32.totalorder %v238, %v256
        %v259 = vstv %s255
        %vm260 = vcmp.lt.s32.totalorder %v237, %v259
        %vm261 = vcmp.lt.s32.totalorder %v238, %v259
        %vm262 = vmand %vm257, %vm260
        %vm263 = vmand %vm258, %vm261
        %p264 = scmp.le.s32.totalorder %s255, %s253
        %s265 = sadd.s32 %s203, 16
        %s266 = sld [smem:[#allocation4 + %s265]]
        %s267 = sadd.s32 %s203, 23
        %s268 = sld [smem:[#allocation4 + %s267]]
        %v269 = vstv %s266
        %vm270 = vcmp.ge.s32.totalorder %v237, %v269
        %vm271 = vcmp.ge.s32.totalorder %v238, %v269
        %v272 = vstv %s268
        %vm273 = vcmp.lt.s32.totalorder %v237, %v272
        %vm274 = vcmp.lt.s32.totalorder %v238, %v272
        %vm275 = vmand %vm270, %vm273
        %vm276 = vmand %vm271, %vm274
        %p277 = scmp.le.s32.totalorder %s268, %s266
        %s278 = sadd.s32 %s203, 17
        %s279 = sld [smem:[#allocation4 + %s278]]
        %s280 = sadd.s32 %s203, 24
        %s281 = sld [smem:[#allocation4 + %s280]]
        %v282 = vstv %s279
        %vm283 = vcmp.ge.s32.totalorder %v237, %v282
        %vm284 = vcmp.ge.s32.totalorder %v238, %v282
        %v285 = vstv %s281
        %vm286 = vcmp.lt.s32.totalorder %v237, %v285
        %vm287 = vcmp.lt.s32.totalorder %v238, %v285
        %vm288 = vmand %vm283, %vm286
        %vm289 = vmand %vm284, %vm287
        %p290 = scmp.le.s32.totalorder %s281, %s279
        %s291 = sadd.s32 %s203, 18
        %s292 = sld [smem:[#allocation4 + %s291]]
        %s293 = sadd.s32 %s203, 25
        %s294 = sld [smem:[#allocation4 + %s293]]
        %v295 = vstv %s292
        %vm296 = vcmp.ge.s32.totalorder %v237, %v295
        %vm297 = vcmp.ge.s32.totalorder %v238, %v295
        %v298 = vstv %s294
        %vm299 = vcmp.lt.s32.totalorder %v237, %v298
        %vm300 = vcmp.lt.s32.totalorder %v238, %v298
        %vm301 = vmand %vm296, %vm299
        %vm302 = vmand %vm297, %vm300
        %p303 = scmp.le.s32.totalorder %s294, %s292
        %s304 = sadd.s32 %s203, 19
        %s305 = sld [smem:[#allocation4 + %s304]]
        %s306 = sadd.s32 %s203, 26
        %s307 = sld [smem:[#allocation4 + %s306]]
        %v308 = vstv %s305
        %vm309 = vcmp.ge.s32.totalorder %v237, %v308
        %vm310 = vcmp.ge.s32.totalorder %v238, %v308
        %v311 = vstv %s307
        %vm312 = vcmp.lt.s32.totalorder %v237, %v311
        %vm313 = vcmp.lt.s32.totalorder %v238, %v311
        %vm314 = vmand %vm309, %vm312
        %vm315 = vmand %vm310, %vm313
        %p316 = scmp.le.s32.totalorder %s307, %s305
        %s317 = sadd.s32 %s203, 20
        %s318 = sld [smem:[#allocation4 + %s317]]
        %s319 = sadd.s32 %s203, 27
        %s320 = sld [smem:[#allocation4 + %s319]]
        %v321 = vstv %s318
        %vm322 = vcmp.ge.s32.totalorder %v237, %v321
        %vm323 = vcmp.ge.s32.totalorder %v238, %v321
        %v324 = vstv %s320
        %vm325 = vcmp.lt.s32.totalorder %v237, %v324
        %vm326 = vcmp.lt.s32.totalorder %v238, %v324
        %vm327 = vmand %vm322, %vm325
        %vm328 = vmand %vm323, %vm326
        %p329 = scmp.le.s32.totalorder %s320, %s318
        %s330 = sld [smem:[#allocation4 + %s203]]
        %s331 = sadd.s32 %s203, 7
        %s332 = sld [smem:[#allocation4 + %s331]]
        %v333 = vstv %s330
        %vm334 = vcmp.le.s32.totalorder %v333, 0
        %vm335 = vcmp.le.s32.totalorder %v333, 1
        %vm336 = vcmp.le.s32.totalorder %v333, 2
        %vm337 = vcmp.le.s32.totalorder %v333, 3
        %vm338 = vcmp.le.s32.totalorder %v333, 4
        %vm339 = vcmp.le.s32.totalorder %v333, 5
        %vm340 = vcmp.le.s32.totalorder %v333, 6
        %vm341 = vcmp.le.s32.totalorder %v333, 7
        %vm342 = vcmp.le.s32.totalorder %v333, 8
        %vm343 = vcmp.le.s32.totalorder %v333, 9
        %vm344 = vcmp.le.s32.totalorder %v333, 10
        %vm345 = vcmp.le.s32.totalorder %v333, 11
        %vm346 = vcmp.le.s32.totalorder %v333, 12
        %vm347 = vcmp.le.s32.totalorder %v333, 13
        %vm348 = vcmp.le.s32.totalorder %v333, 14
        %vm349 = vcmp.le.s32.totalorder %v333, 15
        %v350 = vstv %s332
        %vm351 = vcmp.gt.s32.totalorder %v350, 0
        %vm352 = vcmp.gt.s32.totalorder %v350, 1
        %vm353 = vcmp.gt.s32.totalorder %v350, 2
        %vm354 = vcmp.gt.s32.totalorder %v350, 3
        %vm355 = vcmp.gt.s32.totalorder %v350, 4
        %vm356 = vcmp.gt.s32.totalorder %v350, 5
        %vm357 = vcmp.gt.s32.totalorder %v350, 6
        %vm358 = vcmp.gt.s32.totalorder %v350, 7
        %vm359 = vcmp.gt.s32.totalorder %v350, 8
        %vm360 = vcmp.gt.s32.totalorder %v350, 9
        %vm361 = vcmp.gt.s32.totalorder %v350, 10
        %vm362 = vcmp.gt.s32.totalorder %v350, 11
        %vm363 = vcmp.gt.s32.totalorder %v350, 12
        %vm364 = vcmp.gt.s32.totalorder %v350, 13
        %vm365 = vcmp.gt.s32.totalorder %v350, 14
        %vm366 = vcmp.gt.s32.totalorder %v350, 15
        %vm367 = vmand %vm334, %vm351
        %vm368 = vmand %vm335, %vm352
        %vm369 = vmand %vm336, %vm353
        %vm370 = vmand %vm337, %vm354
        %vm371 = vmand %vm338, %vm355
        %vm372 = vmand %vm339, %vm356
        %vm373 = vmand %vm340, %vm357
        %vm374 = vmand %vm341, %vm358
        %vm375 = vmand %vm342, %vm359
        %vm376 = vmand %vm343, %vm360
        %vm377 = vmand %vm344, %vm361
        %vm378 = vmand %vm345, %vm362
        %vm379 = vmand %vm346, %vm363
        %vm380 = vmand %vm347, %vm364
        %vm381 = vmand %vm348, %vm365
        %vm382 = vmand %vm349, %vm366
        %v383 = vsel %vm367, 1, 0
        %v384 = vsel %vm368, 1, 0
        %v385 = vsel %vm369, 1, 0
        %v386 = vsel %vm370, 1, 0
        %v387 = vsel %vm371, 1, 0
        %v388 = vsel %vm372, 1, 0
        %v389 = vsel %vm373, 1, 0
        %v390 = vsel %vm374, 1, 0
        %v391 = vsel %vm375, 1, 0
        %v392 = vsel %vm376, 1, 0
        %v393 = vsel %vm377, 1, 0
        %v394 = vsel %vm378, 1, 0
        %v395 = vsel %vm379, 1, 0
        %v396 = vsel %vm380, 1, 0
        %v397 = vsel %vm381, 1, 0
        %v398 = vsel %vm382, 1, 0
        %vm399 = vcmp.eq.s32.totalorder %v383, 1
        %vm400 = vcmp.eq.s32.totalorder %v384, 1
        %vm401 = vcmp.eq.s32.totalorder %v385, 1
        %vm402 = vcmp.eq.s32.totalorder %v386, 1
        %vm403 = vcmp.eq.s32.totalorder %v387, 1
        %vm404 = vcmp.eq.s32.totalorder %v388, 1
        %vm405 = vcmp.eq.s32.totalorder %v389, 1
        %vm406 = vcmp.eq.s32.totalorder %v390, 1
        %vm407 = vcmp.eq.s32.totalorder %v391, 1
        %vm408 = vcmp.eq.s32.totalorder %v392, 1
        %vm409 = vcmp.eq.s32.totalorder %v393, 1
        %vm410 = vcmp.eq.s32.totalorder %v394, 1
        %vm411 = vcmp.eq.s32.totalorder %v395, 1
        %vm412 = vcmp.eq.s32.totalorder %v396, 1
        %vm413 = vcmp.eq.s32.totalorder %v397, 1
        %vm414 = vcmp.eq.s32.totalorder %v398, 1
        %v415 = vsel %vm399, %v204, -inf
        %v416 = vsel %vm399, %v205, -inf
        %v417 = vsel %vm400, %v206, -inf
        %v418 = vsel %vm400, %v207, -inf
        %v419 = vsel %vm401, %v208, -inf
        %v420 = vsel %vm401, %v209, -inf
        %v421 = vsel %vm402, %v210, -inf
        %v422 = vsel %vm402, %v211, -inf
        %v423 = vsel %vm403, %v212, -inf
        %v424 = vsel %vm403, %v213, -inf
        %v425 = vsel %vm404, %v214, -inf
        %v426 = vsel %vm404, %v215, -inf
        %v427 = vsel %vm405, %v216, -inf
        %v428 = vsel %vm405, %v217, -inf
        %v429 = vsel %vm406, %v218, -inf
        %v430 = vsel %vm406, %v219, -inf
        %v431 = vsel %vm407, %v220, -inf
        %v432 = vsel %vm407, %v221, -inf
        %v433 = vsel %vm408, %v222, -inf
        %v434 = vsel %vm408, %v223, -inf
        %v435 = vsel %vm409, %v224, -inf
        %v436 = vsel %vm409, %v225, -inf
        %v437 = vsel %vm410, %v226, -inf
        %v438 = vsel %vm410, %v227, -inf
        %v439 = vsel %vm411, %v228, -inf
        %v440 = vsel %vm411, %v229, -inf
        %v441 = vsel %vm412, %v230, -inf
        %v442 = vsel %vm412, %v231, -inf
        %v443 = vsel %vm413, %v232, -inf
        %v444 = vsel %vm413, %v233, -inf
        %v445 = vsel %vm414, %v234, -inf
        %v446 = vsel %vm414, %v235, -inf
        %vm447 = vcmask 31744
        %v448 = vsel %vm447, %v415, -inf
        %v449 = vsel %vm447, %v417, -inf
        %v450 = vsel %vm447, %v419, -inf
        %v451 = vmax.f32 %v448, %v450
        %v452 = vsel %vm447, %v421, -inf
        %v453 = vmax.f32 %v449, %v452
        %v454 = vsel %vm447, %v423, -inf
        %v455 = vmax.f32 %v451, %v454
        %v456 = vsel %vm447, %v425, -inf
        %v457 = vmax.f32 %v453, %v456
        %v458 = vsel %vm447, %v427, -inf
        %v459 = vmax.f32 %v455, %v458
        %v460 = vsel %vm447, %v429, -inf
        %v461 = vmax.f32 %v457, %v460
        %v462 = vsel %vm447, %v431, -inf
        %v463 = vmax.f32 %v459, %v462
        %v464 = vsel %vm447, %v433, -inf
        %v465 = vmax.f32 %v461, %v464
        %v466 = vsel %vm447, %v435, -inf
        %v467 = vmax.f32 %v463, %v466
        %v468 = vsel %vm447, %v437, -inf
        %v469 = vmax.f32 %v465, %v468
        %v470 = vsel %vm447, %v439, -inf
        %v471 = vmax.f32 %v467, %v470
        %v472 = vsel %vm447, %v441, -inf
        %v473 = vmax.f32 %v469, %v472
        %v474 = vsel %vm447, %v443, -inf
        %v475 = vmax.f32 %v471, %v474
        %v476 = vsel %vm447, %v445, -inf
        %v477 = vmax.f32 %v473, %v476
        %v478 = vmax.f32 %v475, %v477
        %v479 = vsel %vm447, %v416, -inf
        %v480 = vsel %vm447, %v418, -inf
        %v481 = vsel %vm447, %v420, -inf
        %v482 = vmax.f32 %v479, %v481
        %v483 = vsel %vm447, %v422, -inf
        %v484 = vmax.f32 %v480, %v483
        %v485 = vsel %vm447, %v424, -inf
        %v486 = vmax.f32 %v482, %v485
        %v487 = vsel %vm447, %v426, -inf
        %v488 = vmax.f32 %v484, %v487
        %v489 = vsel %vm447, %v428, -inf
        %v490 = vmax.f32 %v486, %v489
        %v491 = vsel %vm447, %v430, -inf
        %v492 = vmax.f32 %v488, %v491
        %v493 = vsel %vm447, %v432, -inf
        %v494 = vmax.f32 %v490, %v493
        %v495 = vsel %vm447, %v434, -inf
        %v496 = vmax.f32 %v492, %v495
        %v497 = vsel %vm447, %v436, -inf
        %v498 = vmax.f32 %v494, %v497
        %v499 = vsel %vm447, %v438, -inf
        %v500 = vmax.f32 %v496, %v499
        %v501 = vsel %vm447, %v440, -inf
        %v502 = vmax.f32 %v498, %v501
        %v503 = vsel %vm447, %v442, -inf
        %v504 = vmax.f32 %v500, %v503
        %v505 = vsel %vm447, %v444, -inf
        %v506 = vmax.f32 %v502, %v505
        %v507 = vsel %vm447, %v446, -inf
        %v508 = vmax.f32 %v504, %v507
        %v509 = vmax.f32 %v506, %v508
        %p510 = scmp.le.s32.totalorder %s332, %s330
        %v511 = vsel %vm249, 1, 0
        %v512 = vsel %vm250, 1, 0
        %vm513 = vcmp.eq.s32.totalorder %v511, 1
        %vm514 = vcmp.eq.s32.totalorder %v512, 1
        %v515 = vsel %vm513, %v478, -inf
        %v516 = vsel %vm514, %v509, -inf
        %v517 = vsel %vm447, %v515, -inf
        %v518 = vsel %vm447, %v516, -inf
        %v519 = vmax.f32 %v517, %v518
        %v520 = vrot.slane %v519, 4
        %v521 = vmax.f32 %v519, %v520
        %v522 = vrot.slane %v521, 2
        %v523 = vmax.f32 %v521, %v522
        %v524 = vrot.slane %v523, 1
        %v525 = vmax.f32 %v523, %v524
        %p526 = por %p510, %p251
        %s527 = scalar_select %p526, 1, 0
        %v528 = vstv %s527
        %vm529 = vcmp.eq.s32.totalorder %v528, 1
        %v530 = vsel %vm529, 0.0, %v525
        %v531 = vsel %vm262, 1, 0
        %v532 = vsel %vm263, 1, 0
        %vm533 = vcmp.eq.s32.totalorder %v531, 1
        %vm534 = vcmp.eq.s32.totalorder %v532, 1
        %v535 = vsel %vm533, %v478, -inf
        %v536 = vsel %vm534, %v509, -inf
        %v537 = vsel %vm447, %v535, -inf
        %v538 = vsel %vm447, %v536, -inf
        %v539 = vmax.f32 %v537, %v538
        %v540 = vrot.slane %v539, 4
        %v541 = vmax.f32 %v539, %v540
        %v542 = vrot.slane %v541, 2
        %v543 = vmax.f32 %v541, %v542
        %v544 = vrot.slane %v543, 1
        %v545 = vmax.f32 %v543, %v544
        %p546 = por %p510, %p264
        %s547 = scalar_select %p546, 1, 0
        %v548 = vstv %s547
        %vm549 = vcmp.eq.s32.totalorder %v548, 1
        %v550 = vsel %vm549, 0.0, %v545
        %v551 = vsel %vm275, 1, 0
        %v552 = vsel %vm276, 1, 0
        %vm553 = vcmp.eq.s32.totalorder %v551, 1
        %vm554 = vcmp.eq.s32.totalorder %v552, 1
        %v555 = vsel %vm553, %v478, -inf
        %v556 = vsel %vm554, %v509, -inf
        %v557 = vsel %vm447, %v555, -inf
        %v558 = vsel %vm447, %v556, -inf
        %v559 = vmax.f32 %v557, %v558
        %v560 = vrot.slane %v559, 4
        %v561 = vmax.f32 %v559, %v560
        %v562 = vrot.slane %v561, 2
        %v563 = vmax.f32 %v561, %v562
        %v564 = vrot.slane %v563, 1
        %v565 = vmax.f32 %v563, %v564
        %p566 = por %p510, %p277
        %s567 = scalar_select %p566, 1, 0
        %v568 = vstv %s567
        %vm569 = vcmp.eq.s32.totalorder %v568, 1
        %v570 = vsel %vm569, 0.0, %v565
        %v571 = vsel %vm288, 1, 0
        %v572 = vsel %vm289, 1, 0
        %vm573 = vcmp.eq.s32.totalorder %v571, 1
        %vm574 = vcmp.eq.s32.totalorder %v572, 1
        %v575 = vsel %vm573, %v478, -inf
        %v576 = vsel %vm574, %v509, -inf
        %v577 = vsel %vm447, %v575, -inf
        %v578 = vsel %vm447, %v576, -inf
        %v579 = vmax.f32 %v577, %v578
        %v580 = vrot.slane %v579, 4
        %v581 = vmax.f32 %v579, %v580
        %v582 = vrot.slane %v581, 2
        %v583 = vmax.f32 %v581, %v582
        %v584 = vrot.slane %v583, 1
        %v585 = vmax.f32 %v583, %v584
        %p586 = por %p510, %p290
        %s587 = scalar_select %p586, 1, 0
        %v588 = vstv %s587
        %vm589 = vcmp.eq.s32.totalorder %v588, 1
        %v590 = vsel %vm589, 0.0, %v585
        %v591 = vsel %vm301, 1, 0
        %v592 = vsel %vm302, 1, 0
        %vm593 = vcmp.eq.s32.totalorder %v591, 1
        %vm594 = vcmp.eq.s32.totalorder %v592, 1
        %v595 = vsel %vm593, %v478, -inf
        %v596 = vsel %vm594, %v509, -inf
        %v597 = vsel %vm447, %v595, -inf
        %v598 = vsel %vm447, %v596, -inf
        %v599 = vmax.f32 %v597, %v598
        %v600 = vrot.slane %v599, 4
        %v601 = vmax.f32 %v599, %v600
        %v602 = vrot.slane %v601, 2
        %v603 = vmax.f32 %v601, %v602
        %v604 = vrot.slane %v603, 1
        %v605 = vmax.f32 %v603, %v604
        %p606 = por %p510, %p303
        %s607 = scalar_select %p606, 1, 0
        %v608 = vstv %s607
        %vm609 = vcmp.eq.s32.totalorder %v608, 1
        %v610 = vsel %vm609, 0.0, %v605
        %v611 = vsel %vm314, 1, 0
        %v612 = vsel %vm315, 1, 0
        %vm613 = vcmp.eq.s32.totalorder %v611, 1
        %vm614 = vcmp.eq.s32.totalorder %v612, 1
        %v615 = vsel %vm613, %v478, -inf
        %v616 = vsel %vm614, %v509, -inf
        %v617 = vsel %vm447, %v615, -inf
        %v618 = vsel %vm447, %v616, -inf
        %v619 = vmax.f32 %v617, %v618
        %v620 = vrot.slane %v619, 4
        %v621 = vmax.f32 %v619, %v620
        %v622 = vrot.slane %v621, 2
        %v623 = vmax.f32 %v621, %v622
        %v624 = vrot.slane %v623, 1
        %v625 = vmax.f32 %v623, %v624
        %p626 = por %p510, %p316
        %s627 = scalar_select %p626, 1, 0
        %v628 = vstv %s627
        %vm629 = vcmp.eq.s32.totalorder %v628, 1
        %v630 = vsel %vm629, 0.0, %v625
        %v631 = vsel %vm327, 1, 0
        %v632 = vsel %vm328, 1, 0
        %vm633 = vcmp.eq.s32.totalorder %v631, 1
        %vm634 = vcmp.eq.s32.totalorder %v632, 1
        %v635 = vsel %vm633, %v478, -inf
        %v636 = vsel %vm634, %v509, -inf
        %v637 = vsel %vm447, %v635, -inf
        %v638 = vsel %vm447, %v636, -inf
        %v639 = vmax.f32 %v637, %v638
        %v640 = vrot.slane %v639, 4
        %v641 = vmax.f32 %v639, %v640
        %v642 = vrot.slane %v641, 2
        %v643 = vmax.f32 %v641, %v642
        %v644 = vrot.slane %v643, 1
        %v645 = vmax.f32 %v643, %v644
        %p646 = por %p510, %p329
        %s647 = scalar_select %p646, 1, 0
        %v648 = vstv %s647
        %vm649 = vcmp.eq.s32.totalorder %v648, 1
        %v650 = vsel %vm649, 0.0, %v645
        %vm651 = vcmask 1040384
        %v652 = vsel %vm651, %v530, %v550
        %vm653 = vcmask 1041408
        %v654 = vsel %vm653, %v652, %v570
        %vm655 = vcmask 1042432
        %v656 = vsel %vm655, %v654, %v590
        %vm657 = vcmask 1043456
        %v658 = vsel %vm657, %v656, %v610
        %vm659 = vcmask 1044480
        %v660 = vsel %vm659, %v658, %v630
        %vm661 = vcmask 1045504
        %v662 = vsel %vm661, %v660, %v650
        %vm663 = vcmask 30720
        %664 = vst.msk [vmem:[%s202] sm:$0x7f] %vm663, %v662
        %s665 = sadd.s32 %s203, 1
        %s666 = sld [smem:[#allocation4 + %s665]]
        %s667 = sadd.s32 %s203, 8
        %s668 = sld [smem:[#allocation4 + %s667]]
        %v669 = vstv %s666
        %vm670 = vcmp.le.s32.totalorder %v669, 0
        %vm671 = vcmp.le.s32.totalorder %v669, 1
        %vm672 = vcmp.le.s32.totalorder %v669, 2
        %vm673 = vcmp.le.s32.totalorder %v669, 3
        %vm674 = vcmp.le.s32.totalorder %v669, 4
        %vm675 = vcmp.le.s32.totalorder %v669, 5
        %vm676 = vcmp.le.s32.totalorder %v669, 6
        %vm677 = vcmp.le.s32.totalorder %v669, 7
        %vm678 = vcmp.le.s32.totalorder %v669, 8
        %vm679 = vcmp.le.s32.totalorder %v669, 9
        %vm680 = vcmp.le.s32.totalorder %v669, 10
        %vm681 = vcmp.le.s32.totalorder %v669, 11
        %vm682 = vcmp.le.s32.totalorder %v669, 12
        %vm683 = vcmp.le.s32.totalorder %v669, 13
        %vm684 = vcmp.le.s32.totalorder %v669, 14
        %vm685 = vcmp.le.s32.totalorder %v669, 15
        %v686 = vstv %s668
        %vm687 = vcmp.gt.s32.totalorder %v686, 0
        %vm688 = vcmp.gt.s32.totalorder %v686, 1
        %vm689 = vcmp.gt.s32.totalorder %v686, 2
        %vm690 = vcmp.gt.s32.totalorder %v686, 3
        %vm691 = vcmp.gt.s32.totalorder %v686, 4
        %vm692 = vcmp.gt.s32.totalorder %v686, 5
        %vm693 = vcmp.gt.s32.totalorder %v686, 6
        %vm694 = vcmp.gt.s32.totalorder %v686, 7
        %vm695 = vcmp.gt.s32.totalorder %v686, 8
        %vm696 = vcmp.gt.s32.totalorder %v686, 9
        %vm697 = vcmp.gt.s32.totalorder %v686, 10
        %vm698 = vcmp.gt.s32.totalorder %v686, 11
        %vm699 = vcmp.gt.s32.totalorder %v686, 12
        %vm700 = vcmp.gt.s32.totalorder %v686, 13
        %vm701 = vcmp.gt.s32.totalorder %v686, 14
        %vm702 = vcmp.gt.s32.totalorder %v686, 15
        %vm703 = vmand %vm670, %vm687
        %vm704 = vmand %vm671, %vm688
        %vm705 = vmand %vm672, %vm689
        %vm706 = vmand %vm673, %vm690
        %vm707 = vmand %vm674, %vm691
        %vm708 = vmand %vm675, %vm692
        %vm709 = vmand %vm676, %vm693
        %vm710 = vmand %vm677, %vm694
        %vm711 = vmand %vm678, %vm695
        %vm712 = vmand %vm679, %vm696
        %vm713 = vmand %vm680, %vm697
        %vm714 = vmand %vm681, %vm698
        %vm715 = vmand %vm682, %vm699
        %vm716 = vmand %vm683, %vm700
        %vm717 = vmand %vm684, %vm701
        %vm718 = vmand %vm685, %vm702
        %v719 = vsel %vm703, 1, 0
        %v720 = vsel %vm704, 1, 0
        %v721 = vsel %vm705, 1, 0
        %v722 = vsel %vm706, 1, 0
        %v723 = vsel %vm707, 1, 0
        %v724 = vsel %vm708, 1, 0
        %v725 = vsel %vm709, 1, 0
        %v726 = vsel %vm710, 1, 0
        %v727 = vsel %vm711, 1, 0
        %v728 = vsel %vm712, 1, 0
        %v729 = vsel %vm713, 1, 0
        %v730 = vsel %vm714, 1, 0
        %v731 = vsel %vm715, 1, 0
        %v732 = vsel %vm716, 1, 0
        %v733 = vsel %vm717, 1, 0
        %v734 = vsel %vm718, 1, 0
        %vm735 = vcmp.eq.s32.totalorder %v719, 1
        %vm736 = vcmp.eq.s32.totalorder %v720, 1
        %vm737 = vcmp.eq.s32.totalorder %v721, 1
        %vm738 = vcmp.eq.s32.totalorder %v722, 1
        %vm739 = vcmp.eq.s32.totalorder %v723, 1
        %vm740 = vcmp.eq.s32.totalorder %v724, 1
        %vm741 = vcmp.eq.s32.totalorder %v725, 1
        %vm742 = vcmp.eq.s32.totalorder %v726, 1
        %vm743 = vcmp.eq.s32.totalorder %v727, 1
        %vm744 = vcmp.eq.s32.totalorder %v728, 1
        %vm745 = vcmp.eq.s32.totalorder %v729, 1
        %vm746 = vcmp.eq.s32.totalorder %v730, 1
        %vm747 = vcmp.eq.s32.totalorder %v731, 1
        %vm748 = vcmp.eq.s32.totalorder %v732, 1
        %vm749 = vcmp.eq.s32.totalorder %v733, 1
        %vm750 = vcmp.eq.s32.totalorder %v734, 1
        %v751 = vsel %vm735, %v204, -inf
        %v752 = vsel %vm735, %v205, -inf
        %v753 = vsel %vm736, %v206, -inf
        %v754 = vsel %vm736, %v207, -inf
        %v755 = vsel %vm737, %v208, -inf
        %v756 = vsel %vm737, %v209, -inf
        %v757 = vsel %vm738, %v210, -inf
        %v758 = vsel %vm738, %v211, -inf
        %v759 = vsel %vm739, %v212, -inf
        %v760 = vsel %vm739, %v213, -inf
        %v761 = vsel %vm740, %v214, -inf
        %v762 = vsel %vm740, %v215, -inf
        %v763 = vsel %vm741, %v216, -inf
        %v764 = vsel %vm741, %v217, -inf
        %v765 = vsel %vm742, %v218, -inf
        %v766 = vsel %vm742, %v219, -inf
        %v767 = vsel %vm743, %v220, -inf
        %v768 = vsel %vm743, %v221, -inf
        %v769 = vsel %vm744, %v222, -inf
        %v770 = vsel %vm744, %v223, -inf
        %v771 = vsel %vm745, %v224, -inf
        %v772 = vsel %vm745, %v225, -inf
        %v773 = vsel %vm746, %v226, -inf
        %v774 = vsel %vm746, %v227, -inf
        %v775 = vsel %vm747, %v228, -inf
        %v776 = vsel %vm747, %v229, -inf
        %v777 = vsel %vm748, %v230, -inf
        %v778 = vsel %vm748, %v231, -inf
        %v779 = vsel %vm749, %v232, -inf
        %v780 = vsel %vm749, %v233, -inf
        %v781 = vsel %vm750, %v234, -inf
        %v782 = vsel %vm750, %v235, -inf
        %v783 = vsel %vm447, %v751, -inf
        %v784 = vsel %vm447, %v753, -inf
        %v785 = vsel %vm447, %v755, -inf
        %v786 = vmax.f32 %v783, %v785
        %v787 = vsel %vm447, %v757, -inf
        %v788 = vmax.f32 %v784, %v787
        %v789 = vsel %vm447, %v759, -inf
        %v790 = vmax.f32 %v786, %v789
        %v791 = vsel %vm447, %v761, -inf
        %v792 = vmax.f32 %v788, %v791
        %v793 = vsel %vm447, %v763, -inf
        %v794 = vmax.f32 %v790, %v793
        %v795 = vsel %vm447, %v765, -inf
        %v796 = vmax.f32 %v792, %v795
        %v797 = vsel %vm447, %v767, -inf
        %v798 = vmax.f32 %v794, %v797
        %v799 = vsel %vm447, %v769, -inf
        %v800 = vmax.f32 %v796, %v799
        %v801 = vsel %vm447, %v771, -inf
        %v802 = vmax.f32 %v798, %v801
        %v803 = vsel %vm447, %v773, -inf
        %v804 = vmax.f32 %v800, %v803
        %v805 = vsel %vm447, %v775, -inf
        %v806 = vmax.f32 %v802, %v805
        %v807 = vsel %vm447, %v777, -inf
        %v808 = vmax.f32 %v804, %v807
        %v809 = vsel %vm447, %v779, -inf
        %v810 = vmax.f32 %v806, %v809
        %v811 = vsel %vm447, %v781, -inf
        %v812 = vmax.f32 %v808, %v811
        %v813 = vmax.f32 %v810, %v812
        %v814 = vsel %vm447, %v752, -inf
        %v815 = vsel %vm447, %v754, -inf
        %v816 = vsel %vm447, %v756, -inf
        %v817 = vmax.f32 %v814, %v816
        %v818 = vsel %vm447, %v758, -inf
        %v819 = vmax.f32 %v815, %v818
        %v820 = vsel %vm447, %v760, -inf
        %v821 = vmax.f32 %v817, %v820
        %v822 = vsel %vm447, %v762, -inf
        %v823 = vmax.f32 %v819, %v822
        %v824 = vsel %vm447, %v764, -inf
        %v825 = vmax.f32 %v821, %v824
        %v826 = vsel %vm447, %v766, -inf
        %v827 = vmax.f32 %v823, %v826
        %v828 = vsel %vm447, %v768, -inf
        %v829 = vmax.f32 %v825, %v828
        %v830 = vsel %vm447, %v770, -inf
        %v831 = vmax.f32 %v827, %v830
        %v832 = vsel %vm447, %v772, -inf
        %v833 = vmax.f32 %v829, %v832
        %v834 = vsel %vm447, %v774, -inf
        %v835 = vmax.f32 %v831, %v834
        %v836 = vsel %vm447, %v776, -inf
        %v837 = vmax.f32 %v833, %v836
        %v838 = vsel %vm447, %v778, -inf
        %v839 = vmax.f32 %v835, %v838
        %v840 = vsel %vm447, %v780, -inf
        %v841 = vmax.f32 %v837, %v840
        %v842 = vsel %vm447, %v782, -inf
        %v843 = vmax.f32 %v839, %v842
        %v844 = vmax.f32 %v841, %v843
        %p845 = scmp.le.s32.totalorder %s668, %s666
        %v846 = vsel %vm513, %v813, -inf
        %v847 = vsel %vm514, %v844, -inf
        %v848 = vsel %vm447, %v846, -inf
        %v849 = vsel %vm447, %v847, -inf
        %v850 = vmax.f32 %v848, %v849
        %v851 = vrot.slane %v850, 4
        %v852 = vmax.f32 %v850, %v851
        %v853 = vrot.slane %v852, 2
        %v854 = vmax.f32 %v852, %v853
        %v855 = vrot.slane %v854, 1
        %v856 = vmax.f32 %v854, %v855
        %p857 = por %p845, %p251
        %s858 = scalar_select %p857, 1, 0
        %v859 = vstv %s858
        %vm860 = vcmp.eq.s32.totalorder %v859, 1
        %v861 = vsel %vm860, 0.0, %v856
        %v862 = vsel %vm533, %v813, -inf
        %v863 = vsel %vm534, %v844, -inf
        %v864 = vsel %vm447, %v862, -inf
        %v865 = vsel %vm447, %v863, -inf
        %v866 = vmax.f32 %v864, %v865
        %v867 = vrot.slane %v866, 4
        %v868 = vmax.f32 %v866, %v867
        %v869 = vrot.slane %v868, 2
        %v870 = vmax.f32 %v868, %v869
        %v871 = vrot.slane %v870, 1
        %v872 = vmax.f32 %v870, %v871
        %p873 = por %p845, %p264
        %s874 = scalar_select %p873, 1, 0
        %v875 = vstv %s874
        %vm876 = vcmp.eq.s32.totalorder %v875, 1
        %v877 = vsel %vm876, 0.0, %v872
        %v878 = vsel %vm553, %v813, -inf
        %v879 = vsel %vm554, %v844, -inf
        %v880 = vsel %vm447, %v878, -inf
        %v881 = vsel %vm447, %v879, -inf
        %v882 = vmax.f32 %v880, %v881
        %v883 = vrot.slane %v882, 4
        %v884 = vmax.f32 %v882, %v883
        %v885 = vrot.slane %v884, 2
        %v886 = vmax.f32 %v884, %v885
        %v887 = vrot.slane %v886, 1
        %v888 = vmax.f32 %v886, %v887
        %p889 = por %p845, %p277
        %s890 = scalar_select %p889, 1, 0
        %v891 = vstv %s890
        %vm892 = vcmp.eq.s32.totalorder %v891, 1
        %v893 = vsel %vm892, 0.0, %v888
        %v894 = vsel %vm573, %v813, -inf
        %v895 = vsel %vm574, %v844, -inf
        %v896 = vsel %vm447, %v894, -inf
        %v897 = vsel %vm447, %v895, -inf
        %v898 = vmax.f32 %v896, %v897
        %v899 = vrot.slane %v898, 4
        %v900 = vmax.f32 %v898, %v899
        %v901 = vrot.slane %v900, 2
        %v902 = vmax.f32 %v900, %v901
        %v903 = vrot.slane %v902, 1
        %v904 = vmax.f32 %v902, %v903
        %p905 = por %p845, %p290
        %s906 = scalar_select %p905, 1, 0
        %v907 = vstv %s906
        %vm908 = vcmp.eq.s32.totalorder %v907, 1
        %v909 = vsel %vm908, 0.0, %v904
        %v910 = vsel %vm593, %v813, -inf
        %v911 = vsel %vm594, %v844, -inf
        %v912 = vsel %vm447, %v910, -inf
        %v913 = vsel %vm447, %v911, -inf
        %v914 = vmax.f32 %v912, %v913
        %v915 = vrot.slane %v914, 4
        %v916 = vmax.f32 %v914, %v915
        %v917 = vrot.slane %v916, 2
        %v918 = vmax.f32 %v916, %v917
        %v919 = vrot.slane %v918, 1
        %v920 = vmax.f32 %v918, %v919
        %p921 = por %p845, %p303
        %s922 = scalar_select %p921, 1, 0
        %v923 = vstv %s922
        %vm924 = vcmp.eq.s32.totalorder %v923, 1
        %v925 = vsel %vm924, 0.0, %v920
        %v926 = vsel %vm613, %v813, -inf
        %v927 = vsel %vm614, %v844, -inf
        %v928 = vsel %vm447, %v926, -inf
        %v929 = vsel %vm447, %v927, -inf
        %v930 = vmax.f32 %v928, %v929
        %v931 = vrot.slane %v930, 4
        %v932 = vmax.f32 %v930, %v931
        %v933 = vrot.slane %v932, 2
        %v934 = vmax.f32 %v932, %v933
        %v935 = vrot.slane %v934, 1
        %v936 = vmax.f32 %v934, %v935
        %p937 = por %p845, %p316
        %s938 = scalar_select %p937, 1, 0
        %v939 = vstv %s938
        %vm940 = vcmp.eq.s32.totalorder %v939, 1
        %v941 = vsel %vm940, 0.0, %v936
        %v942 = vsel %vm633, %v813, -inf
        %v943 = vsel %vm634, %v844, -inf
        %v944 = vsel %vm447, %v942, -inf
        %v945 = vsel %vm447, %v943, -inf
        %v946 = vmax.f32 %v944, %v945
        %v947 = vrot.slane %v946, 4
        %v948 = vmax.f32 %v946, %v947
        %v949 = vrot.slane %v948, 2
        %v950 = vmax.f32 %v948, %v949
        %v951 = vrot.slane %v950, 1
        %v952 = vmax.f32 %v950, %v951
        %p953 = por %p845, %p329
        %s954 = scalar_select %p953, 1, 0
        %v955 = vstv %s954
        %vm956 = vcmp.eq.s32.totalorder %v955, 1
        %v957 = vsel %vm956, 0.0, %v952
        %v958 = vsel %vm651, %v861, %v877
        %v959 = vsel %vm653, %v958, %v893
        %v960 = vsel %vm655, %v959, %v909
        %v961 = vsel %vm657, %v960, %v925
        %v962 = vsel %vm659, %v961, %v941
        %v963 = vsel %vm661, %v962, %v957
        %s964 = scalar_lea.vmem %s202, 8
        %965 = vst.msk [vmem:[%s964] sm:$0x7f] %vm663, %v963
        %s966 = sadd.s32 %s203, 2
        %s967 = sld [smem:[#allocation4 + %s966]]
        %s968 = sadd.s32 %s203, 9
        %s969 = sld [smem:[#allocation4 + %s968]]
        %v970 = vstv %s967
        %vm971 = vcmp.le.s32.totalorder %v970, 0
        %vm972 = vcmp.le.s32.totalorder %v970, 1
        %vm973 = vcmp.le.s32.totalorder %v970, 2
        %vm974 = vcmp.le.s32.totalorder %v970, 3
        %vm975 = vcmp.le.s32.totalorder %v970, 4
        %vm976 = vcmp.le.s32.totalorder %v970, 5
        %vm977 = vcmp.le.s32.totalorder %v970, 6
        %vm978 = vcmp.le.s32.totalorder %v970, 7
        %vm979 = vcmp.le.s32.totalorder %v970, 8
        %vm980 = vcmp.le.s32.totalorder %v970, 9
        %vm981 = vcmp.le.s32.totalorder %v970, 10
        %vm982 = vcmp.le.s32.totalorder %v970, 11
        %vm983 = vcmp.le.s32.totalorder %v970, 12
        %vm984 = vcmp.le.s32.totalorder %v970, 13
        %vm985 = vcmp.le.s32.totalorder %v970, 14
        %vm986 = vcmp.le.s32.totalorder %v970, 15
        %v987 = vstv %s969
        %vm988 = vcmp.gt.s32.totalorder %v987, 0
        %vm989 = vcmp.gt.s32.totalorder %v987, 1
        %vm990 = vcmp.gt.s32.totalorder %v987, 2
        %vm991 = vcmp.gt.s32.totalorder %v987, 3
        %vm992 = vcmp.gt.s32.totalorder %v987, 4
        %vm993 = vcmp.gt.s32.totalorder %v987, 5
        %vm994 = vcmp.gt.s32.totalorder %v987, 6
        %vm995 = vcmp.gt.s32.totalorder %v987, 7
        %vm996 = vcmp.gt.s32.totalorder %v987, 8
        %vm997 = vcmp.gt.s32.totalorder %v987, 9
        %vm998 = vcmp.gt.s32.totalorder %v987, 10
        %vm999 = vcmp.gt.s32.totalorder %v987, 11
        %vm1000 = vcmp.gt.s32.totalorder %v987, 12
        %vm1001 = vcmp.gt.s32.totalorder %v987, 13
        %vm1002 = vcmp.gt.s32.totalorder %v987, 14
        %vm1003 = vcmp.gt.s32.totalorder %v987, 15
        %vm1004 = vmand %vm971, %vm988
        %vm1005 = vmand %vm972, %vm989
        %vm1006 = vmand %vm973, %vm990
        %vm1007 = vmand %vm974, %vm991
        %vm1008 = vmand %vm975, %vm992
        %vm1009 = vmand %vm976, %vm993
        %vm1010 = vmand %vm977, %vm994
        %vm1011 = vmand %vm978, %vm995
        %vm1012 = vmand %vm979, %vm996
        %vm1013 = vmand %vm980, %vm997
        %vm1014 = vmand %vm981, %vm998
        %vm1015 = vmand %vm982, %vm999
        %vm1016 = vmand %vm983, %vm1000
        %vm1017 = vmand %vm984, %vm1001
        %vm1018 = vmand %vm985, %vm1002
        %vm1019 = vmand %vm986, %vm1003
        %v1020 = vsel %vm1004, 1, 0
        %v1021 = vsel %vm1005, 1, 0
        %v1022 = vsel %vm1006, 1, 0
        %v1023 = vsel %vm1007, 1, 0
        %v1024 = vsel %vm1008, 1, 0
        %v1025 = vsel %vm1009, 1, 0
        %v1026 = vsel %vm1010, 1, 0
        %v1027 = vsel %vm1011, 1, 0
        %v1028 = vsel %vm1012, 1, 0
        %v1029 = vsel %vm1013, 1, 0
        %v1030 = vsel %vm1014, 1, 0
        %v1031 = vsel %vm1015, 1, 0
        %v1032 = vsel %vm1016, 1, 0
        %v1033 = vsel %vm1017, 1, 0
        %v1034 = vsel %vm1018, 1, 0
        %v1035 = vsel %vm1019, 1, 0
        %vm1036 = vcmp.eq.s32.totalorder %v1020, 1
        %vm1037 = vcmp.eq.s32.totalorder %v1021, 1
        %vm1038 = vcmp.eq.s32.totalorder %v1022, 1
        %vm1039 = vcmp.eq.s32.totalorder %v1023, 1
        %vm1040 = vcmp.eq.s32.totalorder %v1024, 1
        %vm1041 = vcmp.eq.s32.totalorder %v1025, 1
        %vm1042 = vcmp.eq.s32.totalorder %v1026, 1
        %vm1043 = vcmp.eq.s32.totalorder %v1027, 1
        %vm1044 = vcmp.eq.s32.totalorder %v1028, 1
        %vm1045 = vcmp.eq.s32.totalorder %v1029, 1
        %vm1046 = vcmp.eq.s32.totalorder %v1030, 1
        %vm1047 = vcmp.eq.s32.totalorder %v1031, 1
        %vm1048 = vcmp.eq.s32.totalorder %v1032, 1
        %vm1049 = vcmp.eq.s32.totalorder %v1033, 1
        %vm1050 = vcmp.eq.s32.totalorder %v1034, 1
        %vm1051 = vcmp.eq.s32.totalorder %v1035, 1
        %v1052 = vsel %vm1036, %v204, -inf
        %v1053 = vsel %vm1036, %v205, -inf
        %v1054 = vsel %vm1037, %v206, -inf
        %v1055 = vsel %vm1037, %v207, -inf
        %v1056 = vsel %vm1038, %v208, -inf
        %v1057 = vsel %vm1038, %v209, -inf
        %v1058 = vsel %vm1039, %v210, -inf
        %v1059 = vsel %vm1039, %v211, -inf
        %v1060 = vsel %vm1040, %v212, -inf
        %v1061 = vsel %vm1040, %v213, -inf
        %v1062 = vsel %vm1041, %v214, -inf
        %v1063 = vsel %vm1041, %v215, -inf
        %v1064 = vsel %vm1042, %v216, -inf
        %v1065 = vsel %vm1042, %v217, -inf
        %v1066 = vsel %vm1043, %v218, -inf
        %v1067 = vsel %vm1043, %v219, -inf
        %v1068 = vsel %vm1044, %v220, -inf
        %v1069 = vsel %vm1044, %v221, -inf
        %v1070 = vsel %vm1045, %v222, -inf
        %v1071 = vsel %vm1045, %v223, -inf
        %v1072 = vsel %vm1046, %v224, -inf
        %v1073 = vsel %vm1046, %v225, -inf
        %v1074 = vsel %vm1047, %v226, -inf
        %v1075 = vsel %vm1047, %v227, -inf
        %v1076 = vsel %vm1048, %v228, -inf
        %v1077 = vsel %vm1048, %v229, -inf
        %v1078 = vsel %vm1049, %v230, -inf
        %v1079 = vsel %vm1049, %v231, -inf
        %v1080 = vsel %vm1050, %v232, -inf
        %v1081 = vsel %vm1050, %v233, -inf
        %v1082 = vsel %vm1051, %v234, -inf
        %v1083 = vsel %vm1051, %v235, -inf
        %v1084 = vsel %vm447, %v1052, -inf
        %v1085 = vsel %vm447, %v1054, -inf
        %v1086 = vsel %vm447, %v1056, -inf
        %v1087 = vmax.f32 %v1084, %v1086
        %v1088 = vsel %vm447, %v1058, -inf
        %v1089 = vmax.f32 %v1085, %v1088
        %v1090 = vsel %vm447, %v1060, -inf
        %v1091 = vmax.f32 %v1087, %v1090
        %v1092 = vsel %vm447, %v1062, -inf
        %v1093 = vmax.f32 %v1089, %v1092
        %v1094 = vsel %vm447, %v1064, -inf
        %v1095 = vmax.f32 %v1091, %v1094
        %v1096 = vsel %vm447, %v1066, -inf
        %v1097 = vmax.f32 %v1093, %v1096
        %v1098 = vsel %vm447, %v1068, -inf
        %v1099 = vmax.f32 %v1095, %v1098
        %v1100 = vsel %vm447, %v1070, -inf
        %v1101 = vmax.f32 %v1097, %v1100
        %v1102 = vsel %vm447, %v1072, -inf
        %v1103 = vmax.f32 %v1099, %v1102
        %v1104 = vsel %vm447, %v1074, -inf
        %v1105 = vmax.f32 %v1101, %v1104
        %v1106 = vsel %vm447, %v1076, -inf
        %v1107 = vmax.f32 %v1103, %v1106
        %v1108 = vsel %vm447, %v1078, -inf
        %v1109 = vmax.f32 %v1105, %v1108
        %v1110 = vsel %vm447, %v1080, -inf
        %v1111 = vmax.f32 %v1107, %v1110
        %v1112 = vsel %vm447, %v1082, -inf
        %v1113 = vmax.f32 %v1109, %v1112
        %v1114 = vmax.f32 %v1111, %v1113
        %v1115 = vsel %vm447, %v1053, -inf
        %v1116 = vsel %vm447, %v1055, -inf
        %v1117 = vsel %vm447, %v1057, -inf
        %v1118 = vmax.f32 %v1115, %v1117
        %v1119 = vsel %vm447, %v1059, -inf
        %v1120 = vmax.f32 %v1116, %v1119
        %v1121 = vsel %vm447, %v1061, -inf
        %v1122 = vmax.f32 %v1118, %v1121
        %v1123 = vsel %vm447, %v1063, -inf
        %v1124 = vmax.f32 %v1120, %v1123
        %v1125 = vsel %vm447, %v1065, -inf
        %v1126 = vmax.f32 %v1122, %v1125
        %v1127 = vsel %vm447, %v1067, -inf
        %v1128 = vmax.f32 %v1124, %v1127
        %v1129 = vsel %vm447, %v1069, -inf
        %v1130 = vmax.f32 %v1126, %v1129
        %v1131 = vsel %vm447, %v1071, -inf
        %v1132 = vmax.f32 %v1128, %v1131
        %v1133 = vsel %vm447, %v1073, -inf
        %v1134 = vmax.f32 %v1130, %v1133
        %v1135 = vsel %vm447, %v1075, -inf
        %v1136 = vmax.f32 %v1132, %v1135
        %v1137 = vsel %vm447, %v1077, -inf
        %v1138 = vmax.f32 %v1134, %v1137
        %v1139 = vsel %vm447, %v1079, -inf
        %v1140 = vmax.f32 %v1136, %v1139
        %v1141 = vsel %vm447, %v1081, -inf
        %v1142 = vmax.f32 %v1138, %v1141
        %v1143 = vsel %vm447, %v1083, -inf
        %v1144 = vmax.f32 %v1140, %v1143
        %v1145 = vmax.f32 %v1142, %v1144
        %p1146 = scmp.le.s32.totalorder %s969, %s967
        %v1147 = vsel %vm513, %v1114, -inf
        %v1148 = vsel %vm514, %v1145, -inf
        %v1149 = vsel %vm447, %v1147, -inf
        %v1150 = vsel %vm447, %v1148, -inf
        %v1151 = vmax.f32 %v1149, %v1150
        %v1152 = vrot.slane %v1151, 4
        %v1153 = vmax.f32 %v1151, %v1152
        %v1154 = vrot.slane %v1153, 2
        %v1155 = vmax.f32 %v1153, %v1154
        %v1156 = vrot.slane %v1155, 1
        %v1157 = vmax.f32 %v1155, %v1156
        %p1158 = por %p1146, %p251
        %s1159 = scalar_select %p1158, 1, 0
        %v1160 = vstv %s1159
        %vm1161 = vcmp.eq.s32.totalorder %v1160, 1
        %v1162 = vsel %vm1161, 0.0, %v1157
        %v1163 = vsel %vm533, %v1114, -inf
        %v1164 = vsel %vm534, %v1145, -inf
        %v1165 = vsel %vm447, %v1163, -inf
        %v1166 = vsel %vm447, %v1164, -inf
        %v1167 = vmax.f32 %v1165, %v1166
        %v1168 = vrot.slane %v1167, 4
        %v1169 = vmax.f32 %v1167, %v1168
        %v1170 = vrot.slane %v1169, 2
        %v1171 = vmax.f32 %v1169, %v1170
        %v1172 = vrot.slane %v1171, 1
        %v1173 = vmax.f32 %v1171, %v1172
        %p1174 = por %p1146, %p264
        %s1175 = scalar_select %p1174, 1, 0
        %v1176 = vstv %s1175
        %vm1177 = vcmp.eq.s32.totalorder %v1176, 1
        %v1178 = vsel %vm1177, 0.0, %v1173
        %v1179 = vsel %vm553, %v1114, -inf
        %v1180 = vsel %vm554, %v1145, -inf
        %v1181 = vsel %vm447, %v1179, -inf
        %v1182 = vsel %vm447, %v1180, -inf
        %v1183 = vmax.f32 %v1181, %v1182
        %v1184 = vrot.slane %v1183, 4
        %v1185 = vmax.f32 %v1183, %v1184
        %v1186 = vrot.slane %v1185, 2
        %v1187 = vmax.f32 %v1185, %v1186
        %v1188 = vrot.slane %v1187, 1
        %v1189 = vmax.f32 %v1187, %v1188
        %p1190 = por %p1146, %p277
        %s1191 = scalar_select %p1190, 1, 0
        %v1192 = vstv %s1191
        %vm1193 = vcmp.eq.s32.totalorder %v1192, 1
        %v1194 = vsel %vm1193, 0.0, %v1189
        %v1195 = vsel %vm573, %v1114, -inf
        %v1196 = vsel %vm574, %v1145, -inf
        %v1197 = vsel %vm447, %v1195, -inf
        %v1198 = vsel %vm447, %v1196, -inf
        %v1199 = vmax.f32 %v1197, %v1198
        %v1200 = vrot.slane %v1199, 4
        %v1201 = vmax.f32 %v1199, %v1200
        %v1202 = vrot.slane %v1201, 2
        %v1203 = vmax.f32 %v1201, %v1202
        %v1204 = vrot.slane %v1203, 1
        %v1205 = vmax.f32 %v1203, %v1204
        %p1206 = por %p1146, %p290
        %s1207 = scalar_select %p1206, 1, 0
        %v1208 = vstv %s1207
        %vm1209 = vcmp.eq.s32.totalorder %v1208, 1
        %v1210 = vsel %vm1209, 0.0, %v1205
        %v1211 = vsel %vm593, %v1114, -inf
        %v1212 = vsel %vm594, %v1145, -inf
        %v1213 = vsel %vm447, %v1211, -inf
        %v1214 = vsel %vm447, %v1212, -inf
        %v1215 = vmax.f32 %v1213, %v1214
        %v1216 = vrot.slane %v1215, 4
        %v1217 = vmax.f32 %v1215, %v1216
        %v1218 = vrot.slane %v1217, 2
        %v1219 = vmax.f32 %v1217, %v1218
        %v1220 = vrot.slane %v1219, 1
        %v1221 = vmax.f32 %v1219, %v1220
        %p1222 = por %p1146, %p303
        %s1223 = scalar_select %p1222, 1, 0
        %v1224 = vstv %s1223
        %vm1225 = vcmp.eq.s32.totalorder %v1224, 1
        %v1226 = vsel %vm1225, 0.0, %v1221
        %v1227 = vsel %vm613, %v1114, -inf
        %v1228 = vsel %vm614, %v1145, -inf
        %v1229 = vsel %vm447, %v1227, -inf
        %v1230 = vsel %vm447, %v1228, -inf
        %v1231 = vmax.f32 %v1229, %v1230
        %v1232 = vrot.slane %v1231, 4
        %v1233 = vmax.f32 %v1231, %v1232
        %v1234 = vrot.slane %v1233, 2
        %v1235 = vmax.f32 %v1233, %v1234
        %v1236 = vrot.slane %v1235, 1
        %v1237 = vmax.f32 %v1235, %v1236
        %p1238 = por %p1146, %p316
        %s1239 = scalar_select %p1238, 1, 0
        %v1240 = vstv %s1239
        %vm1241 = vcmp.eq.s32.totalorder %v1240, 1
        %v1242 = vsel %vm1241, 0.0, %v1237
        %v1243 = vsel %vm633, %v1114, -inf
        %v1244 = vsel %vm634, %v1145, -inf
        %v1245 = vsel %vm447, %v1243, -inf
        %v1246 = vsel %vm447, %v1244, -inf
        %v1247 = vmax.f32 %v1245, %v1246
        %v1248 = vrot.slane %v1247, 4
        %v1249 = vmax.f32 %v1247, %v1248
        %v1250 = vrot.slane %v1249, 2
        %v1251 = vmax.f32 %v1249, %v1250
        %v1252 = vrot.slane %v1251, 1
        %v1253 = vmax.f32 %v1251, %v1252
        %p1254 = por %p1146, %p329
        %s1255 = scalar_select %p1254, 1, 0
        %v1256 = vstv %s1255
        %vm1257 = vcmp.eq.s32.totalorder %v1256, 1
        %v1258 = vsel %vm1257, 0.0, %v1253
        %v1259 = vsel %vm651, %v1162, %v1178
        %v1260 = vsel %vm653, %v1259, %v1194
        %v1261 = vsel %vm655, %v1260, %v1210
        %v1262 = vsel %vm657, %v1261, %v1226
        %v1263 = vsel %vm659, %v1262, %v1242
        %v1264 = vsel %vm661, %v1263, %v1258
        %s1265 = scalar_lea.vmem %s202, 16
        %1266 = vst.msk [vmem:[%s1265] sm:$0x7f] %vm663, %v1264
        %s1267 = sadd.s32 %s203, 3
        %s1268 = sld [smem:[#allocation4 + %s1267]]
        %s1269 = sadd.s32 %s203, 10
        %s1270 = sld [smem:[#allocation4 + %s1269]]
        %v1271 = vstv %s1268
        %vm1272 = vcmp.le.s32.totalorder %v1271, 0
        %vm1273 = vcmp.le.s32.totalorder %v1271, 1
        %vm1274 = vcmp.le.s32.totalorder %v1271, 2
        %vm1275 = vcmp.le.s32.totalorder %v1271, 3
        %vm1276 = vcmp.le.s32.totalorder %v1271, 4
        %vm1277 = vcmp.le.s32.totalorder %v1271, 5
        %vm1278 = vcmp.le.s32.totalorder %v1271, 6
        %vm1279 = vcmp.le.s32.totalorder %v1271, 7
        %vm1280 = vcmp.le.s32.totalorder %v1271, 8
        %vm1281 = vcmp.le.s32.totalorder %v1271, 9
        %vm1282 = vcmp.le.s32.totalorder %v1271, 10
        %vm1283 = vcmp.le.s32.totalorder %v1271, 11
        %vm1284 = vcmp.le.s32.totalorder %v1271, 12
        %vm1285 = vcmp.le.s32.totalorder %v1271, 13
        %vm1286 = vcmp.le.s32.totalorder %v1271, 14
        %vm1287 = vcmp.le.s32.totalorder %v1271, 15
        %v1288 = vstv %s1270
        %vm1289 = vcmp.gt.s32.totalorder %v1288, 0
        %vm1290 = vcmp.gt.s32.totalorder %v1288, 1
        %vm1291 = vcmp.gt.s32.totalorder %v1288, 2
        %vm1292 = vcmp.gt.s32.totalorder %v1288, 3
        %vm1293 = vcmp.gt.s32.totalorder %v1288, 4
        %vm1294 = vcmp.gt.s32.totalorder %v1288, 5
        %vm1295 = vcmp.gt.s32.totalorder %v1288, 6
        %vm1296 = vcmp.gt.s32.totalorder %v1288, 7
        %vm1297 = vcmp.gt.s32.totalorder %v1288, 8
        %vm1298 = vcmp.gt.s32.totalorder %v1288, 9
        %vm1299 = vcmp.gt.s32.totalorder %v1288, 10
        %vm1300 = vcmp.gt.s32.totalorder %v1288, 11
        %vm1301 = vcmp.gt.s32.totalorder %v1288, 12
        %vm1302 = vcmp.gt.s32.totalorder %v1288, 13
        %vm1303 = vcmp.gt.s32.totalorder %v1288, 14
        %vm1304 = vcmp.gt.s32.totalorder %v1288, 15
        %vm1305 = vmand %vm1272, %vm1289
        %vm1306 = vmand %vm1273, %vm1290
        %vm1307 = vmand %vm1274, %vm1291
        %vm1308 = vmand %vm1275, %vm1292
        %vm1309 = vmand %vm1276, %vm1293
        %vm1310 = vmand %vm1277, %vm1294
        %vm1311 = vmand %vm1278, %vm1295
        %vm1312 = vmand %vm1279, %vm1296
        %vm1313 = vmand %vm1280, %vm1297
        %vm1314 = vmand %vm1281, %vm1298
        %vm1315 = vmand %vm1282, %vm1299
        %vm1316 = vmand %vm1283, %vm1300
        %vm1317 = vmand %vm1284, %vm1301
        %vm1318 = vmand %vm1285, %vm1302
        %vm1319 = vmand %vm1286, %vm1303
        %vm1320 = vmand %vm1287, %vm1304
        %v1321 = vsel %vm1305, 1, 0
        %v1322 = vsel %vm1306, 1, 0
        %v1323 = vsel %vm1307, 1, 0
        %v1324 = vsel %vm1308, 1, 0
        %v1325 = vsel %vm1309, 1, 0
        %v1326 = vsel %vm1310, 1, 0
        %v1327 = vsel %vm1311, 1, 0
        %v1328 = vsel %vm1312, 1, 0
        %v1329 = vsel %vm1313, 1, 0
        %v1330 = vsel %vm1314, 1, 0
        %v1331 = vsel %vm1315, 1, 0
        %v1332 = vsel %vm1316, 1, 0
        %v1333 = vsel %vm1317, 1, 0
        %v1334 = vsel %vm1318, 1, 0
        %v1335 = vsel %vm1319, 1, 0
        %v1336 = vsel %vm1320, 1, 0
        %vm1337 = vcmp.eq.s32.totalorder %v1321, 1
        %vm1338 = vcmp.eq.s32.totalorder %v1322, 1
        %vm1339 = vcmp.eq.s32.totalorder %v1323, 1
        %vm1340 = vcmp.eq.s32.totalorder %v1324, 1
        %vm1341 = vcmp.eq.s32.totalorder %v1325, 1
        %vm1342 = vcmp.eq.s32.totalorder %v1326, 1
        %vm1343 = vcmp.eq.s32.totalorder %v1327, 1
        %vm1344 = vcmp.eq.s32.totalorder %v1328, 1
        %vm1345 = vcmp.eq.s32.totalorder %v1329, 1
        %vm1346 = vcmp.eq.s32.totalorder %v1330, 1
        %vm1347 = vcmp.eq.s32.totalorder %v1331, 1
        %vm1348 = vcmp.eq.s32.totalorder %v1332, 1
        %vm1349 = vcmp.eq.s32.totalorder %v1333, 1
        %vm1350 = vcmp.eq.s32.totalorder %v1334, 1
        %vm1351 = vcmp.eq.s32.totalorder %v1335, 1
        %vm1352 = vcmp.eq.s32.totalorder %v1336, 1
        %v1353 = vsel %vm1337, %v204, -inf
        %v1354 = vsel %vm1337, %v205, -inf
        %v1355 = vsel %vm1338, %v206, -inf
        %v1356 = vsel %vm1338, %v207, -inf
        %v1357 = vsel %vm1339, %v208, -inf
        %v1358 = vsel %vm1339, %v209, -inf
        %v1359 = vsel %vm1340, %v210, -inf
        %v1360 = vsel %vm1340, %v211, -inf
        %v1361 = vsel %vm1341, %v212, -inf
        %v1362 = vsel %vm1341, %v213, -inf
        %v1363 = vsel %vm1342, %v214, -inf
        %v1364 = vsel %vm1342, %v215, -inf
        %v1365 = vsel %vm1343, %v216, -inf
        %v1366 = vsel %vm1343, %v217, -inf
        %v1367 = vsel %vm1344, %v218, -inf
        %v1368 = vsel %vm1344, %v219, -inf
        %v1369 = vsel %vm1345, %v220, -inf
        %v1370 = vsel %vm1345, %v221, -inf
        %v1371 = vsel %vm1346, %v222, -inf
        %v1372 = vsel %vm1346, %v223, -inf
        %v1373 = vsel %vm1347, %v224, -inf
        %v1374 = vsel %vm1347, %v225, -inf
        %v1375 = vsel %vm1348, %v226, -inf
        %v1376 = vsel %vm1348, %v227, -inf
        %v1377 = vsel %vm1349, %v228, -inf
        %v1378 = vsel %vm1349, %v229, -inf
        %v1379 = vsel %vm1350, %v230, -inf
        %v1380 = vsel %vm1350, %v231, -inf
        %v1381 = vsel %vm1351, %v232, -inf
        %v1382 = vsel %vm1351, %v233, -inf
        %v1383 = vsel %vm1352, %v234, -inf
        %v1384 = vsel %vm1352, %v235, -inf
        %v1385 = vsel %vm447, %v1353, -inf
        %v1386 = vsel %vm447, %v1355, -inf
        %v1387 = vsel %vm447, %v1357, -inf
        %v1388 = vmax.f32 %v1385, %v1387
        %v1389 = vsel %vm447, %v1359, -inf
        %v1390 = vmax.f32 %v1386, %v1389
        %v1391 = vsel %vm447, %v1361, -inf
        %v1392 = vmax.f32 %v1388, %v1391
        %v1393 = vsel %vm447, %v1363, -inf
        %v1394 = vmax.f32 %v1390, %v1393
        %v1395 = vsel %vm447, %v1365, -inf
        %v1396 = vmax.f32 %v1392, %v1395
        %v1397 = vsel %vm447, %v1367, -inf
        %v1398 = vmax.f32 %v1394, %v1397
        %v1399 = vsel %vm447, %v1369, -inf
        %v1400 = vmax.f32 %v1396, %v1399
        %v1401 = vsel %vm447, %v1371, -inf
        %v1402 = vmax.f32 %v1398, %v1401
        %v1403 = vsel %vm447, %v1373, -inf
        %v1404 = vmax.f32 %v1400, %v1403
        %v1405 = vsel %vm447, %v1375, -inf
        %v1406 = vmax.f32 %v1402, %v1405
        %v1407 = vsel %vm447, %v1377, -inf
        %v1408 = vmax.f32 %v1404, %v1407
        %v1409 = vsel %vm447, %v1379, -inf
        %v1410 = vmax.f32 %v1406, %v1409
        %v1411 = vsel %vm447, %v1381, -inf
        %v1412 = vmax.f32 %v1408, %v1411
        %v1413 = vsel %vm447, %v1383, -inf
        %v1414 = vmax.f32 %v1410, %v1413
        %v1415 = vmax.f32 %v1412, %v1414
        %v1416 = vsel %vm447, %v1354, -inf
        %v1417 = vsel %vm447, %v1356, -inf
        %v1418 = vsel %vm447, %v1358, -inf
        %v1419 = vmax.f32 %v1416, %v1418
        %v1420 = vsel %vm447, %v1360, -inf
        %v1421 = vmax.f32 %v1417, %v1420
        %v1422 = vsel %vm447, %v1362, -inf
        %v1423 = vmax.f32 %v1419, %v1422
        %v1424 = vsel %vm447, %v1364, -inf
        %v1425 = vmax.f32 %v1421, %v1424
        %v1426 = vsel %vm447, %v1366, -inf
        %v1427 = vmax.f32 %v1423, %v1426
        %v1428 = vsel %vm447, %v1368, -inf
        %v1429 = vmax.f32 %v1425, %v1428
        %v1430 = vsel %vm447, %v1370, -inf
        %v1431 = vmax.f32 %v1427, %v1430
        %v1432 = vsel %vm447, %v1372, -inf
        %v1433 = vmax.f32 %v1429, %v1432
        %v1434 = vsel %vm447, %v1374, -inf
        %v1435 = vmax.f32 %v1431, %v1434
        %v1436 = vsel %vm447, %v1376, -inf
        %v1437 = vmax.f32 %v1433, %v1436
        %v1438 = vsel %vm447, %v1378, -inf
        %v1439 = vmax.f32 %v1435, %v1438
        %v1440 = vsel %vm447, %v1380, -inf
        %v1441 = vmax.f32 %v1437, %v1440
        %v1442 = vsel %vm447, %v1382, -inf
        %v1443 = vmax.f32 %v1439, %v1442
        %v1444 = vsel %vm447, %v1384, -inf
        %v1445 = vmax.f32 %v1441, %v1444
        %v1446 = vmax.f32 %v1443, %v1445
        %p1447 = scmp.le.s32.totalorder %s1270, %s1268
        %v1448 = vsel %vm513, %v1415, -inf
        %v1449 = vsel %vm514, %v1446, -inf
        %v1450 = vsel %vm447, %v1448, -inf
        %v1451 = vsel %vm447, %v1449, -inf
        %v1452 = vmax.f32 %v1450, %v1451
        %v1453 = vrot.slane %v1452, 4
        %v1454 = vmax.f32 %v1452, %v1453
        %v1455 = vrot.slane %v1454, 2
        %v1456 = vmax.f32 %v1454, %v1455
        %v1457 = vrot.slane %v1456, 1
        %v1458 = vmax.f32 %v1456, %v1457
        %p1459 = por %p1447, %p251
        %s1460 = scalar_select %p1459, 1, 0
        %v1461 = vstv %s1460
        %vm1462 = vcmp.eq.s32.totalorder %v1461, 1
        %v1463 = vsel %vm1462, 0.0, %v1458
        %v1464 = vsel %vm533, %v1415, -inf
        %v1465 = vsel %vm534, %v1446, -inf
        %v1466 = vsel %vm447, %v1464, -inf
        %v1467 = vsel %vm447, %v1465, -inf
        %v1468 = vmax.f32 %v1466, %v1467
        %v1469 = vrot.slane %v1468, 4
        %v1470 = vmax.f32 %v1468, %v1469
        %v1471 = vrot.slane %v1470, 2
        %v1472 = vmax.f32 %v1470, %v1471
        %v1473 = vrot.slane %v1472, 1
        %v1474 = vmax.f32 %v1472, %v1473
        %p1475 = por %p1447, %p264
        %s1476 = scalar_select %p1475, 1, 0
        %v1477 = vstv %s1476
        %vm1478 = vcmp.eq.s32.totalorder %v1477, 1
        %v1479 = vsel %vm1478, 0.0, %v1474
        %v1480 = vsel %vm553, %v1415, -inf
        %v1481 = vsel %vm554, %v1446, -inf
        %v1482 = vsel %vm447, %v1480, -inf
        %v1483 = vsel %vm447, %v1481, -inf
        %v1484 = vmax.f32 %v1482, %v1483
        %v1485 = vrot.slane %v1484, 4
        %v1486 = vmax.f32 %v1484, %v1485
        %v1487 = vrot.slane %v1486, 2
        %v1488 = vmax.f32 %v1486, %v1487
        %v1489 = vrot.slane %v1488, 1
        %v1490 = vmax.f32 %v1488, %v1489
        %p1491 = por %p1447, %p277
        %s1492 = scalar_select %p1491, 1, 0
        %v1493 = vstv %s1492
        %vm1494 = vcmp.eq.s32.totalorder %v1493, 1
        %v1495 = vsel %vm1494, 0.0, %v1490
        %v1496 = vsel %vm573, %v1415, -inf
        %v1497 = vsel %vm574, %v1446, -inf
        %v1498 = vsel %vm447, %v1496, -inf
        %v1499 = vsel %vm447, %v1497, -inf
        %v1500 = vmax.f32 %v1498, %v1499
        %v1501 = vrot.slane %v1500, 4
        %v1502 = vmax.f32 %v1500, %v1501
        %v1503 = vrot.slane %v1502, 2
        %v1504 = vmax.f32 %v1502, %v1503
        %v1505 = vrot.slane %v1504, 1
        %v1506 = vmax.f32 %v1504, %v1505
        %p1507 = por %p1447, %p290
        %s1508 = scalar_select %p1507, 1, 0
        %v1509 = vstv %s1508
        %vm1510 = vcmp.eq.s32.totalorder %v1509, 1
        %v1511 = vsel %vm1510, 0.0, %v1506
        %v1512 = vsel %vm593, %v1415, -inf
        %v1513 = vsel %vm594, %v1446, -inf
        %v1514 = vsel %vm447, %v1512, -inf
        %v1515 = vsel %vm447, %v1513, -inf
        %v1516 = vmax.f32 %v1514, %v1515
        %v1517 = vrot.slane %v1516, 4
        %v1518 = vmax.f32 %v1516, %v1517
        %v1519 = vrot.slane %v1518, 2
        %v1520 = vmax.f32 %v1518, %v1519
        %v1521 = vrot.slane %v1520, 1
        %v1522 = vmax.f32 %v1520, %v1521
        %p1523 = por %p1447, %p303
        %s1524 = scalar_select %p1523, 1, 0
        %v1525 = vstv %s1524
        %vm1526 = vcmp.eq.s32.totalorder %v1525, 1
        %v1527 = vsel %vm1526, 0.0, %v1522
        %v1528 = vsel %vm613, %v1415, -inf
        %v1529 = vsel %vm614, %v1446, -inf
        %v1530 = vsel %vm447, %v1528, -inf
        %v1531 = vsel %vm447, %v1529, -inf
        %v1532 = vmax.f32 %v1530, %v1531
        %v1533 = vrot.slane %v1532, 4
        %v1534 = vmax.f32 %v1532, %v1533
        %v1535 = vrot.slane %v1534, 2
        %v1536 = vmax.f32 %v1534, %v1535
        %v1537 = vrot.slane %v1536, 1
        %v1538 = vmax.f32 %v1536, %v1537
        %p1539 = por %p1447, %p316
        %s1540 = scalar_select %p1539, 1, 0
        %v1541 = vstv %s1540
        %vm1542 = vcmp.eq.s32.totalorder %v1541, 1
        %v1543 = vsel %vm1542, 0.0, %v1538
        %v1544 = vsel %vm633, %v1415, -inf
        %v1545 = vsel %vm634, %v1446, -inf
        %v1546 = vsel %vm447, %v1544, -inf
        %v1547 = vsel %vm447, %v1545, -inf
        %v1548 = vmax.f32 %v1546, %v1547
        %v1549 = vrot.slane %v1548, 4
        %v1550 = vmax.f32 %v1548, %v1549
        %v1551 = vrot.slane %v1550, 2
        %v1552 = vmax.f32 %v1550, %v1551
        %v1553 = vrot.slane %v1552, 1
        %v1554 = vmax.f32 %v1552, %v1553
        %p1555 = por %p1447, %p329
        %s1556 = scalar_select %p1555, 1, 0
        %v1557 = vstv %s1556
        %vm1558 = vcmp.eq.s32.totalorder %v1557, 1
        %v1559 = vsel %vm1558, 0.0, %v1554
        %v1560 = vsel %vm651, %v1463, %v1479
        %v1561 = vsel %vm653, %v1560, %v1495
        %v1562 = vsel %vm655, %v1561, %v1511
        %v1563 = vsel %vm657, %v1562, %v1527
        %v1564 = vsel %vm659, %v1563, %v1543
        %v1565 = vsel %vm661, %v1564, %v1559
        %s1566 = scalar_lea.vmem %s202, 24
        %1567 = vst.msk [vmem:[%s1566] sm:$0x7f] %vm663, %v1565
        %s1568 = sadd.s32 %s203, 4
        %s1569 = sld [smem:[#allocation4 + %s1568]]
        %s1570 = sadd.s32 %s203, 11
        %s1571 = sld [smem:[#allocation4 + %s1570]]
        %v1572 = vstv %s1569
        %vm1573 = vcmp.le.s32.totalorder %v1572, 0
        %vm1574 = vcmp.le.s32.totalorder %v1572, 1
        %vm1575 = vcmp.le.s32.totalorder %v1572, 2
        %vm1576 = vcmp.le.s32.totalorder %v1572, 3
        %vm1577 = vcmp.le.s32.totalorder %v1572, 4
        %vm1578 = vcmp.le.s32.totalorder %v1572, 5
        %vm1579 = vcmp.le.s32.totalorder %v1572, 6
        %vm1580 = vcmp.le.s32.totalorder %v1572, 7
        %vm1581 = vcmp.le.s32.totalorder %v1572, 8
        %vm1582 = vcmp.le.s32.totalorder %v1572, 9
        %vm1583 = vcmp.le.s32.totalorder %v1572, 10
        %vm1584 = vcmp.le.s32.totalorder %v1572, 11
        %vm1585 = vcmp.le.s32.totalorder %v1572, 12
        %vm1586 = vcmp.le.s32.totalorder %v1572, 13
        %vm1587 = vcmp.le.s32.totalorder %v1572, 14
        %vm1588 = vcmp.le.s32.totalorder %v1572, 15
        %v1589 = vstv %s1571
        %vm1590 = vcmp.gt.s32.totalorder %v1589, 0
        %vm1591 = vcmp.gt.s32.totalorder %v1589, 1
        %vm1592 = vcmp.gt.s32.totalorder %v1589, 2
        %vm1593 = vcmp.gt.s32.totalorder %v1589, 3
        %vm1594 = vcmp.gt.s32.totalorder %v1589, 4
        %vm1595 = vcmp.gt.s32.totalorder %v1589, 5
        %vm1596 = vcmp.gt.s32.totalorder %v1589, 6
        %vm1597 = vcmp.gt.s32.totalorder %v1589, 7
        %vm1598 = vcmp.gt.s32.totalorder %v1589, 8
        %vm1599 = vcmp.gt.s32.totalorder %v1589, 9
        %vm1600 = vcmp.gt.s32.totalorder %v1589, 10
        %vm1601 = vcmp.gt.s32.totalorder %v1589, 11
        %vm1602 = vcmp.gt.s32.totalorder %v1589, 12
        %vm1603 = vcmp.gt.s32.totalorder %v1589, 13
        %vm1604 = vcmp.gt.s32.totalorder %v1589, 14
        %vm1605 = vcmp.gt.s32.totalorder %v1589, 15
        %vm1606 = vmand %vm1573, %vm1590
        %vm1607 = vmand %vm1574, %vm1591
        %vm1608 = vmand %vm1575, %vm1592
        %vm1609 = vmand %vm1576, %vm1593
        %vm1610 = vmand %vm1577, %vm1594
        %vm1611 = vmand %vm1578, %vm1595
        %vm1612 = vmand %vm1579, %vm1596
        %vm1613 = vmand %vm1580, %vm1597
        %vm1614 = vmand %vm1581, %vm1598
        %vm1615 = vmand %vm1582, %vm1599
        %vm1616 = vmand %vm1583, %vm1600
        %vm1617 = vmand %vm1584, %vm1601
        %vm1618 = vmand %vm1585, %vm1602
        %vm1619 = vmand %vm1586, %vm1603
        %vm1620 = vmand %vm1587, %vm1604
        %vm1621 = vmand %vm1588, %vm1605
        %v1622 = vsel %vm1606, 1, 0
        %v1623 = vsel %vm1607, 1, 0
        %v1624 = vsel %vm1608, 1, 0
        %v1625 = vsel %vm1609, 1, 0
        %v1626 = vsel %vm1610, 1, 0
        %v1627 = vsel %vm1611, 1, 0
        %v1628 = vsel %vm1612, 1, 0
        %v1629 = vsel %vm1613, 1, 0
        %v1630 = vsel %vm1614, 1, 0
        %v1631 = vsel %vm1615, 1, 0
        %v1632 = vsel %vm1616, 1, 0
        %v1633 = vsel %vm1617, 1, 0
        %v1634 = vsel %vm1618, 1, 0
        %v1635 = vsel %vm1619, 1, 0
        %v1636 = vsel %vm1620, 1, 0
        %v1637 = vsel %vm1621, 1, 0
        %vm1638 = vcmp.eq.s32.totalorder %v1622, 1
        %vm1639 = vcmp.eq.s32.totalorder %v1623, 1
        %vm1640 = vcmp.eq.s32.totalorder %v1624, 1
        %vm1641 = vcmp.eq.s32.totalorder %v1625, 1
        %vm1642 = vcmp.eq.s32.totalorder %v1626, 1
        %vm1643 = vcmp.eq.s32.totalorder %v1627, 1
        %vm1644 = vcmp.eq.s32.totalorder %v1628, 1
        %vm1645 = vcmp.eq.s32.totalorder %v1629, 1
        %vm1646 = vcmp.eq.s32.totalorder %v1630, 1
        %vm1647 = vcmp.eq.s32.totalorder %v1631, 1
        %vm1648 = vcmp.eq.s32.totalorder %v1632, 1
        %vm1649 = vcmp.eq.s32.totalorder %v1633, 1
        %vm1650 = vcmp.eq.s32.totalorder %v1634, 1
        %vm1651 = vcmp.eq.s32.totalorder %v1635, 1
        %vm1652 = vcmp.eq.s32.totalorder %v1636, 1
        %vm1653 = vcmp.eq.s32.totalorder %v1637, 1
        %v1654 = vsel %vm1638, %v204, -inf
        %v1655 = vsel %vm1638, %v205, -inf
        %v1656 = vsel %vm1639, %v206, -inf
        %v1657 = vsel %vm1639, %v207, -inf
        %v1658 = vsel %vm1640, %v208, -inf
        %v1659 = vsel %vm1640, %v209, -inf
        %v1660 = vsel %vm1641, %v210, -inf
        %v1661 = vsel %vm1641, %v211, -inf
        %v1662 = vsel %vm1642, %v212, -inf
        %v1663 = vsel %vm1642, %v213, -inf
        %v1664 = vsel %vm1643, %v214, -inf
        %v1665 = vsel %vm1643, %v215, -inf
        %v1666 = vsel %vm1644, %v216, -inf
        %v1667 = vsel %vm1644, %v217, -inf
        %v1668 = vsel %vm1645, %v218, -inf
        %v1669 = vsel %vm1645, %v219, -inf
        %v1670 = vsel %vm1646, %v220, -inf
        %v1671 = vsel %vm1646, %v221, -inf
        %v1672 = vsel %vm1647, %v222, -inf
        %v1673 = vsel %vm1647, %v223, -inf
        %v1674 = vsel %vm1648, %v224, -inf
        %v1675 = vsel %vm1648, %v225, -inf
        %v1676 = vsel %vm1649, %v226, -inf
        %v1677 = vsel %vm1649, %v227, -inf
        %v1678 = vsel %vm1650, %v228, -inf
        %v1679 = vsel %vm1650, %v229, -inf
        %v1680 = vsel %vm1651, %v230, -inf
        %v1681 = vsel %vm1651, %v231, -inf
        %v1682 = vsel %vm1652, %v232, -inf
        %v1683 = vsel %vm1652, %v233, -inf
        %v1684 = vsel %vm1653, %v234, -inf
        %v1685 = vsel %vm1653, %v235, -inf
        %v1686 = vsel %vm447, %v1654, -inf
        %v1687 = vsel %vm447, %v1656, -inf
        %v1688 = vsel %vm447, %v1658, -inf
        %v1689 = vmax.f32 %v1686, %v1688
        %v1690 = vsel %vm447, %v1660, -inf
        %v1691 = vmax.f32 %v1687, %v1690
        %v1692 = vsel %vm447, %v1662, -inf
        %v1693 = vmax.f32 %v1689, %v1692
        %v1694 = vsel %vm447, %v1664, -inf
        %v1695 = vmax.f32 %v1691, %v1694
        %v1696 = vsel %vm447, %v1666, -inf
        %v1697 = vmax.f32 %v1693, %v1696
        %v1698 = vsel %vm447, %v1668, -inf
        %v1699 = vmax.f32 %v1695, %v1698
        %v1700 = vsel %vm447, %v1670, -inf
        %v1701 = vmax.f32 %v1697, %v1700
        %v1702 = vsel %vm447, %v1672, -inf
        %v1703 = vmax.f32 %v1699, %v1702
        %v1704 = vsel %vm447, %v1674, -inf
        %v1705 = vmax.f32 %v1701, %v1704
        %v1706 = vsel %vm447, %v1676, -inf
        %v1707 = vmax.f32 %v1703, %v1706
        %v1708 = vsel %vm447, %v1678, -inf
        %v1709 = vmax.f32 %v1705, %v1708
        %v1710 = vsel %vm447, %v1680, -inf
        %v1711 = vmax.f32 %v1707, %v1710
        %v1712 = vsel %vm447, %v1682, -inf
        %v1713 = vmax.f32 %v1709, %v1712
        %v1714 = vsel %vm447, %v1684, -inf
        %v1715 = vmax.f32 %v1711, %v1714
        %v1716 = vmax.f32 %v1713, %v1715
        %v1717 = vsel %vm447, %v1655, -inf
        %v1718 = vsel %vm447, %v1657, -inf
        %v1719 = vsel %vm447, %v1659, -inf
        %v1720 = vmax.f32 %v1717, %v1719
        %v1721 = vsel %vm447, %v1661, -inf
        %v1722 = vmax.f32 %v1718, %v1721
        %v1723 = vsel %vm447, %v1663, -inf
        %v1724 = vmax.f32 %v1720, %v1723
        %v1725 = vsel %vm447, %v1665, -inf
        %v1726 = vmax.f32 %v1722, %v1725
        %v1727 = vsel %vm447, %v1667, -inf
        %v1728 = vmax.f32 %v1724, %v1727
        %v1729 = vsel %vm447, %v1669, -inf
        %v1730 = vmax.f32 %v1726, %v1729
        %v1731 = vsel %vm447, %v1671, -inf
        %v1732 = vmax.f32 %v1728, %v1731
        %v1733 = vsel %vm447, %v1673, -inf
        %v1734 = vmax.f32 %v1730, %v1733
        %v1735 = vsel %vm447, %v1675, -inf
        %v1736 = vmax.f32 %v1732, %v1735
        %v1737 = vsel %vm447, %v1677, -inf
        %v1738 = vmax.f32 %v1734, %v1737
        %v1739 = vsel %vm447, %v1679, -inf
        %v1740 = vmax.f32 %v1736, %v1739
        %v1741 = vsel %vm447, %v1681, -inf
        %v1742 = vmax.f32 %v1738, %v1741
        %v1743 = vsel %vm447, %v1683, -inf
        %v1744 = vmax.f32 %v1740, %v1743
        %v1745 = vsel %vm447, %v1685, -inf
        %v1746 = vmax.f32 %v1742, %v1745
        %v1747 = vmax.f32 %v1744, %v1746
        %p1748 = scmp.le.s32.totalorder %s1571, %s1569
        %v1749 = vsel %vm513, %v1716, -inf
        %v1750 = vsel %vm514, %v1747, -inf
        %v1751 = vsel %vm447, %v1749, -inf
        %v1752 = vsel %vm447, %v1750, -inf
        %v1753 = vmax.f32 %v1751, %v1752
        %v1754 = vrot.slane %v1753, 4
        %v1755 = vmax.f32 %v1753, %v1754
        %v1756 = vrot.slane %v1755, 2
        %v1757 = vmax.f32 %v1755, %v1756
        %v1758 = vrot.slane %v1757, 1
        %v1759 = vmax.f32 %v1757, %v1758
        %p1760 = por %p1748, %p251
        %s1761 = scalar_select %p1760, 1, 0
        %v1762 = vstv %s1761
        %vm1763 = vcmp.eq.s32.totalorder %v1762, 1
        %v1764 = vsel %vm1763, 0.0, %v1759
        %v1765 = vsel %vm533, %v1716, -inf
        %v1766 = vsel %vm534, %v1747, -inf
        %v1767 = vsel %vm447, %v1765, -inf
        %v1768 = vsel %vm447, %v1766, -inf
        %v1769 = vmax.f32 %v1767, %v1768
        %v1770 = vrot.slane %v1769, 4
        %v1771 = vmax.f32 %v1769, %v1770
        %v1772 = vrot.slane %v1771, 2
        %v1773 = vmax.f32 %v1771, %v1772
        %v1774 = vrot.slane %v1773, 1
        %v1775 = vmax.f32 %v1773, %v1774
        %p1776 = por %p1748, %p264
        %s1777 = scalar_select %p1776, 1, 0
        %v1778 = vstv %s1777
        %vm1779 = vcmp.eq.s32.totalorder %v1778, 1
        %v1780 = vsel %vm1779, 0.0, %v1775
        %v1781 = vsel %vm553, %v1716, -inf
        %v1782 = vsel %vm554, %v1747, -inf
        %v1783 = vsel %vm447, %v1781, -inf
        %v1784 = vsel %vm447, %v1782, -inf
        %v1785 = vmax.f32 %v1783, %v1784
        %v1786 = vrot.slane %v1785, 4
        %v1787 = vmax.f32 %v1785, %v1786
        %v1788 = vrot.slane %v1787, 2
        %v1789 = vmax.f32 %v1787, %v1788
        %v1790 = vrot.slane %v1789, 1
        %v1791 = vmax.f32 %v1789, %v1790
        %p1792 = por %p1748, %p277
        %s1793 = scalar_select %p1792, 1, 0
        %v1794 = vstv %s1793
        %vm1795 = vcmp.eq.s32.totalorder %v1794, 1
        %v1796 = vsel %vm1795, 0.0, %v1791
        %v1797 = vsel %vm573, %v1716, -inf
        %v1798 = vsel %vm574, %v1747, -inf
        %v1799 = vsel %vm447, %v1797, -inf
        %v1800 = vsel %vm447, %v1798, -inf
        %v1801 = vmax.f32 %v1799, %v1800
        %v1802 = vrot.slane %v1801, 4
        %v1803 = vmax.f32 %v1801, %v1802
        %v1804 = vrot.slane %v1803, 2
        %v1805 = vmax.f32 %v1803, %v1804
        %v1806 = vrot.slane %v1805, 1
        %v1807 = vmax.f32 %v1805, %v1806
        %p1808 = por %p1748, %p290
        %s1809 = scalar_select %p1808, 1, 0
        %v1810 = vstv %s1809
        %vm1811 = vcmp.eq.s32.totalorder %v1810, 1
        %v1812 = vsel %vm1811, 0.0, %v1807
        %v1813 = vsel %vm593, %v1716, -inf
        %v1814 = vsel %vm594, %v1747, -inf
        %v1815 = vsel %vm447, %v1813, -inf
        %v1816 = vsel %vm447, %v1814, -inf
        %v1817 = vmax.f32 %v1815, %v1816
        %v1818 = vrot.slane %v1817, 4
        %v1819 = vmax.f32 %v1817, %v1818
        %v1820 = vrot.slane %v1819, 2
        %v1821 = vmax.f32 %v1819, %v1820
        %v1822 = vrot.slane %v1821, 1
        %v1823 = vmax.f32 %v1821, %v1822
        %p1824 = por %p1748, %p303
        %s1825 = scalar_select %p1824, 1, 0
        %v1826 = vstv %s1825
        %vm1827 = vcmp.eq.s32.totalorder %v1826, 1
        %v1828 = vsel %vm1827, 0.0, %v1823
        %v1829 = vsel %vm613, %v1716, -inf
        %v1830 = vsel %vm614, %v1747, -inf
        %v1831 = vsel %vm447, %v1829, -inf
        %v1832 = vsel %vm447, %v1830, -inf
        %v1833 = vmax.f32 %v1831, %v1832
        %v1834 = vrot.slane %v1833, 4
        %v1835 = vmax.f32 %v1833, %v1834
        %v1836 = vrot.slane %v1835, 2
        %v1837 = vmax.f32 %v1835, %v1836
        %v1838 = vrot.slane %v1837, 1
        %v1839 = vmax.f32 %v1837, %v1838
        %p1840 = por %p1748, %p316
        %s1841 = scalar_select %p1840, 1, 0
        %v1842 = vstv %s1841
        %vm1843 = vcmp.eq.s32.totalorder %v1842, 1
        %v1844 = vsel %vm1843, 0.0, %v1839
        %v1845 = vsel %vm633, %v1716, -inf
        %v1846 = vsel %vm634, %v1747, -inf
        %v1847 = vsel %vm447, %v1845, -inf
        %v1848 = vsel %vm447, %v1846, -inf
        %v1849 = vmax.f32 %v1847, %v1848
        %v1850 = vrot.slane %v1849, 4
        %v1851 = vmax.f32 %v1849, %v1850
        %v1852 = vrot.slane %v1851, 2
        %v1853 = vmax.f32 %v1851, %v1852
        %v1854 = vrot.slane %v1853, 1
        %v1855 = vmax.f32 %v1853, %v1854
        %p1856 = por %p1748, %p329
        %s1857 = scalar_select %p1856, 1, 0
        %v1858 = vstv %s1857
        %vm1859 = vcmp.eq.s32.totalorder %v1858, 1
        %v1860 = vsel %vm1859, 0.0, %v1855
        %v1861 = vsel %vm651, %v1764, %v1780
        %v1862 = vsel %vm653, %v1861, %v1796
        %v1863 = vsel %vm655, %v1862, %v1812
        %v1864 = vsel %vm657, %v1863, %v1828
        %v1865 = vsel %vm659, %v1864, %v1844
        %v1866 = vsel %vm661, %v1865, %v1860
        %s1867 = scalar_lea.vmem %s202, 32
        %1868 = vst.msk [vmem:[%s1867] sm:$0x7f] %vm663, %v1866
        %s1869 = sadd.s32 %s203, 5
        %s1870 = sld [smem:[#allocation4 + %s1869]]
        %s1871 = sadd.s32 %s203, 12
        %s1872 = sld [smem:[#allocation4 + %s1871]]
        %v1873 = vstv %s1870
        %vm1874 = vcmp.le.s32.totalorder %v1873, 0
        %vm1875 = vcmp.le.s32.totalorder %v1873, 1
        %vm1876 = vcmp.le.s32.totalorder %v1873, 2
        %vm1877 = vcmp.le.s32.totalorder %v1873, 3
        %vm1878 = vcmp.le.s32.totalorder %v1873, 4
        %vm1879 = vcmp.le.s32.totalorder %v1873, 5
        %vm1880 = vcmp.le.s32.totalorder %v1873, 6
        %vm1881 = vcmp.le.s32.totalorder %v1873, 7
        %vm1882 = vcmp.le.s32.totalorder %v1873, 8
        %vm1883 = vcmp.le.s32.totalorder %v1873, 9
        %vm1884 = vcmp.le.s32.totalorder %v1873, 10
        %vm1885 = vcmp.le.s32.totalorder %v1873, 11
        %vm1886 = vcmp.le.s32.totalorder %v1873, 12
        %vm1887 = vcmp.le.s32.totalorder %v1873, 13
        %vm1888 = vcmp.le.s32.totalorder %v1873, 14
        %vm1889 = vcmp.le.s32.totalorder %v1873, 15
        %v1890 = vstv %s1872
        %vm1891 = vcmp.gt.s32.totalorder %v1890, 0
        %vm1892 = vcmp.gt.s32.totalorder %v1890, 1
        %vm1893 = vcmp.gt.s32.totalorder %v1890, 2
        %vm1894 = vcmp.gt.s32.totalorder %v1890, 3
        %vm1895 = vcmp.gt.s32.totalorder %v1890, 4
        %vm1896 = vcmp.gt.s32.totalorder %v1890, 5
        %vm1897 = vcmp.gt.s32.totalorder %v1890, 6
        %vm1898 = vcmp.gt.s32.totalorder %v1890, 7
        %vm1899 = vcmp.gt.s32.totalorder %v1890, 8
        %vm1900 = vcmp.gt.s32.totalorder %v1890, 9
        %vm1901 = vcmp.gt.s32.totalorder %v1890, 10
        %vm1902 = vcmp.gt.s32.totalorder %v1890, 11
        %vm1903 = vcmp.gt.s32.totalorder %v1890, 12
        %vm1904 = vcmp.gt.s32.totalorder %v1890, 13
        %vm1905 = vcmp.gt.s32.totalorder %v1890, 14
        %vm1906 = vcmp.gt.s32.totalorder %v1890, 15
        %vm1907 = vmand %vm1874, %vm1891
        %vm1908 = vmand %vm1875, %vm1892
        %vm1909 = vmand %vm1876, %vm1893
        %vm1910 = vmand %vm1877, %vm1894
        %vm1911 = vmand %vm1878, %vm1895
        %vm1912 = vmand %vm1879, %vm1896
        %vm1913 = vmand %vm1880, %vm1897
        %vm1914 = vmand %vm1881, %vm1898
        %vm1915 = vmand %vm1882, %vm1899
        %vm1916 = vmand %vm1883, %vm1900
        %vm1917 = vmand %vm1884, %vm1901
        %vm1918 = vmand %vm1885, %vm1902
        %vm1919 = vmand %vm1886, %vm1903
        %vm1920 = vmand %vm1887, %vm1904
        %vm1921 = vmand %vm1888, %vm1905
        %vm1922 = vmand %vm1889, %vm1906
        %v1923 = vsel %vm1907, 1, 0
        %v1924 = vsel %vm1908, 1, 0
        %v1925 = vsel %vm1909, 1, 0
        %v1926 = vsel %vm1910, 1, 0
        %v1927 = vsel %vm1911, 1, 0
        %v1928 = vsel %vm1912, 1, 0
        %v1929 = vsel %vm1913, 1, 0
        %v1930 = vsel %vm1914, 1, 0
        %v1931 = vsel %vm1915, 1, 0
        %v1932 = vsel %vm1916, 1, 0
        %v1933 = vsel %vm1917, 1, 0
        %v1934 = vsel %vm1918, 1, 0
        %v1935 = vsel %vm1919, 1, 0
        %v1936 = vsel %vm1920, 1, 0
        %v1937 = vsel %vm1921, 1, 0
        %v1938 = vsel %vm1922, 1, 0
        %vm1939 = vcmp.eq.s32.totalorder %v1923, 1
        %vm1940 = vcmp.eq.s32.totalorder %v1924, 1
        %vm1941 = vcmp.eq.s32.totalorder %v1925, 1
        %vm1942 = vcmp.eq.s32.totalorder %v1926, 1
        %vm1943 = vcmp.eq.s32.totalorder %v1927, 1
        %vm1944 = vcmp.eq.s32.totalorder %v1928, 1
        %vm1945 = vcmp.eq.s32.totalorder %v1929, 1
        %vm1946 = vcmp.eq.s32.totalorder %v1930, 1
        %vm1947 = vcmp.eq.s32.totalorder %v1931, 1
        %vm1948 = vcmp.eq.s32.totalorder %v1932, 1
        %vm1949 = vcmp.eq.s32.totalorder %v1933, 1
        %vm1950 = vcmp.eq.s32.totalorder %v1934, 1
        %vm1951 = vcmp.eq.s32.totalorder %v1935, 1
        %vm1952 = vcmp.eq.s32.totalorder %v1936, 1
        %vm1953 = vcmp.eq.s32.totalorder %v1937, 1
        %vm1954 = vcmp.eq.s32.totalorder %v1938, 1
        %v1955 = vsel %vm1939, %v204, -inf
        %v1956 = vsel %vm1939, %v205, -inf
        %v1957 = vsel %vm1940, %v206, -inf
        %v1958 = vsel %vm1940, %v207, -inf
        %v1959 = vsel %vm1941, %v208, -inf
        %v1960 = vsel %vm1941, %v209, -inf
        %v1961 = vsel %vm1942, %v210, -inf
        %v1962 = vsel %vm1942, %v211, -inf
        %v1963 = vsel %vm1943, %v212, -inf
        %v1964 = vsel %vm1943, %v213, -inf
        %v1965 = vsel %vm1944, %v214, -inf
        %v1966 = vsel %vm1944, %v215, -inf
        %v1967 = vsel %vm1945, %v216, -inf
        %v1968 = vsel %vm1945, %v217, -inf
        %v1969 = vsel %vm1946, %v218, -inf
        %v1970 = vsel %vm1946, %v219, -inf
        %v1971 = vsel %vm1947, %v220, -inf
        %v1972 = vsel %vm1947, %v221, -inf
        %v1973 = vsel %vm1948, %v222, -inf
        %v1974 = vsel %vm1948, %v223, -inf
        %v1975 = vsel %vm1949, %v224, -inf
        %v1976 = vsel %vm1949, %v225, -inf
        %v1977 = vsel %vm1950, %v226, -inf
        %v1978 = vsel %vm1950, %v227, -inf
        %v1979 = vsel %vm1951, %v228, -inf
        %v1980 = vsel %vm1951, %v229, -inf
        %v1981 = vsel %vm1952, %v230, -inf
        %v1982 = vsel %vm1952, %v231, -inf
        %v1983 = vsel %vm1953, %v232, -inf
        %v1984 = vsel %vm1953, %v233, -inf
        %v1985 = vsel %vm1954, %v234, -inf
        %v1986 = vsel %vm1954, %v235, -inf
        %v1987 = vsel %vm447, %v1955, -inf
        %v1988 = vsel %vm447, %v1957, -inf
        %v1989 = vsel %vm447, %v1959, -inf
        %v1990 = vmax.f32 %v1987, %v1989
        %v1991 = vsel %vm447, %v1961, -inf
        %v1992 = vmax.f32 %v1988, %v1991
        %v1993 = vsel %vm447, %v1963, -inf
        %v1994 = vmax.f32 %v1990, %v1993
        %v1995 = vsel %vm447, %v1965, -inf
        %v1996 = vmax.f32 %v1992, %v1995
        %v1997 = vsel %vm447, %v1967, -inf
        %v1998 = vmax.f32 %v1994, %v1997
        %v1999 = vsel %vm447, %v1969, -inf
        %v2000 = vmax.f32 %v1996, %v1999
        %v2001 = vsel %vm447, %v1971, -inf
        %v2002 = vmax.f32 %v1998, %v2001
        %v2003 = vsel %vm447, %v1973, -inf
        %v2004 = vmax.f32 %v2000, %v2003
        %v2005 = vsel %vm447, %v1975, -inf
        %v2006 = vmax.f32 %v2002, %v2005
        %v2007 = vsel %vm447, %v1977, -inf
        %v2008 = vmax.f32 %v2004, %v2007
        %v2009 = vsel %vm447, %v1979, -inf
        %v2010 = vmax.f32 %v2006, %v2009
        %v2011 = vsel %vm447, %v1981, -inf
        %v2012 = vmax.f32 %v2008, %v2011
        %v2013 = vsel %vm447, %v1983, -inf
        %v2014 = vmax.f32 %v2010, %v2013
        %v2015 = vsel %vm447, %v1985, -inf
        %v2016 = vmax.f32 %v2012, %v2015
        %v2017 = vmax.f32 %v2014, %v2016
        %v2018 = vsel %vm447, %v1956, -inf
        %v2019 = vsel %vm447, %v1958, -inf
        %v2020 = vsel %vm447, %v1960, -inf
        %v2021 = vmax.f32 %v2018, %v2020
        %v2022 = vsel %vm447, %v1962, -inf
        %v2023 = vmax.f32 %v2019, %v2022
        %v2024 = vsel %vm447, %v1964, -inf
        %v2025 = vmax.f32 %v2021, %v2024
        %v2026 = vsel %vm447, %v1966, -inf
        %v2027 = vmax.f32 %v2023, %v2026
        %v2028 = vsel %vm447, %v1968, -inf
        %v2029 = vmax.f32 %v2025, %v2028
        %v2030 = vsel %vm447, %v1970, -inf
        %v2031 = vmax.f32 %v2027, %v2030
        %v2032 = vsel %vm447, %v1972, -inf
        %v2033 = vmax.f32 %v2029, %v2032
        %v2034 = vsel %vm447, %v1974, -inf
        %v2035 = vmax.f32 %v2031, %v2034
        %v2036 = vsel %vm447, %v1976, -inf
        %v2037 = vmax.f32 %v2033, %v2036
        %v2038 = vsel %vm447, %v1978, -inf
        %v2039 = vmax.f32 %v2035, %v2038
        %v2040 = vsel %vm447, %v1980, -inf
        %v2041 = vmax.f32 %v2037, %v2040
        %v2042 = vsel %vm447, %v1982, -inf
        %v2043 = vmax.f32 %v2039, %v2042
        %v2044 = vsel %vm447, %v1984, -inf
        %v2045 = vmax.f32 %v2041, %v2044
        %v2046 = vsel %vm447, %v1986, -inf
        %v2047 = vmax.f32 %v2043, %v2046
        %v2048 = vmax.f32 %v2045, %v2047
        %p2049 = scmp.le.s32.totalorder %s1872, %s1870
        %v2050 = vsel %vm513, %v2017, -inf
        %v2051 = vsel %vm514, %v2048, -inf
        %v2052 = vsel %vm447, %v2050, -inf
        %v2053 = vsel %vm447, %v2051, -inf
        %v2054 = vmax.f32 %v2052, %v2053
        %v2055 = vrot.slane %v2054, 4
        %v2056 = vmax.f32 %v2054, %v2055
        %v2057 = vrot.slane %v2056, 2
        %v2058 = vmax.f32 %v2056, %v2057
        %v2059 = vrot.slane %v2058, 1
        %v2060 = vmax.f32 %v2058, %v2059
        %p2061 = por %p2049, %p251
        %s2062 = scalar_select %p2061, 1, 0
        %v2063 = vstv %s2062
        %vm2064 = vcmp.eq.s32.totalorder %v2063, 1
        %v2065 = vsel %vm2064, 0.0, %v2060
        %v2066 = vsel %vm533, %v2017, -inf
        %v2067 = vsel %vm534, %v2048, -inf
        %v2068 = vsel %vm447, %v2066, -inf
        %v2069 = vsel %vm447, %v2067, -inf
        %v2070 = vmax.f32 %v2068, %v2069
        %v2071 = vrot.slane %v2070, 4
        %v2072 = vmax.f32 %v2070, %v2071
        %v2073 = vrot.slane %v2072, 2
        %v2074 = vmax.f32 %v2072, %v2073
        %v2075 = vrot.slane %v2074, 1
        %v2076 = vmax.f32 %v2074, %v2075
        %p2077 = por %p2049, %p264
        %s2078 = scalar_select %p2077, 1, 0
        %v2079 = vstv %s2078
        %vm2080 = vcmp.eq.s32.totalorder %v2079, 1
        %v2081 = vsel %vm2080, 0.0, %v2076
        %v2082 = vsel %vm553, %v2017, -inf
        %v2083 = vsel %vm554, %v2048, -inf
        %v2084 = vsel %vm447, %v2082, -inf
        %v2085 = vsel %vm447, %v2083, -inf
        %v2086 = vmax.f32 %v2084, %v2085
        %v2087 = vrot.slane %v2086, 4
        %v2088 = vmax.f32 %v2086, %v2087
        %v2089 = vrot.slane %v2088, 2
        %v2090 = vmax.f32 %v2088, %v2089
        %v2091 = vrot.slane %v2090, 1
        %v2092 = vmax.f32 %v2090, %v2091
        %p2093 = por %p2049, %p277
        %s2094 = scalar_select %p2093, 1, 0
        %v2095 = vstv %s2094
        %vm2096 = vcmp.eq.s32.totalorder %v2095, 1
        %v2097 = vsel %vm2096, 0.0, %v2092
        %v2098 = vsel %vm573, %v2017, -inf
        %v2099 = vsel %vm574, %v2048, -inf
        %v2100 = vsel %vm447, %v2098, -inf
        %v2101 = vsel %vm447, %v2099, -inf
        %v2102 = vmax.f32 %v2100, %v2101
        %v2103 = vrot.slane %v2102, 4
        %v2104 = vmax.f32 %v2102, %v2103
        %v2105 = vrot.slane %v2104, 2
        %v2106 = vmax.f32 %v2104, %v2105
        %v2107 = vrot.slane %v2106, 1
        %v2108 = vmax.f32 %v2106, %v2107
        %p2109 = por %p2049, %p290
        %s2110 = scalar_select %p2109, 1, 0
        %v2111 = vstv %s2110
        %vm2112 = vcmp.eq.s32.totalorder %v2111, 1
        %v2113 = vsel %vm2112, 0.0, %v2108
        %v2114 = vsel %vm593, %v2017, -inf
        %v2115 = vsel %vm594, %v2048, -inf
        %v2116 = vsel %vm447, %v2114, -inf
        %v2117 = vsel %vm447, %v2115, -inf
        %v2118 = vmax.f32 %v2116, %v2117
        %v2119 = vrot.slane %v2118, 4
        %v2120 = vmax.f32 %v2118, %v2119
        %v2121 = vrot.slane %v2120, 2
        %v2122 = vmax.f32 %v2120, %v2121
        %v2123 = vrot.slane %v2122, 1
        %v2124 = vmax.f32 %v2122, %v2123
        %p2125 = por %p2049, %p303
        %s2126 = scalar_select %p2125, 1, 0
        %v2127 = vstv %s2126
        %vm2128 = vcmp.eq.s32.totalorder %v2127, 1
        %v2129 = vsel %vm2128, 0.0, %v2124
        %v2130 = vsel %vm613, %v2017, -inf
        %v2131 = vsel %vm614, %v2048, -inf
        %v2132 = vsel %vm447, %v2130, -inf
        %v2133 = vsel %vm447, %v2131, -inf
        %v2134 = vmax.f32 %v2132, %v2133
        %v2135 = vrot.slane %v2134, 4
        %v2136 = vmax.f32 %v2134, %v2135
        %v2137 = vrot.slane %v2136, 2
        %v2138 = vmax.f32 %v2136, %v2137
        %v2139 = vrot.slane %v2138, 1
        %v2140 = vmax.f32 %v2138, %v2139
        %p2141 = por %p2049, %p316
        %s2142 = scalar_select %p2141, 1, 0
        %v2143 = vstv %s2142
        %vm2144 = vcmp.eq.s32.totalorder %v2143, 1
        %v2145 = vsel %vm2144, 0.0, %v2140
        %v2146 = vsel %vm633, %v2017, -inf
        %v2147 = vsel %vm634, %v2048, -inf
        %v2148 = vsel %vm447, %v2146, -inf
        %v2149 = vsel %vm447, %v2147, -inf
        %v2150 = vmax.f32 %v2148, %v2149
        %v2151 = vrot.slane %v2150, 4
        %v2152 = vmax.f32 %v2150, %v2151
        %v2153 = vrot.slane %v2152, 2
        %v2154 = vmax.f32 %v2152, %v2153
        %v2155 = vrot.slane %v2154, 1
        %v2156 = vmax.f32 %v2154, %v2155
        %p2157 = por %p2049, %p329
        %s2158 = scalar_select %p2157, 1, 0
        %v2159 = vstv %s2158
        %vm2160 = vcmp.eq.s32.totalorder %v2159, 1
        %v2161 = vsel %vm2160, 0.0, %v2156
        %v2162 = vsel %vm651, %v2065, %v2081
        %v2163 = vsel %vm653, %v2162, %v2097
        %v2164 = vsel %vm655, %v2163, %v2113
        %v2165 = vsel %vm657, %v2164, %v2129
        %v2166 = vsel %vm659, %v2165, %v2145
        %v2167 = vsel %vm661, %v2166, %v2161
        %s2168 = scalar_lea.vmem %s202, 40
        %2169 = vst.msk [vmem:[%s2168] sm:$0x7f] %vm663, %v2167
        %s2170 = sadd.s32 %s203, 6
        %s2171 = sld [smem:[#allocation4 + %s2170]]
        %s2172 = sadd.s32 %s203, 13
        %s2173 = sld [smem:[#allocation4 + %s2172]]
        %v2174 = vstv %s2171
        %vm2175 = vcmp.le.s32.totalorder %v2174, 0
        %vm2176 = vcmp.le.s32.totalorder %v2174, 1
        %vm2177 = vcmp.le.s32.totalorder %v2174, 2
        %vm2178 = vcmp.le.s32.totalorder %v2174, 3
        %vm2179 = vcmp.le.s32.totalorder %v2174, 4
        %vm2180 = vcmp.le.s32.totalorder %v2174, 5
        %vm2181 = vcmp.le.s32.totalorder %v2174, 6
        %vm2182 = vcmp.le.s32.totalorder %v2174, 7
        %vm2183 = vcmp.le.s32.totalorder %v2174, 8
        %vm2184 = vcmp.le.s32.totalorder %v2174, 9
        %vm2185 = vcmp.le.s32.totalorder %v2174, 10
        %vm2186 = vcmp.le.s32.totalorder %v2174, 11
        %vm2187 = vcmp.le.s32.totalorder %v2174, 12
        %vm2188 = vcmp.le.s32.totalorder %v2174, 13
        %vm2189 = vcmp.le.s32.totalorder %v2174, 14
        %vm2190 = vcmp.le.s32.totalorder %v2174, 15
        %v2191 = vstv %s2173
        %vm2192 = vcmp.gt.s32.totalorder %v2191, 0
        %vm2193 = vcmp.gt.s32.totalorder %v2191, 1
        %vm2194 = vcmp.gt.s32.totalorder %v2191, 2
        %vm2195 = vcmp.gt.s32.totalorder %v2191, 3
        %vm2196 = vcmp.gt.s32.totalorder %v2191, 4
        %vm2197 = vcmp.gt.s32.totalorder %v2191, 5
        %vm2198 = vcmp.gt.s32.totalorder %v2191, 6
        %vm2199 = vcmp.gt.s32.totalorder %v2191, 7
        %vm2200 = vcmp.gt.s32.totalorder %v2191, 8
        %vm2201 = vcmp.gt.s32.totalorder %v2191, 9
        %vm2202 = vcmp.gt.s32.totalorder %v2191, 10
        %vm2203 = vcmp.gt.s32.totalorder %v2191, 11
        %vm2204 = vcmp.gt.s32.totalorder %v2191, 12
        %vm2205 = vcmp.gt.s32.totalorder %v2191, 13
        %vm2206 = vcmp.gt.s32.totalorder %v2191, 14
        %vm2207 = vcmp.gt.s32.totalorder %v2191, 15
        %vm2208 = vmand %vm2175, %vm2192
        %vm2209 = vmand %vm2176, %vm2193
        %vm2210 = vmand %vm2177, %vm2194
        %vm2211 = vmand %vm2178, %vm2195
        %vm2212 = vmand %vm2179, %vm2196
        %vm2213 = vmand %vm2180, %vm2197
        %vm2214 = vmand %vm2181, %vm2198
        %vm2215 = vmand %vm2182, %vm2199
        %vm2216 = vmand %vm2183, %vm2200
        %vm2217 = vmand %vm2184, %vm2201
        %vm2218 = vmand %vm2185, %vm2202
        %vm2219 = vmand %vm2186, %vm2203
        %vm2220 = vmand %vm2187, %vm2204
        %vm2221 = vmand %vm2188, %vm2205
        %vm2222 = vmand %vm2189, %vm2206
        %vm2223 = vmand %vm2190, %vm2207
        %v2224 = vsel %vm2208, 1, 0
        %v2225 = vsel %vm2209, 1, 0
        %v2226 = vsel %vm2210, 1, 0
        %v2227 = vsel %vm2211, 1, 0
        %v2228 = vsel %vm2212, 1, 0
        %v2229 = vsel %vm2213, 1, 0
        %v2230 = vsel %vm2214, 1, 0
        %v2231 = vsel %vm2215, 1, 0
        %v2232 = vsel %vm2216, 1, 0
        %v2233 = vsel %vm2217, 1, 0
        %v2234 = vsel %vm2218, 1, 0
        %v2235 = vsel %vm2219, 1, 0
        %v2236 = vsel %vm2220, 1, 0
        %v2237 = vsel %vm2221, 1, 0
        %v2238 = vsel %vm2222, 1, 0
        %v2239 = vsel %vm2223, 1, 0
        %vm2240 = vcmp.eq.s32.totalorder %v2224, 1
        %vm2241 = vcmp.eq.s32.totalorder %v2225, 1
        %vm2242 = vcmp.eq.s32.totalorder %v2226, 1
        %vm2243 = vcmp.eq.s32.totalorder %v2227, 1
        %vm2244 = vcmp.eq.s32.totalorder %v2228, 1
        %vm2245 = vcmp.eq.s32.totalorder %v2229, 1
        %vm2246 = vcmp.eq.s32.totalorder %v2230, 1
        %vm2247 = vcmp.eq.s32.totalorder %v2231, 1
        %vm2248 = vcmp.eq.s32.totalorder %v2232, 1
        %vm2249 = vcmp.eq.s32.totalorder %v2233, 1
        %vm2250 = vcmp.eq.s32.totalorder %v2234, 1
        %vm2251 = vcmp.eq.s32.totalorder %v2235, 1
        %vm2252 = vcmp.eq.s32.totalorder %v2236, 1
        %vm2253 = vcmp.eq.s32.totalorder %v2237, 1
        %vm2254 = vcmp.eq.s32.totalorder %v2238, 1
        %vm2255 = vcmp.eq.s32.totalorder %v2239, 1
        %v2256 = vsel %vm2240, %v204, -inf
        %v2257 = vsel %vm2240, %v205, -inf
        %v2258 = vsel %vm2241, %v206, -inf
        %v2259 = vsel %vm2241, %v207, -inf
        %v2260 = vsel %vm2242, %v208, -inf
        %v2261 = vsel %vm2242, %v209, -inf
        %v2262 = vsel %vm2243, %v210, -inf
        %v2263 = vsel %vm2243, %v211, -inf
        %v2264 = vsel %vm2244, %v212, -inf
        %v2265 = vsel %vm2244, %v213, -inf
        %v2266 = vsel %vm2245, %v214, -inf
        %v2267 = vsel %vm2245, %v215, -inf
        %v2268 = vsel %vm2246, %v216, -inf
        %v2269 = vsel %vm2246, %v217, -inf
        %v2270 = vsel %vm2247, %v218, -inf
        %v2271 = vsel %vm2247, %v219, -inf
        %v2272 = vsel %vm2248, %v220, -inf
        %v2273 = vsel %vm2248, %v221, -inf
        %v2274 = vsel %vm2249, %v222, -inf
        %v2275 = vsel %vm2249, %v223, -inf
        %v2276 = vsel %vm2250, %v224, -inf
        %v2277 = vsel %vm2250, %v225, -inf
        %v2278 = vsel %vm2251, %v226, -inf
        %v2279 = vsel %vm2251, %v227, -inf
        %v2280 = vsel %vm2252, %v228, -inf
        %v2281 = vsel %vm2252, %v229, -inf
        %v2282 = vsel %vm2253, %v230, -inf
        %v2283 = vsel %vm2253, %v231, -inf
        %v2284 = vsel %vm2254, %v232, -inf
        %v2285 = vsel %vm2254, %v233, -inf
        %v2286 = vsel %vm2255, %v234, -inf
        %v2287 = vsel %vm2255, %v235, -inf
        %v2288 = vsel %vm447, %v2256, -inf
        %v2289 = vsel %vm447, %v2258, -inf
        %v2290 = vsel %vm447, %v2260, -inf
        %v2291 = vmax.f32 %v2288, %v2290
        %v2292 = vsel %vm447, %v2262, -inf
        %v2293 = vmax.f32 %v2289, %v2292
        %v2294 = vsel %vm447, %v2264, -inf
        %v2295 = vmax.f32 %v2291, %v2294
        %v2296 = vsel %vm447, %v2266, -inf
        %v2297 = vmax.f32 %v2293, %v2296
        %v2298 = vsel %vm447, %v2268, -inf
        %v2299 = vmax.f32 %v2295, %v2298
        %v2300 = vsel %vm447, %v2270, -inf
        %v2301 = vmax.f32 %v2297, %v2300
        %v2302 = vsel %vm447, %v2272, -inf
        %v2303 = vmax.f32 %v2299, %v2302
        %v2304 = vsel %vm447, %v2274, -inf
        %v2305 = vmax.f32 %v2301, %v2304
        %v2306 = vsel %vm447, %v2276, -inf
        %v2307 = vmax.f32 %v2303, %v2306
        %v2308 = vsel %vm447, %v2278, -inf
        %v2309 = vmax.f32 %v2305, %v2308
        %v2310 = vsel %vm447, %v2280, -inf
        %v2311 = vmax.f32 %v2307, %v2310
        %v2312 = vsel %vm447, %v2282, -inf
        %v2313 = vmax.f32 %v2309, %v2312
        %v2314 = vsel %vm447, %v2284, -inf
        %v2315 = vmax.f32 %v2311, %v2314
        %v2316 = vsel %vm447, %v2286, -inf
        %v2317 = vmax.f32 %v2313, %v2316
        %v2318 = vmax.f32 %v2315, %v2317
        %v2319 = vsel %vm447, %v2257, -inf
        %v2320 = vsel %vm447, %v2259, -inf
        %v2321 = vsel %vm447, %v2261, -inf
        %v2322 = vmax.f32 %v2319, %v2321
        %v2323 = vsel %vm447, %v2263, -inf
        %v2324 = vmax.f32 %v2320, %v2323
        %v2325 = vsel %vm447, %v2265, -inf
        %v2326 = vmax.f32 %v2322, %v2325
        %v2327 = vsel %vm447, %v2267, -inf
        %v2328 = vmax.f32 %v2324, %v2327
        %v2329 = vsel %vm447, %v2269, -inf
        %v2330 = vmax.f32 %v2326, %v2329
        %v2331 = vsel %vm447, %v2271, -inf
        %v2332 = vmax.f32 %v2328, %v2331
        %v2333 = vsel %vm447, %v2273, -inf
        %v2334 = vmax.f32 %v2330, %v2333
        %v2335 = vsel %vm447, %v2275, -inf
        %v2336 = vmax.f32 %v2332, %v2335
        %v2337 = vsel %vm447, %v2277, -inf
        %v2338 = vmax.f32 %v2334, %v2337
        %v2339 = vsel %vm447, %v2279, -inf
        %v2340 = vmax.f32 %v2336, %v2339
        %v2341 = vsel %vm447, %v2281, -inf
        %v2342 = vmax.f32 %v2338, %v2341
        %v2343 = vsel %vm447, %v2283, -inf
        %v2344 = vmax.f32 %v2340, %v2343
        %v2345 = vsel %vm447, %v2285, -inf
        %v2346 = vmax.f32 %v2342, %v2345
        %v2347 = vsel %vm447, %v2287, -inf
        %v2348 = vmax.f32 %v2344, %v2347
        %v2349 = vmax.f32 %v2346, %v2348
        %p2350 = scmp.le.s32.totalorder %s2173, %s2171
        %v2351 = vsel %vm513, %v2318, -inf
        %v2352 = vsel %vm514, %v2349, -inf
        %v2353 = vsel %vm447, %v2351, -inf
        %v2354 = vsel %vm447, %v2352, -inf
        %v2355 = vmax.f32 %v2353, %v2354
        %v2356 = vrot.slane %v2355, 4
        %v2357 = vmax.f32 %v2355, %v2356
        %v2358 = vrot.slane %v2357, 2
        %v2359 = vmax.f32 %v2357, %v2358
        %v2360 = vrot.slane %v2359, 1
        %v2361 = vmax.f32 %v2359, %v2360
        %p2362 = por %p2350, %p251
        %s2363 = scalar_select %p2362, 1, 0
        %v2364 = vstv %s2363
        %vm2365 = vcmp.eq.s32.totalorder %v2364, 1
        %v2366 = vsel %vm2365, 0.0, %v2361
        %v2367 = vsel %vm533, %v2318, -inf
        %v2368 = vsel %vm534, %v2349, -inf
        %v2369 = vsel %vm447, %v2367, -inf
        %v2370 = vsel %vm447, %v2368, -inf
        %v2371 = vmax.f32 %v2369, %v2370
        %v2372 = vrot.slane %v2371, 4
        %v2373 = vmax.f32 %v2371, %v2372
        %v2374 = vrot.slane %v2373, 2
        %v2375 = vmax.f32 %v2373, %v2374
        %v2376 = vrot.slane %v2375, 1
        %v2377 = vmax.f32 %v2375, %v2376
        %p2378 = por %p2350, %p264
        %s2379 = scalar_select %p2378, 1, 0
        %v2380 = vstv %s2379
        %vm2381 = vcmp.eq.s32.totalorder %v2380, 1
        %v2382 = vsel %vm2381, 0.0, %v2377
        %v2383 = vsel %vm553, %v2318, -inf
        %v2384 = vsel %vm554, %v2349, -inf
        %v2385 = vsel %vm447, %v2383, -inf
        %v2386 = vsel %vm447, %v2384, -inf
        %v2387 = vmax.f32 %v2385, %v2386
        %v2388 = vrot.slane %v2387, 4
        %v2389 = vmax.f32 %v2387, %v2388
        %v2390 = vrot.slane %v2389, 2
        %v2391 = vmax.f32 %v2389, %v2390
        %v2392 = vrot.slane %v2391, 1
        %v2393 = vmax.f32 %v2391, %v2392
        %p2394 = por %p2350, %p277
        %s2395 = scalar_select %p2394, 1, 0
        %v2396 = vstv %s2395
        %vm2397 = vcmp.eq.s32.totalorder %v2396, 1
        %v2398 = vsel %vm2397, 0.0, %v2393
        %v2399 = vsel %vm573, %v2318, -inf
        %v2400 = vsel %vm574, %v2349, -inf
        %v2401 = vsel %vm447, %v2399, -inf
        %v2402 = vsel %vm447, %v2400, -inf
        %v2403 = vmax.f32 %v2401, %v2402
        %v2404 = vrot.slane %v2403, 4
        %v2405 = vmax.f32 %v2403, %v2404
        %v2406 = vrot.slane %v2405, 2
        %v2407 = vmax.f32 %v2405, %v2406
        %v2408 = vrot.slane %v2407, 1
        %v2409 = vmax.f32 %v2407, %v2408
        %p2410 = por %p2350, %p290
        %s2411 = scalar_select %p2410, 1, 0
        %v2412 = vstv %s2411
        %vm2413 = vcmp.eq.s32.totalorder %v2412, 1
        %v2414 = vsel %vm2413, 0.0, %v2409
        %v2415 = vsel %vm593, %v2318, -inf
        %v2416 = vsel %vm594, %v2349, -inf
        %v2417 = vsel %vm447, %v2415, -inf
        %v2418 = vsel %vm447, %v2416, -inf
        %v2419 = vmax.f32 %v2417, %v2418
        %v2420 = vrot.slane %v2419, 4
        %v2421 = vmax.f32 %v2419, %v2420
        %v2422 = vrot.slane %v2421, 2
        %v2423 = vmax.f32 %v2421, %v2422
        %v2424 = vrot.slane %v2423, 1
        %v2425 = vmax.f32 %v2423, %v2424
        %p2426 = por %p2350, %p303
        %s2427 = scalar_select %p2426, 1, 0
        %v2428 = vstv %s2427
        %vm2429 = vcmp.eq.s32.totalorder %v2428, 1
        %v2430 = vsel %vm2429, 0.0, %v2425
        %v2431 = vsel %vm613, %v2318, -inf
        %v2432 = vsel %vm614, %v2349, -inf
        %v2433 = vsel %vm447, %v2431, -inf
        %v2434 = vsel %vm447, %v2432, -inf
        %v2435 = vmax.f32 %v2433, %v2434
        %v2436 = vrot.slane %v2435, 4
        %v2437 = vmax.f32 %v2435, %v2436
        %v2438 = vrot.slane %v2437, 2
        %v2439 = vmax.f32 %v2437, %v2438
        %v2440 = vrot.slane %v2439, 1
        %v2441 = vmax.f32 %v2439, %v2440
        %p2442 = por %p2350, %p316
        %s2443 = scalar_select %p2442, 1, 0
        %v2444 = vstv %s2443
        %vm2445 = vcmp.eq.s32.totalorder %v2444, 1
        %v2446 = vsel %vm2445, 0.0, %v2441
        %v2447 = vsel %vm633, %v2318, -inf
        %v2448 = vsel %vm634, %v2349, -inf
        %v2449 = vsel %vm447, %v2447, -inf
        %v2450 = vsel %vm447, %v2448, -inf
        %v2451 = vmax.f32 %v2449, %v2450
        %v2452 = vrot.slane %v2451, 4
        %v2453 = vmax.f32 %v2451, %v2452
        %v2454 = vrot.slane %v2453, 2
        %v2455 = vmax.f32 %v2453, %v2454
        %v2456 = vrot.slane %v2455, 1
        %v2457 = vmax.f32 %v2455, %v2456
        %p2458 = por %p2350, %p329
        %s2459 = scalar_select %p2458, 1, 0
        %v2460 = vstv %s2459
        %vm2461 = vcmp.eq.s32.totalorder %v2460, 1
        %v2462 = vsel %vm2461, 0.0, %v2457
        %v2463 = vsel %vm651, %v2366, %v2382
        %v2464 = vsel %vm653, %v2463, %v2398
        %v2465 = vsel %vm655, %v2464, %v2414
        %v2466 = vsel %vm657, %v2465, %v2430
        %v2467 = vsel %vm659, %v2466, %v2446
        %v2468 = vsel %vm661, %v2467, %v2462
        %s2469 = scalar_lea.vmem %s202, 48
        %2470 = vst.msk [vmem:[%s2469] sm:$0x7f] %vm663, %v2468
        %p2471 = scmp.lt.s32.totalorder %s26, 2
        %s2472 = scalar_select %p2471, %s26, 2
        %p2473 = scmp.lt.s32.totalorder %s25, 0
        %s2474 = scalar_select %p2473, %s25, 0
        %s2475 = smul.addr %s2472, 7
        %s2476 = sadd.s32 %s2474, %s2475
        %s2477 = smul.addr %s2476, 8
        %s2478 = scalar_lea.vmem %s3, %s2477
        // Predicated region
        $region33: #{tpu_custom_call.1} parent=27 // pred_check
          %p2479 = pneg %p104
        $region34: #{tpu_custom_call.1} parent=27 // pred_check_branch
          %2481 = sbr.rel (%p2479) target = $region36
        $region35: #{tpu_custom_call.1} parent=27 // pred_region
          _
        $region36: #{tpu_custom_call.1} parent=27 // pred_fallthru
          _
      $region28: #{tpu_custom_call.1} parent=5 // pred_fallthru
        _
      %p2482 = scmp.le.s32.totalorder 2, %s16
      // Predicated region
      $region37: #{tpu_custom_call.1} parent=5 // pred_check
        %p2483 = pneg %p2482
      $region38: #{tpu_custom_call.1} parent=5 // pred_check_branch
        %2485 = sbr.rel (%p2483) target = $region40
      $region39: #{tpu_custom_call.1} parent=5 // pred_region
        %s2486 = ssub.s32 %s16, 2
        // Predicated region
        $region41: #{tpu_custom_call.1} parent=39 // pred_check
          %p2487 = pneg %p110
        $region42: #{tpu_custom_call.1} parent=39 // pred_check_branch
          %2489 = sbr.rel (%p2487) target = $region44
        $region43: #{tpu_custom_call.1} parent=39 // pred_region
          %p2490 = scmp.lt.s32.totalorder %s28, 2
          %s2491 = scalar_select %p2490, %s28, 2
          %p2492 = scmp.lt.s32.totalorder %s27, 0
          %s2493 = scalar_select %p2492, %s27, 0
          %s2494 = smul.addr %s2491, 7
          %s2495 = sadd.s32 %s2493, %s2494
          %s2496 = smul.addr %s2495, 8
          %s2497 = scalar_lea.vmem %s3, %s2496
        $region44: #{tpu_custom_call.1} parent=39 // pred_fallthru
          _
      $region40: #{tpu_custom_call.1} parent=5 // pred_fallthru
        _
    $region6: #{tpu_custom_call.1} parent=1 // loop_footer
      %s20 = sadd.s32 1, %s16
    $region7: #{tpu_custom_call.1} parent=1 // loop_footer_branch
      %15 = sbr.rel target = $region3
    $region8: #{tpu_custom_call.1} parent=1 // loop_exit
      _
    %2498 = vsyncpa [#allocation5], 1
    %s2499 = scalar_lea.sflag [#allocation5], 1
    %2500 = vsyncpa %s2499, 1

</llo_original>
